<compile_context>
chip_gen: v6e
topology: v6e:2x2x1
jax: 0.10.0
libtpu: 0.0.40
codegen_flags: <defaults>
</compile_context>

<pallas_src>
import jax
import jax.numpy as jnp
from jax.experimental import pallas as pl
from jax.experimental.pallas import tpu as pltpu  # noqa: F401  (kept per convention)

H = 32    # hidden_size
V = 64    # output_size (vocab)
L = 16    # max_length
T = 8     # number of fused decode steps

PACK = 128                    # lane-dense packed width (output rows & fused weights)
PAD_OUT = PACK - (V + H + L)  # zero padding lanes in the packed output row
assert PAD_OUT >= 0 and 3 * H + L <= PACK


def attn_decoder_fused_kernel(
    emb_ref,     # (T, H)       pre-gathered embedding rows (dropout = identity, eval)
    hid0_ref,    # (1, H)       initial hidden state
    enc_ref,     # (L, H)       encoder outputs
    w_e_ref,     # (H, L+H)     [w_attn[:H] | w_comb[:H]]        (embedded side, fused)
    b_e_ref,     # (1, L+H)     [b_attn     | b_comb]
    w_h_ref,     # (H, PACK)    [W_hh_r | W_hh_z | W_hh_n | w_attn[H:] | 0] (hidden side)
    b_h_ref,     # (1, PACK)    [b_hh_r | b_hh_z | b_hh_n | 0           | 0]
    w_i_ref,     # (H, PACK)    [W_ih_r | W_ih_z | W_ih_n | 0]            (GRU input side)
    b_i_ref,     # (1, PACK)    [b_ih_r | b_ih_z | b_ih_n | 0]
    w_c2_ref,    # (H, H)       w_comb[H:]  (attn_applied -> combine)
    w_out_ref,   # (H, V)
    b_out_ref,   # (1, V)
    out_ref,     # (T, PACK)    per-step packed row: [logp | h_new | attn_w | 0]
):
    n_steps = emb_ref.shape[0]

    # Resident operands, loaded once (hoisted out of the unrolled loop).
    enc = enc_ref[...]
    w_h = w_h_ref[...]
    b_h = b_h_ref[...]
    w_i = w_i_ref[...]
    b_i = b_i_ref[...]
    w_c2 = w_c2_ref[...]
    w_out = w_out_ref[...]
    b_out = b_out_ref[...]
    zero_pad = jnp.zeros((1, PAD_OUT), jnp.float32)

    # Embedded-side projections for ALL steps in ONE matmul; this part does not
    # depend on the recurrence, so it is fully off the serial critical path.
    emb_proj = (
        jnp.dot(emb_ref[...], w_e_ref[...], preferred_element_type=jnp.float32)
        + b_e_ref[...]
    )  # (T, L+H):  [:, :L] -> attn logits contribution, [:, L:] -> combine contribution

    h = hid0_ref[...]  # (1, H) hidden state carried purely in registers/VMEM

    # n_steps is static => this Python loop is a fully unrolled in-kernel loop
    # (equivalent to lax.fori_loop(0, T, ..., unroll=True) with static indices),
    # giving the LLO scheduler full visibility across steps.
    for t in range(n_steps):
        ep = emb_proj[t:t + 1, :]                                  # (1, L+H) static slice

        # Hidden-side fused matmul: GRU gh_{r,z,n} + attention h-contribution.
        hp = jnp.dot(h, w_h, preferred_element_type=jnp.float32) + b_h   # (1, PACK)

        # --- attention softmax (exact reciprocal: feeds the recurrent state) ---
        attn_logits = ep[:, :L] + hp[:, 3 * H:3 * H + L]           # (1, L)
        m = jnp.max(attn_logits, axis=-1, keepdims=True)
        e = jnp.exp(attn_logits - m)
        attn_w = e / jnp.sum(e, axis=-1, keepdims=True)            # (1, L)

        # bmm(attn_weights, encoder_outputs)
        attn_applied = jnp.dot(attn_w, enc,
                               preferred_element_type=jnp.float32)  # (1, H)

        # attn_combine(cat(embedded, attn_applied)) + ReLU
        x = jnp.maximum(
            ep[:, L:] + jnp.dot(attn_applied, w_c2,
                                preferred_element_type=jnp.float32),
            0.0)                                                    # (1, H)

        # --- single-step GRU cell (PyTorch gate order r, z, n) ---
        gi = jnp.dot(x, w_i, preferred_element_type=jnp.float32) + b_i   # (1, PACK)
        # r and z occupy adjacent lanes [0:2H] in both gi and hp -> ONE sigmoid.
        rz = jax.nn.sigmoid(gi[:, :2 * H] + hp[:, :2 * H])          # (1, 2H)
        r = rz[:, :H]
        z = rz[:, H:2 * H]
        n = jnp.tanh(gi[:, 2 * H:3 * H] + r * hp[:, 2 * H:3 * H])
        h = (1.0 - z) * n + z * h                                   # (1, H)

        # --- out linear + log_softmax ---
        logits = jnp.dot(h, w_out, preferred_element_type=jnp.float32) + b_out
        lm = jnp.max(logits, axis=-1, keepdims=True)
        ls = logits - lm
        logp = ls - jnp.log(jnp.sum(jnp.exp(ls), axis=-1, keepdims=True))

        # Lane-dense packed row; out_ref lives in VMEM for the whole call and is
        # written back to HBM with a single DMA when the kernel finishes.
        packed = jnp.concatenate([logp, h, attn_w, zero_pad], axis=-1)    # (1, PACK)
        out_ref[pl.ds(t, 1), :] = packed


def pack_weights(p):
    """Fuse same-LHS weight matrices along the lane axis (padded to 128)."""
    zH = lambda n: jnp.zeros((H, n), jnp.float32)
    z1 = lambda n: jnp.zeros((1, n), jnp.float32)
    w_e = jnp.concatenate([p["w_attn"][:H], p["w_comb"][:H]], axis=1)        # (H, L+H)
    b_e = jnp.concatenate([p["b_attn"], p["b_comb"]], axis=1)                # (1, L+H)
    w_h = jnp.concatenate([p["w_hh"][0], p["w_hh"][1], p["w_hh"][2],
                           p["w_attn"][H:], zH(PACK - 3 * H - L)], axis=1)   # (H, 128)
    b_h = jnp.concatenate([p["b_hh"][0], p["b_hh"][1], p["b_hh"][2],
                           z1(PACK - 3 * H)], axis=1)                        # (1, 128)
    w_i = jnp.concatenate([p["w_ih"][0], p["w_ih"][1], p["w_ih"][2],
                           zH(PACK - 3 * H)], axis=1)                        # (H, 128)
    b_i = jnp.concatenate([p["b_ih"][0], p["b_ih"][1], p["b_ih"][2],
                           z1(PACK - 3 * H)], axis=1)                        # (1, 128)
    return w_e, b_e, w_h, b_h, w_i, b_i, p["w_comb"][H:], p["w_out"], p["b_out"]


def attn_decoder_forward_fused(tokens, hidden_110, encoder_outputs, params):
    """Run T fused decode steps in one pallas_call.

    tokens: (T,) int32; hidden_110: (1,1,H) f32; encoder_outputs: (L,H) f32.
    Returns (logp (T,V), hidden_final (1,1,H), attn_w (T,L), hidden_all (T,H)).
    """
    n_steps = tokens.shape[0]
    # Out-of-range tokens are clipped to valid rows (documented semantic choice).
    tok = jnp.clip(tokens.astype(jnp.int32), 0, V - 1)
    emb_slab = jnp.take(params["emb"], tok, axis=0)          # (T, H); eval dropout = identity
    w_e, b_e, w_h, b_h, w_i, b_i, w_c2, w_out, b_out = pack_weights(params)
    hidden = hidden_110.reshape(1, H)

    # Single grid point: every operand is a whole-array VMEM-resident block,
    # so there is exactly one input DMA per operand and one output DMA total.
    packed = pl.pallas_call(
        attn_decoder_fused_kernel,
        out_shape=jax.ShapeDtypeStruct((n_steps, PACK), jnp.float32),
    )(emb_slab, hidden, encoder_outputs,
      w_e, b_e, w_h, b_h, w_i, b_i, w_c2, w_out, b_out)

    logp = packed[:, :V]                                      # (T, V)
    h_all = packed[:, V:V + H]                                # (T, H)
    attn_w = packed[:, V + H:V + H + L]                       # (T, L)
    return logp, h_all[-1].reshape(1, 1, H), attn_w, h_all


def make_params(key):
    ks = jax.random.split(key, 10)
    s = 0.1
    return {
        "emb":    s * jax.random.normal(ks[0], (V, H), jnp.float32),
        "w_attn": s * jax.random.normal(ks[1], (2 * H, L), jnp.float32),
        "b_attn": s * jax.random.normal(ks[2], (1, L), jnp.float32),
        "w_comb": s * jax.random.normal(ks[3], (2 * H, H), jnp.float32),
        "b_comb": s * jax.random.normal(ks[4], (1, H), jnp.float32),
        # gate-major GRU params: leading axis = gate (r, z, n)
        "w_ih":   s * jax.random.normal(ks[5], (3, H, H), jnp.float32),
        "w_hh":   s * jax.random.normal(ks[6], (3, H, H), jnp.float32),
        "b_ih":   s * jax.random.normal(ks[7], (3, 1, H), jnp.float32),
        "b_hh":   s * jax.random.normal(ks[8], (3, 1, H), jnp.float32),
        "w_out":  s * jax.random.normal(ks[9], (H, V), jnp.float32),
        "b_out":  jnp.zeros((1, V), jnp.float32),
    }


def _mm(a, b):
    return jnp.dot(a, b, precision=jax.lax.Precision.HIGHEST)


def reference_step(tok, h, enc, p):
    """Pure-JAX replica of one PyTorch forward step (eval mode)."""
    embedded = p["emb"][tok][None, :]
    cat1 = jnp.concatenate([embedded, h], axis=1)
    attn_w = jax.nn.softmax(_mm(cat1, p["w_attn"]) + p["b_attn"], axis=1)
    attn_applied = _mm(attn_w, enc)
    cat2 = jnp.concatenate([embedded, attn_applied], axis=1)
    x = jax.nn.relu(_mm(cat2, p["w_comb"]) + p["b_comb"])
    r = jax.nn.sigmoid(_mm(x, p["w_ih"][0]) + p["b_ih"][0] + _mm(h, p["w_hh"][0]) + p["b_hh"][0])
    z = jax.nn.sigmoid(_mm(x, p["w_ih"][1]) + p["b_ih"][1] + _mm(h, p["w_hh"][1]) + p["b_hh"][1])
    n = jnp.tanh(_mm(x, p["w_ih"][2]) + p["b_ih"][2] + r * (_mm(h, p["w_hh"][2]) + p["b_hh"][2]))
    h_new = (1.0 - z) * n + z * h
    logp = jax.nn.log_softmax(_mm(h_new, p["w_out"]) + p["b_out"], axis=1)
    return logp, h_new, attn_w


def reference_forward(tokens, hidden_110, enc, p):
    h = hidden_110.reshape(1, H)
    logps, hs, ws = [], [], []
    for t in range(tokens.shape[0]):
        logp, h, w = reference_step(int(tokens[t]), h, enc, p)
        logps.append(logp); hs.append(h); ws.append(w)
    return (jnp.concatenate(logps, 0), h.reshape(1, 1, H),
            jnp.concatenate(ws, 0), jnp.concatenate(hs, 0))


if __name__ == "__main__":
    key = jax.random.PRNGKey(0)
    kp, kh, ke, kt = jax.random.split(key, 4)
    params = make_params(kp)

    tokens = jax.random.randint(kt, (T,), 0, V, dtype=jnp.int32)   # decoder input tokens
    hidden0 = 0.1 * jax.random.normal(kh, (1, 1, H), jnp.float32)
    encoder_outputs = 0.1 * jax.random.normal(ke, (L, H), jnp.float32)

    logp, h_fin, attn_w, h_all = attn_decoder_forward_fused(
        tokens, hidden0, encoder_outputs, params)
    jax.block_until_ready((logp, h_fin, attn_w, h_all))

    r_logp, r_hfin, r_w, r_hall = reference_forward(tokens, hidden0, encoder_outputs, params)

    # exact reciprocal in the attention softmax -> tight tolerance again
    tol = dict(atol=2e-5, rtol=2e-5)
    assert jnp.allclose(logp, r_logp, **tol)
    assert jnp.allclose(h_fin, r_hfin, **tol)
    assert jnp.allclose(attn_w, r_w, **tol)
    assert jnp.allclose(h_all, r_hall, **tol)

    print("KERNEL_OK")
</pallas_src>

<mosaic_0001>
module attributes {stable_mosaic.version = 11 : i64} {
  func.func @attn_decoder_fused_kernel(%arg0: memref<8x32xf32, #tpu.memory_space<vmem>>, %arg1: memref<1x32xf32, #tpu.memory_space<vmem>>, %arg2: memref<16x32xf32, #tpu.memory_space<vmem>>, %arg3: memref<32x48xf32, #tpu.memory_space<vmem>>, %arg4: memref<1x48xf32, #tpu.memory_space<vmem>>, %arg5: memref<32x128xf32, #tpu.memory_space<vmem>>, %arg6: memref<1x128xf32, #tpu.memory_space<vmem>>, %arg7: memref<32x128xf32, #tpu.memory_space<vmem>>, %arg8: memref<1x128xf32, #tpu.memory_space<vmem>>, %arg9: memref<32x32xf32, #tpu.memory_space<vmem>>, %arg10: memref<32x64xf32, #tpu.memory_space<vmem>>, %arg11: memref<1x64xf32, #tpu.memory_space<vmem>>, %arg12: memref<8x128xf32, #tpu.memory_space<vmem>>) attributes {dimension_semantics = [], scalar_prefetch = 0 : i64, scratch_operands = 0 : i64, tpu.core_type = #tpu.core_type<tc>} {
    %c0 = arith.constant 0 : index
    %c0_0 = arith.constant 0 : index
    %0 = vector.load %arg2[%c0, %c0_0] : memref<16x32xf32, #tpu.memory_space<vmem>>, vector<16x32xf32>
    %c0_1 = arith.constant 0 : index
    %c0_2 = arith.constant 0 : index
    %1 = vector.load %arg5[%c0_1, %c0_2] : memref<32x128xf32, #tpu.memory_space<vmem>>, vector<32x128xf32>
    %c0_3 = arith.constant 0 : index
    %c0_4 = arith.constant 0 : index
    %2 = vector.load %arg6[%c0_3, %c0_4] : memref<1x128xf32, #tpu.memory_space<vmem>>, vector<1x128xf32>
    %c0_5 = arith.constant 0 : index
    %c0_6 = arith.constant 0 : index
    %3 = vector.load %arg7[%c0_5, %c0_6] : memref<32x128xf32, #tpu.memory_space<vmem>>, vector<32x128xf32>
    %c0_7 = arith.constant 0 : index
    %c0_8 = arith.constant 0 : index
    %4 = vector.load %arg8[%c0_7, %c0_8] : memref<1x128xf32, #tpu.memory_space<vmem>>, vector<1x128xf32>
    %c0_9 = arith.constant 0 : index
    %c0_10 = arith.constant 0 : index
    %5 = vector.load %arg9[%c0_9, %c0_10] : memref<32x32xf32, #tpu.memory_space<vmem>>, vector<32x32xf32>
    %c0_11 = arith.constant 0 : index
    %c0_12 = arith.constant 0 : index
    %6 = vector.load %arg10[%c0_11, %c0_12] : memref<32x64xf32, #tpu.memory_space<vmem>>, vector<32x64xf32>
    %c0_13 = arith.constant 0 : index
    %c0_14 = arith.constant 0 : index
    %7 = vector.load %arg11[%c0_13, %c0_14] : memref<1x64xf32, #tpu.memory_space<vmem>>, vector<1x64xf32>
    %cst = arith.constant 0.000000e+00 : f32
    %8 = vector.broadcast %cst : f32 to vector<1x16xf32>
    %c0_15 = arith.constant 0 : index
    %c0_16 = arith.constant 0 : index
    %9 = vector.load %arg0[%c0_15, %c0_16] : memref<8x32xf32, #tpu.memory_space<vmem>>, vector<8x32xf32>
    %c0_17 = arith.constant 0 : index
    %c0_18 = arith.constant 0 : index
    %10 = vector.load %arg3[%c0_17, %c0_18] : memref<32x48xf32, #tpu.memory_space<vmem>>, vector<32x48xf32>
    %cst_19 = arith.constant dense<0.000000e+00> : vector<8x48xf32>
    %11 = tpu.matmul %9, %10, %cst_19 {dimension_numbers = #tpu.dot_dimension_numbers<[1], [0], [0], [1], [0, 0, 1, 1], [], []>} : vector<8x32xf32>, vector<32x48xf32>, vector<8x48xf32> -> vector<8x48xf32>
    %c0_20 = arith.constant 0 : index
    %c0_21 = arith.constant 0 : index
    %12 = vector.load %arg4[%c0_20, %c0_21] : memref<1x48xf32, #tpu.memory_space<vmem>>, vector<1x48xf32>
    %13 = vector.broadcast %12 : vector<1x48xf32> to vector<8x48xf32>
    %14 = arith.addf %11, %13 : vector<8x48xf32>
    %c0_22 = arith.constant 0 : index
    %c0_23 = arith.constant 0 : index
    %15 = vector.load %arg1[%c0_22, %c0_23] : memref<1x32xf32, #tpu.memory_space<vmem>>, vector<1x32xf32>
    %16 = vector.extract_strided_slice %14 {offsets = [0, 0], sizes = [1, 48], strides = [1, 1]} : vector<8x48xf32> to vector<1x48xf32>
    %cst_24 = arith.constant dense<0.000000e+00> : vector<1x128xf32>
    %17 = tpu.matmul %15, %1, %cst_24 {dimension_numbers = #tpu.dot_dimension_numbers<[1], [0], [0], [1], [0, 0, 1, 1], [], []>} : vector<1x32xf32>, vector<32x128xf32>, vector<1x128xf32> -> vector<1x128xf32>
    %18 = arith.addf %17, %2 : vector<1x128xf32>
    %19 = vector.extract_strided_slice %16 {offsets = [0, 0], sizes = [1, 16], strides = [1, 1]} : vector<1x48xf32> to vector<1x16xf32>
    %20 = vector.extract_strided_slice %18 {offsets = [0, 96], sizes = [1, 16], strides = [1, 1]} : vector<1x128xf32> to vector<1x16xf32>
    %21 = arith.addf %19, %20 : vector<1x16xf32>
    %cst_25 = arith.constant dense<0xFF800000> : vector<1xf32>
    %22 = vector.multi_reduction <maximumf>, %21, %cst_25 [1] : vector<1x16xf32> to vector<1xf32>
    %23 = vector.shape_cast %22 : vector<1xf32> to vector<1x1xf32>
    %24 = vector.broadcast %23 : vector<1x1xf32> to vector<1x16xf32>
    %25 = arith.subf %21, %24 : vector<1x16xf32>
    %26 = math.exp %25 : vector<1x16xf32>
    %cst_26 = arith.constant dense<0.000000e+00> : vector<1xf32>
    %27 = vector.multi_reduction <add>, %26, %cst_26 [1] : vector<1x16xf32> to vector<1xf32>
    %28 = vector.shape_cast %27 : vector<1xf32> to vector<1x1xf32>
    %29 = vector.broadcast %28 : vector<1x1xf32> to vector<1x16xf32>
    %30 = arith.divf %26, %29 : vector<1x16xf32>
    %cst_27 = arith.constant dense<0.000000e+00> : vector<1x32xf32>
    %31 = tpu.matmul %30, %0, %cst_27 {dimension_numbers = #tpu.dot_dimension_numbers<[1], [0], [0], [1], [0, 0, 1, 1], [], []>} : vector<1x16xf32>, vector<16x32xf32>, vector<1x32xf32> -> vector<1x32xf32>
    %32 = vector.extract_strided_slice %16 {offsets = [0, 16], sizes = [1, 32], strides = [1, 1]} : vector<1x48xf32> to vector<1x32xf32>
    %cst_28 = arith.constant dense<0.000000e+00> : vector<1x32xf32>
    %33 = tpu.matmul %31, %5, %cst_28 {dimension_numbers = #tpu.dot_dimension_numbers<[1], [0], [0], [1], [0, 0, 1, 1], [], []>} : vector<1x32xf32>, vector<32x32xf32>, vector<1x32xf32> -> vector<1x32xf32>
    %34 = arith.addf %32, %33 : vector<1x32xf32>
    %cst_29 = arith.constant 0.000000e+00 : f32
    %35 = vector.broadcast %cst_29 : f32 to vector<1x32xf32>
    %36 = arith.maximumf %34, %35 : vector<1x32xf32>
    %cst_30 = arith.constant dense<0.000000e+00> : vector<1x128xf32>
    %37 = tpu.matmul %36, %3, %cst_30 {dimension_numbers = #tpu.dot_dimension_numbers<[1], [0], [0], [1], [0, 0, 1, 1], [], []>} : vector<1x32xf32>, vector<32x128xf32>, vector<1x128xf32> -> vector<1x128xf32>
    %38 = arith.addf %37, %4 : vector<1x128xf32>
    %39 = vector.extract_strided_slice %38 {offsets = [0, 0], sizes = [1, 64], strides = [1, 1]} : vector<1x128xf32> to vector<1x64xf32>
    %40 = vector.extract_strided_slice %18 {offsets = [0, 0], sizes = [1, 64], strides = [1, 1]} : vector<1x128xf32> to vector<1x64xf32>
    %41 = arith.addf %39, %40 : vector<1x64xf32>
    %42 = arith.negf %41 : vector<1x64xf32>
    %43 = math.exp %42 : vector<1x64xf32>
    %cst_31 = arith.constant 1.000000e+00 : f32
    %44 = vector.broadcast %cst_31 : f32 to vector<1x64xf32>
    %45 = arith.addf %44, %43 : vector<1x64xf32>
    %46 = arith.divf %44, %45 : vector<1x64xf32>
    %47 = vector.extract_strided_slice %46 {offsets = [0, 0], sizes = [1, 32], strides = [1, 1]} : vector<1x64xf32> to vector<1x32xf32>
    %48 = vector.extract_strided_slice %46 {offsets = [0, 32], sizes = [1, 32], strides = [1, 1]} : vector<1x64xf32> to vector<1x32xf32>
    %49 = vector.extract_strided_slice %38 {offsets = [0, 64], sizes = [1, 32], strides = [1, 1]} : vector<1x128xf32> to vector<1x32xf32>
    %50 = vector.extract_strided_slice %18 {offsets = [0, 64], sizes = [1, 32], strides = [1, 1]} : vector<1x128xf32> to vector<1x32xf32>
    %51 = arith.mulf %47, %50 : vector<1x32xf32>
    %52 = arith.addf %49, %51 : vector<1x32xf32>
    %53 = math.tanh %52 : vector<1x32xf32>
    %cst_32 = arith.constant 1.000000e+00 : f32
    %54 = vector.broadcast %cst_32 : f32 to vector<1x32xf32>
    %55 = arith.subf %54, %48 : vector<1x32xf32>
    %56 = arith.mulf %55, %53 : vector<1x32xf32>
    %57 = arith.mulf %48, %15 : vector<1x32xf32>
    %58 = arith.addf %56, %57 : vector<1x32xf32>
    %cst_33 = arith.constant dense<0.000000e+00> : vector<1x64xf32>
    %59 = tpu.matmul %58, %6, %cst_33 {dimension_numbers = #tpu.dot_dimension_numbers<[1], [0], [0], [1], [0, 0, 1, 1], [], []>} : vector<1x32xf32>, vector<32x64xf32>, vector<1x64xf32> -> vector<1x64xf32>
    %60 = arith.addf %59, %7 : vector<1x64xf32>
    %cst_34 = arith.constant dense<0xFF800000> : vector<1xf32>
    %61 = vector.multi_reduction <maximumf>, %60, %cst_34 [1] : vector<1x64xf32> to vector<1xf32>
    %62 = vector.shape_cast %61 : vector<1xf32> to vector<1x1xf32>
    %63 = vector.broadcast %62 : vector<1x1xf32> to vector<1x64xf32>
    %64 = arith.subf %60, %63 : vector<1x64xf32>
    %65 = math.exp %64 : vector<1x64xf32>
    %cst_35 = arith.constant dense<0.000000e+00> : vector<1xf32>
    %66 = vector.multi_reduction <add>, %65, %cst_35 [1] : vector<1x64xf32> to vector<1xf32>
    %67 = vector.shape_cast %66 : vector<1xf32> to vector<1x1xf32>
    %68 = math.log %67 : vector<1x1xf32>
    %69 = vector.broadcast %68 : vector<1x1xf32> to vector<1x64xf32>
    %70 = arith.subf %64, %69 : vector<1x64xf32>
    %71 = tpu.concatenate %70, %58, %30, %8 in 1 : vector<1x64xf32>, vector<1x32xf32>, vector<1x16xf32>, vector<1x16xf32> -> vector<1x128xf32>
    %c0_36 = arith.constant 0 : index
    %c0_37 = arith.constant 0 : index
    %72 = vector.load %arg12[%c0_36, %c0_37] : memref<8x128xf32, #tpu.memory_space<vmem>>, vector<1x128xf32>
    tpu.vector_store %arg12[%c0_36, %c0_37], %71 {strides = array<i32>} : memref<8x128xf32, #tpu.memory_space<vmem>>, vector<1x128xf32>,
    %73 = vector.extract_strided_slice %14 {offsets = [1, 0], sizes = [1, 48], strides = [1, 1]} : vector<8x48xf32> to vector<1x48xf32>
    %cst_38 = arith.constant dense<0.000000e+00> : vector<1x128xf32>
    %74 = tpu.matmul %58, %1, %cst_38 {dimension_numbers = #tpu.dot_dimension_numbers<[1], [0], [0], [1], [0, 0, 1, 1], [], []>} : vector<1x32xf32>, vector<32x128xf32>, vector<1x128xf32> -> vector<1x128xf32>
    %75 = arith.addf %74, %2 : vector<1x128xf32>
    %76 = vector.extract_strided_slice %73 {offsets = [0, 0], sizes = [1, 16], strides = [1, 1]} : vector<1x48xf32> to vector<1x16xf32>
    %77 = vector.extract_strided_slice %75 {offsets = [0, 96], sizes = [1, 16], strides = [1, 1]} : vector<1x128xf32> to vector<1x16xf32>
    %78 = arith.addf %76, %77 : vector<1x16xf32>
    %cst_39 = arith.constant dense<0xFF800000> : vector<1xf32>
    %79 = vector.multi_reduction <maximumf>, %78, %cst_39 [1] : vector<1x16xf32> to vector<1xf32>
    %80 = vector.shape_cast %79 : vector<1xf32> to vector<1x1xf32>
    %81 = vector.broadcast %80 : vector<1x1xf32> to vector<1x16xf32>
    %82 = arith.subf %78, %81 : vector<1x16xf32>
    %83 = math.exp %82 : vector<1x16xf32>
    %cst_40 = arith.constant dense<0.000000e+00> : vector<1xf32>
    %84 = vector.multi_reduction <add>, %83, %cst_40 [1] : vector<1x16xf32> to vector<1xf32>
    %85 = vector.shape_cast %84 : vector<1xf32> to vector<1x1xf32>
    %86 = vector.broadcast %85 : vector<1x1xf32> to vector<1x16xf32>
    %87 = arith.divf %83, %86 : vector<1x16xf32>
    %cst_41 = arith.constant dense<0.000000e+00> : vector<1x32xf32>
    %88 = tpu.matmul %87, %0, %cst_41 {dimension_numbers = #tpu.dot_dimension_numbers<[1], [0], [0], [1], [0, 0, 1, 1], [], []>} : vector<1x16xf32>, vector<16x32xf32>, vector<1x32xf32> -> vector<1x32xf32>
    %89 = vector.extract_strided_slice %73 {offsets = [0, 16], sizes = [1, 32], strides = [1, 1]} : vector<1x48xf32> to vector<1x32xf32>
    %cst_42 = arith.constant dense<0.000000e+00> : vector<1x32xf32>
    %90 = tpu.matmul %88, %5, %cst_42 {dimension_numbers = #tpu.dot_dimension_numbers<[1], [0], [0], [1], [0, 0, 1, 1], [], []>} : vector<1x32xf32>, vector<32x32xf32>, vector<1x32xf32> -> vector<1x32xf32>
    %91 = arith.addf %89, %90 : vector<1x32xf32>
    %cst_43 = arith.constant 0.000000e+00 : f32
    %92 = vector.broadcast %cst_43 : f32 to vector<1x32xf32>
    %93 = arith.maximumf %91, %92 : vector<1x32xf32>
    %cst_44 = arith.constant dense<0.000000e+00> : vector<1x128xf32>
    %94 = tpu.matmul %93, %3, %cst_44 {dimension_numbers = #tpu.dot_dimension_numbers<[1], [0], [0], [1], [0, 0, 1, 1], [], []>} : vector<1x32xf32>, vector<32x128xf32>, vector<1x128xf32> -> vector<1x128xf32>
    %95 = arith.addf %94, %4 : vector<1x128xf32>
    %96 = vector.extract_strided_slice %95 {offsets = [0, 0], sizes = [1, 64], strides = [1, 1]} : vector<1x128xf32> to vector<1x64xf32>
    %97 = vector.extract_strided_slice %75 {offsets = [0, 0], sizes = [1, 64], strides = [1, 1]} : vector<1x128xf32> to vector<1x64xf32>
    %98 = arith.addf %96, %97 : vector<1x64xf32>
    %99 = arith.negf %98 : vector<1x64xf32>
    %100 = math.exp %99 : vector<1x64xf32>
    %cst_45 = arith.constant 1.000000e+00 : f32
    %101 = vector.broadcast %cst_45 : f32 to vector<1x64xf32>
    %102 = arith.addf %101, %100 : vector<1x64xf32>
    %103 = arith.divf %101, %102 : vector<1x64xf32>
    %104 = vector.extract_strided_slice %103 {offsets = [0, 0], sizes = [1, 32], strides = [1, 1]} : vector<1x64xf32> to vector<1x32xf32>
    %105 = vector.extract_strided_slice %103 {offsets = [0, 32], sizes = [1, 32], strides = [1, 1]} : vector<1x64xf32> to vector<1x32xf32>
    %106 = vector.extract_strided_slice %95 {offsets = [0, 64], sizes = [1, 32], strides = [1, 1]} : vector<1x128xf32> to vector<1x32xf32>
    %107 = vector.extract_strided_slice %75 {offsets = [0, 64], sizes = [1, 32], strides = [1, 1]} : vector<1x128xf32> to vector<1x32xf32>
    %108 = arith.mulf %104, %107 : vector<1x32xf32>
    %109 = arith.addf %106, %108 : vector<1x32xf32>
    %110 = math.tanh %109 : vector<1x32xf32>
    %cst_46 = arith.constant 1.000000e+00 : f32
    %111 = vector.broadcast %cst_46 : f32 to vector<1x32xf32>
    %112 = arith.subf %111, %105 : vector<1x32xf32>
    %113 = arith.mulf %112, %110 : vector<1x32xf32>
    %114 = arith.mulf %105, %58 : vector<1x32xf32>
    %115 = arith.addf %113, %114 : vector<1x32xf32>
    %cst_47 = arith.constant dense<0.000000e+00> : vector<1x64xf32>
    %116 = tpu.matmul %115, %6, %cst_47 {dimension_numbers = #tpu.dot_dimension_numbers<[1], [0], [0], [1], [0, 0, 1, 1], [], []>} : vector<1x32xf32>, vector<32x64xf32>, vector<1x64xf32> -> vector<1x64xf32>
    %117 = arith.addf %116, %7 : vector<1x64xf32>
    %cst_48 = arith.constant dense<0xFF800000> : vector<1xf32>
    %118 = vector.multi_reduction <maximumf>, %117, %cst_48 [1] : vector<1x64xf32> to vector<1xf32>
    %119 = vector.shape_cast %118 : vector<1xf32> to vector<1x1xf32>
    %120 = vector.broadcast %119 : vector<1x1xf32> to vector<1x64xf32>
    %121 = arith.subf %117, %120 : vector<1x64xf32>
    %122 = math.exp %121 : vector<1x64xf32>
    %cst_49 = arith.constant dense<0.000000e+00> : vector<1xf32>
    %123 = vector.multi_reduction <add>, %122, %cst_49 [1] : vector<1x64xf32> to vector<1xf32>
    %124 = vector.shape_cast %123 : vector<1xf32> to vector<1x1xf32>
    %125 = math.log %124 : vector<1x1xf32>
    %126 = vector.broadcast %125 : vector<1x1xf32> to vector<1x64xf32>
    %127 = arith.subf %121, %126 : vector<1x64xf32>
    %128 = tpu.concatenate %127, %115, %87, %8 in 1 : vector<1x64xf32>, vector<1x32xf32>, vector<1x16xf32>, vector<1x16xf32> -> vector<1x128xf32>
    %c1 = arith.constant 1 : index
    %c0_50 = arith.constant 0 : index
    %129 = vector.load %arg12[%c1, %c0_50] : memref<8x128xf32, #tpu.memory_space<vmem>>, vector<1x128xf32>
    tpu.vector_store %arg12[%c1, %c0_50], %128 {strides = array<i32>} : memref<8x128xf32, #tpu.memory_space<vmem>>, vector<1x128xf32>,
    %130 = vector.extract_strided_slice %14 {offsets = [2, 0], sizes = [1, 48], strides = [1, 1]} : vector<8x48xf32> to vector<1x48xf32>
    %cst_51 = arith.constant dense<0.000000e+00> : vector<1x128xf32>
    %131 = tpu.matmul %115, %1, %cst_51 {dimension_numbers = #tpu.dot_dimension_numbers<[1], [0], [0], [1], [0, 0, 1, 1], [], []>} : vector<1x32xf32>, vector<32x128xf32>, vector<1x128xf32> -> vector<1x128xf32>
    %132 = arith.addf %131, %2 : vector<1x128xf32>
    %133 = vector.extract_strided_slice %130 {offsets = [0, 0], sizes = [1, 16], strides = [1, 1]} : vector<1x48xf32> to vector<1x16xf32>
    %134 = vector.extract_strided_slice %132 {offsets = [0, 96], sizes = [1, 16], strides = [1, 1]} : vector<1x128xf32> to vector<1x16xf32>
    %135 = arith.addf %133, %134 : vector<1x16xf32>
    %cst_52 = arith.constant dense<0xFF800000> : vector<1xf32>
    %136 = vector.multi_reduction <maximumf>, %135, %cst_52 [1] : vector<1x16xf32> to vector<1xf32>
    %137 = vector.shape_cast %136 : vector<1xf32> to vector<1x1xf32>
    %138 = vector.broadcast %137 : vector<1x1xf32> to vector<1x16xf32>
    %139 = arith.subf %135, %138 : vector<1x16xf32>
    %140 = math.exp %139 : vector<1x16xf32>
    %cst_53 = arith.constant dense<0.000000e+00> : vector<1xf32>
    %141 = vector.multi_reduction <add>, %140, %cst_53 [1] : vector<1x16xf32> to vector<1xf32>
    %142 = vector.shape_cast %141 : vector<1xf32> to vector<1x1xf32>
    %143 = vector.broadcast %142 : vector<1x1xf32> to vector<1x16xf32>
    %144 = arith.divf %140, %143 : vector<1x16xf32>
    %cst_54 = arith.constant dense<0.000000e+00> : vector<1x32xf32>
    %145 = tpu.matmul %144, %0, %cst_54 {dimension_numbers = #tpu.dot_dimension_numbers<[1], [0], [0], [1], [0, 0, 1, 1], [], []>} : vector<1x16xf32>, vector<16x32xf32>, vector<1x32xf32> -> vector<1x32xf32>
    %146 = vector.extract_strided_slice %130 {offsets = [0, 16], sizes = [1, 32], strides = [1, 1]} : vector<1x48xf32> to vector<1x32xf32>
    %cst_55 = arith.constant dense<0.000000e+00> : vector<1x32xf32>
    %147 = tpu.matmul %145, %5, %cst_55 {dimension_numbers = #tpu.dot_dimension_numbers<[1], [0], [0], [1], [0, 0, 1, 1], [], []>} : vector<1x32xf32>, vector<32x32xf32>, vector<1x32xf32> -> vector<1x32xf32>
    %148 = arith.addf %146, %147 : vector<1x32xf32>
    %cst_56 = arith.constant 0.000000e+00 : f32
    %149 = vector.broadcast %cst_56 : f32 to vector<1x32xf32>
    %150 = arith.maximumf %148, %149 : vector<1x32xf32>
    %cst_57 = arith.constant dense<0.000000e+00> : vector<1x128xf32>
    %151 = tpu.matmul %150, %3, %cst_57 {dimension_numbers = #tpu.dot_dimension_numbers<[1], [0], [0], [1], [0, 0, 1, 1], [], []>} : vector<1x32xf32>, vector<32x128xf32>, vector<1x128xf32> -> vector<1x128xf32>
    %152 = arith.addf %151, %4 : vector<1x128xf32>
    %153 = vector.extract_strided_slice %152 {offsets = [0, 0], sizes = [1, 64], strides = [1, 1]} : vector<1x128xf32> to vector<1x64xf32>
    %154 = vector.extract_strided_slice %132 {offsets = [0, 0], sizes = [1, 64], strides = [1, 1]} : vector<1x128xf32> to vector<1x64xf32>
    %155 = arith.addf %153, %154 : vector<1x64xf32>
    %156 = arith.negf %155 : vector<1x64xf32>
    %157 = math.exp %156 : vector<1x64xf32>
    %cst_58 = arith.constant 1.000000e+00 : f32
    %158 = vector.broadcast %cst_58 : f32 to vector<1x64xf32>
    %159 = arith.addf %158, %157 : vector<1x64xf32>
    %160 = arith.divf %158, %159 : vector<1x64xf32>
    %161 = vector.extract_strided_slice %160 {offsets = [0, 0], sizes = [1, 32], strides = [1, 1]} : vector<1x64xf32> to vector<1x32xf32>
    %162 = vector.extract_strided_slice %160 {offsets = [0, 32], sizes = [1, 32], strides = [1, 1]} : vector<1x64xf32> to vector<1x32xf32>
    %163 = vector.extract_strided_slice %152 {offsets = [0, 64], sizes = [1, 32], strides = [1, 1]} : vector<1x128xf32> to vector<1x32xf32>
    %164 = vector.extract_strided_slice %132 {offsets = [0, 64], sizes = [1, 32], strides = [1, 1]} : vector<1x128xf32> to vector<1x32xf32>
    %165 = arith.mulf %161, %164 : vector<1x32xf32>
    %166 = arith.addf %163, %165 : vector<1x32xf32>
    %167 = math.tanh %166 : vector<1x32xf32>
    %cst_59 = arith.constant 1.000000e+00 : f32
    %168 = vector.broadcast %cst_59 : f32 to vector<1x32xf32>
    %169 = arith.subf %168, %162 : vector<1x32xf32>
    %170 = arith.mulf %169, %167 : vector<1x32xf32>
    %171 = arith.mulf %162, %115 : vector<1x32xf32>
    %172 = arith.addf %170, %171 : vector<1x32xf32>
    %cst_60 = arith.constant dense<0.000000e+00> : vector<1x64xf32>
    %173 = tpu.matmul %172, %6, %cst_60 {dimension_numbers = #tpu.dot_dimension_numbers<[1], [0], [0], [1], [0, 0, 1, 1], [], []>} : vector<1x32xf32>, vector<32x64xf32>, vector<1x64xf32> -> vector<1x64xf32>
    %174 = arith.addf %173, %7 : vector<1x64xf32>
    %cst_61 = arith.constant dense<0xFF800000> : vector<1xf32>
    %175 = vector.multi_reduction <maximumf>, %174, %cst_61 [1] : vector<1x64xf32> to vector<1xf32>
    %176 = vector.shape_cast %175 : vector<1xf32> to vector<1x1xf32>
    %177 = vector.broadcast %176 : vector<1x1xf32> to vector<1x64xf32>
    %178 = arith.subf %174, %177 : vector<1x64xf32>
    %179 = math.exp %178 : vector<1x64xf32>
    %cst_62 = arith.constant dense<0.000000e+00> : vector<1xf32>
    %180 = vector.multi_reduction <add>, %179, %cst_62 [1] : vector<1x64xf32> to vector<1xf32>
    %181 = vector.shape_cast %180 : vector<1xf32> to vector<1x1xf32>
    %182 = math.log %181 : vector<1x1xf32>
    %183 = vector.broadcast %182 : vector<1x1xf32> to vector<1x64xf32>
    %184 = arith.subf %178, %183 : vector<1x64xf32>
    %185 = tpu.concatenate %184, %172, %144, %8 in 1 : vector<1x64xf32>, vector<1x32xf32>, vector<1x16xf32>, vector<1x16xf32> -> vector<1x128xf32>
    %c2 = arith.constant 2 : index
    %c0_63 = arith.constant 0 : index
    %186 = vector.load %arg12[%c2, %c0_63] : memref<8x128xf32, #tpu.memory_space<vmem>>, vector<1x128xf32>
    tpu.vector_store %arg12[%c2, %c0_63], %185 {strides = array<i32>} : memref<8x128xf32, #tpu.memory_space<vmem>>, vector<1x128xf32>,
    %187 = vector.extract_strided_slice %14 {offsets = [3, 0], sizes = [1, 48], strides = [1, 1]} : vector<8x48xf32> to vector<1x48xf32>
    %cst_64 = arith.constant dense<0.000000e+00> : vector<1x128xf32>
    %188 = tpu.matmul %172, %1, %cst_64 {dimension_numbers = #tpu.dot_dimension_numbers<[1], [0], [0], [1], [0, 0, 1, 1], [], []>} : vector<1x32xf32>, vector<32x128xf32>, vector<1x128xf32> -> vector<1x128xf32>
    %189 = arith.addf %188, %2 : vector<1x128xf32>
    %190 = vector.extract_strided_slice %187 {offsets = [0, 0], sizes = [1, 16], strides = [1, 1]} : vector<1x48xf32> to vector<1x16xf32>
    %191 = vector.extract_strided_slice %189 {offsets = [0, 96], sizes = [1, 16], strides = [1, 1]} : vector<1x128xf32> to vector<1x16xf32>
    %192 = arith.addf %190, %191 : vector<1x16xf32>
    %cst_65 = arith.constant dense<0xFF800000> : vector<1xf32>
    %193 = vector.multi_reduction <maximumf>, %192, %cst_65 [1] : vector<1x16xf32> to vector<1xf32>
    %194 = vector.shape_cast %193 : vector<1xf32> to vector<1x1xf32>
    %195 = vector.broadcast %194 : vector<1x1xf32> to vector<1x16xf32>
    %196 = arith.subf %192, %195 : vector<1x16xf32>
    %197 = math.exp %196 : vector<1x16xf32>
    %cst_66 = arith.constant dense<0.000000e+00> : vector<1xf32>
    %198 = vector.multi_reduction <add>, %197, %cst_66 [1] : vector<1x16xf32> to vector<1xf32>
    %199 = vector.shape_cast %198 : vector<1xf32> to vector<1x1xf32>
    %200 = vector.broadcast %199 : vector<1x1xf32> to vector<1x16xf32>
    %201 = arith.divf %197, %200 : vector<1x16xf32>
    %cst_67 = arith.constant dense<0.000000e+00> : vector<1x32xf32>
    %202 = tpu.matmul %201, %0, %cst_67 {dimension_numbers = #tpu.dot_dimension_numbers<[1], [0], [0], [1], [0, 0, 1, 1], [], []>} : vector<1x16xf32>, vector<16x32xf32>, vector<1x32xf32> -> vector<1x32xf32>
    %203 = vector.extract_strided_slice %187 {offsets = [0, 16], sizes = [1, 32], strides = [1, 1]} : vector<1x48xf32> to vector<1x32xf32>
    %cst_68 = arith.constant dense<0.000000e+00> : vector<1x32xf32>
    %204 = tpu.matmul %202, %5, %cst_68 {dimension_numbers = #tpu.dot_dimension_numbers<[1], [0], [0], [1], [0, 0, 1, 1], [], []>} : vector<1x32xf32>, vector<32x32xf32>, vector<1x32xf32> -> vector<1x32xf32>
    %205 = arith.addf %203, %204 : vector<1x32xf32>
    %cst_69 = arith.constant 0.000000e+00 : f32
    %206 = vector.broadcast %cst_69 : f32 to vector<1x32xf32>
    %207 = arith.maximumf %205, %206 : vector<1x32xf32>
    %cst_70 = arith.constant dense<0.000000e+00> : vector<1x128xf32>
    %208 = tpu.matmul %207, %3, %cst_70 {dimension_numbers = #tpu.dot_dimension_numbers<[1], [0], [0], [1], [0, 0, 1, 1], [], []>} : vector<1x32xf32>, vector<32x128xf32>, vector<1x128xf32> -> vector<1x128xf32>
    %209 = arith.addf %208, %4 : vector<1x128xf32>
    %210 = vector.extract_strided_slice %209 {offsets = [0, 0], sizes = [1, 64], strides = [1, 1]} : vector<1x128xf32> to vector<1x64xf32>
    %211 = vector.extract_strided_slice %189 {offsets = [0, 0], sizes = [1, 64], strides = [1, 1]} : vector<1x128xf32> to vector<1x64xf32>
    %212 = arith.addf %210, %211 : vector<1x64xf32>
    %213 = arith.negf %212 : vector<1x64xf32>
    %214 = math.exp %213 : vector<1x64xf32>
    %cst_71 = arith.constant 1.000000e+00 : f32
    %215 = vector.broadcast %cst_71 : f32 to vector<1x64xf32>
    %216 = arith.addf %215, %214 : vector<1x64xf32>
    %217 = arith.divf %215, %216 : vector<1x64xf32>
    %218 = vector.extract_strided_slice %217 {offsets = [0, 0], sizes = [1, 32], strides = [1, 1]} : vector<1x64xf32> to vector<1x32xf32>
    %219 = vector.extract_strided_slice %217 {offsets = [0, 32], sizes = [1, 32], strides = [1, 1]} : vector<1x64xf32> to vector<1x32xf32>
    %220 = vector.extract_strided_slice %209 {offsets = [0, 64], sizes = [1, 32], strides = [1, 1]} : vector<1x128xf32> to vector<1x32xf32>
    %221 = vector.extract_strided_slice %189 {offsets = [0, 64], sizes = [1, 32], strides = [1, 1]} : vector<1x128xf32> to vector<1x32xf32>
    %222 = arith.mulf %218, %221 : vector<1x32xf32>
    %223 = arith.addf %220, %222 : vector<1x32xf32>
    %224 = math.tanh %223 : vector<1x32xf32>
    %cst_72 = arith.constant 1.000000e+00 : f32
    %225 = vector.broadcast %cst_72 : f32 to vector<1x32xf32>
    %226 = arith.subf %225, %219 : vector<1x32xf32>
    %227 = arith.mulf %226, %224 : vector<1x32xf32>
    %228 = arith.mulf %219, %172 : vector<1x32xf32>
    %229 = arith.addf %227, %228 : vector<1x32xf32>
    %cst_73 = arith.constant dense<0.000000e+00> : vector<1x64xf32>
    %230 = tpu.matmul %229, %6, %cst_73 {dimension_numbers = #tpu.dot_dimension_numbers<[1], [0], [0], [1], [0, 0, 1, 1], [], []>} : vector<1x32xf32>, vector<32x64xf32>, vector<1x64xf32> -> vector<1x64xf32>
    %231 = arith.addf %230, %7 : vector<1x64xf32>
    %cst_74 = arith.constant dense<0xFF800000> : vector<1xf32>
    %232 = vector.multi_reduction <maximumf>, %231, %cst_74 [1] : vector<1x64xf32> to vector<1xf32>
    %233 = vector.shape_cast %232 : vector<1xf32> to vector<1x1xf32>
    %234 = vector.broadcast %233 : vector<1x1xf32> to vector<1x64xf32>
    %235 = arith.subf %231, %234 : vector<1x64xf32>
    %236 = math.exp %235 : vector<1x64xf32>
    %cst_75 = arith.constant dense<0.000000e+00> : vector<1xf32>
    %237 = vector.multi_reduction <add>, %236, %cst_75 [1] : vector<1x64xf32> to vector<1xf32>
    %238 = vector.shape_cast %237 : vector<1xf32> to vector<1x1xf32>
    %239 = math.log %238 : vector<1x1xf32>
    %240 = vector.broadcast %239 : vector<1x1xf32> to vector<1x64xf32>
    %241 = arith.subf %235, %240 : vector<1x64xf32>
    %242 = tpu.concatenate %241, %229, %201, %8 in 1 : vector<1x64xf32>, vector<1x32xf32>, vector<1x16xf32>, vector<1x16xf32> -> vector<1x128xf32>
    %c3 = arith.constant 3 : index
    %c0_76 = arith.constant 0 : index
    %243 = vector.load %arg12[%c3, %c0_76] : memref<8x128xf32, #tpu.memory_space<vmem>>, vector<1x128xf32>
    tpu.vector_store %arg12[%c3, %c0_76], %242 {strides = array<i32>} : memref<8x128xf32, #tpu.memory_space<vmem>>, vector<1x128xf32>,
    %244 = vector.extract_strided_slice %14 {offsets = [4, 0], sizes = [1, 48], strides = [1, 1]} : vector<8x48xf32> to vector<1x48xf32>
    %cst_77 = arith.constant dense<0.000000e+00> : vector<1x128xf32>
    %245 = tpu.matmul %229, %1, %cst_77 {dimension_numbers = #tpu.dot_dimension_numbers<[1], [0], [0], [1], [0, 0, 1, 1], [], []>} : vector<1x32xf32>, vector<32x128xf32>, vector<1x128xf32> -> vector<1x128xf32>
    %246 = arith.addf %245, %2 : vector<1x128xf32>
    %247 = vector.extract_strided_slice %244 {offsets = [0, 0], sizes = [1, 16], strides = [1, 1]} : vector<1x48xf32> to vector<1x16xf32>
    %248 = vector.extract_strided_slice %246 {offsets = [0, 96], sizes = [1, 16], strides = [1, 1]} : vector<1x128xf32> to vector<1x16xf32>
    %249 = arith.addf %247, %248 : vector<1x16xf32>
    %cst_78 = arith.constant dense<0xFF800000> : vector<1xf32>
    %250 = vector.multi_reduction <maximumf>, %249, %cst_78 [1] : vector<1x16xf32> to vector<1xf32>
    %251 = vector.shape_cast %250 : vector<1xf32> to vector<1x1xf32>
    %252 = vector.broadcast %251 : vector<1x1xf32> to vector<1x16xf32>
    %253 = arith.subf %249, %252 : vector<1x16xf32>
    %254 = math.exp %253 : vector<1x16xf32>
    %cst_79 = arith.constant dense<0.000000e+00> : vector<1xf32>
    %255 = vector.multi_reduction <add>, %254, %cst_79 [1] : vector<1x16xf32> to vector<1xf32>
    %256 = vector.shape_cast %255 : vector<1xf32> to vector<1x1xf32>
    %257 = vector.broadcast %256 : vector<1x1xf32> to vector<1x16xf32>
    %258 = arith.divf %254, %257 : vector<1x16xf32>
    %cst_80 = arith.constant dense<0.000000e+00> : vector<1x32xf32>
    %259 = tpu.matmul %258, %0, %cst_80 {dimension_numbers = #tpu.dot_dimension_numbers<[1], [0], [0], [1], [0, 0, 1, 1], [], []>} : vector<1x16xf32>, vector<16x32xf32>, vector<1x32xf32> -> vector<1x32xf32>
    %260 = vector.extract_strided_slice %244 {offsets = [0, 16], sizes = [1, 32], strides = [1, 1]} : vector<1x48xf32> to vector<1x32xf32>
    %cst_81 = arith.constant dense<0.000000e+00> : vector<1x32xf32>
    %261 = tpu.matmul %259, %5, %cst_81 {dimension_numbers = #tpu.dot_dimension_numbers<[1], [0], [0], [1], [0, 0, 1, 1], [], []>} : vector<1x32xf32>, vector<32x32xf32>, vector<1x32xf32> -> vector<1x32xf32>
    %262 = arith.addf %260, %261 : vector<1x32xf32>
    %cst_82 = arith.constant 0.000000e+00 : f32
    %263 = vector.broadcast %cst_82 : f32 to vector<1x32xf32>
    %264 = arith.maximumf %262, %263 : vector<1x32xf32>
    %cst_83 = arith.constant dense<0.000000e+00> : vector<1x128xf32>
    %265 = tpu.matmul %264, %3, %cst_83 {dimension_numbers = #tpu.dot_dimension_numbers<[1], [0], [0], [1], [0, 0, 1, 1], [], []>} : vector<1x32xf32>, vector<32x128xf32>, vector<1x128xf32> -> vector<1x128xf32>
    %266 = arith.addf %265, %4 : vector<1x128xf32>
    %267 = vector.extract_strided_slice %266 {offsets = [0, 0], sizes = [1, 64], strides = [1, 1]} : vector<1x128xf32> to vector<1x64xf32>
    %268 = vector.extract_strided_slice %246 {offsets = [0, 0], sizes = [1, 64], strides = [1, 1]} : vector<1x128xf32> to vector<1x64xf32>
    %269 = arith.addf %267, %268 : vector<1x64xf32>
    %270 = arith.negf %269 : vector<1x64xf32>
    %271 = math.exp %270 : vector<1x64xf32>
    %cst_84 = arith.constant 1.000000e+00 : f32
    %272 = vector.broadcast %cst_84 : f32 to vector<1x64xf32>
    %273 = arith.addf %272, %271 : vector<1x64xf32>
    %274 = arith.divf %272, %273 : vector<1x64xf32>
    %275 = vector.extract_strided_slice %274 {offsets = [0, 0], sizes = [1, 32], strides = [1, 1]} : vector<1x64xf32> to vector<1x32xf32>
    %276 = vector.extract_strided_slice %274 {offsets = [0, 32], sizes = [1, 32], strides = [1, 1]} : vector<1x64xf32> to vector<1x32xf32>
    %277 = vector.extract_strided_slice %266 {offsets = [0, 64], sizes = [1, 32], strides = [1, 1]} : vector<1x128xf32> to vector<1x32xf32>
    %278 = vector.extract_strided_slice %246 {offsets = [0, 64], sizes = [1, 32], strides = [1, 1]} : vector<1x128xf32> to vector<1x32xf32>
    %279 = arith.mulf %275, %278 : vector<1x32xf32>
    %280 = arith.addf %277, %279 : vector<1x32xf32>
    %281 = math.tanh %280 : vector<1x32xf32>
    %cst_85 = arith.constant 1.000000e+00 : f32
    %282 = vector.broadcast %cst_85 : f32 to vector<1x32xf32>
    %283 = arith.subf %282, %276 : vector<1x32xf32>
    %284 = arith.mulf %283, %281 : vector<1x32xf32>
    %285 = arith.mulf %276, %229 : vector<1x32xf32>
    %286 = arith.addf %284, %285 : vector<1x32xf32>
    %cst_86 = arith.constant dense<0.000000e+00> : vector<1x64xf32>
    %287 = tpu.matmul %286, %6, %cst_86 {dimension_numbers = #tpu.dot_dimension_numbers<[1], [0], [0], [1], [0, 0, 1, 1], [], []>} : vector<1x32xf32>, vector<32x64xf32>, vector<1x64xf32> -> vector<1x64xf32>
    %288 = arith.addf %287, %7 : vector<1x64xf32>
    %cst_87 = arith.constant dense<0xFF800000> : vector<1xf32>
    %289 = vector.multi_reduction <maximumf>, %288, %cst_87 [1] : vector<1x64xf32> to vector<1xf32>
    %290 = vector.shape_cast %289 : vector<1xf32> to vector<1x1xf32>
    %291 = vector.broadcast %290 : vector<1x1xf32> to vector<1x64xf32>
    %292 = arith.subf %288, %291 : vector<1x64xf32>
    %293 = math.exp %292 : vector<1x64xf32>
    %cst_88 = arith.constant dense<0.000000e+00> : vector<1xf32>
    %294 = vector.multi_reduction <add>, %293, %cst_88 [1] : vector<1x64xf32> to vector<1xf32>
    %295 = vector.shape_cast %294 : vector<1xf32> to vector<1x1xf32>
    %296 = math.log %295 : vector<1x1xf32>
    %297 = vector.broadcast %296 : vector<1x1xf32> to vector<1x64xf32>
    %298 = arith.subf %292, %297 : vector<1x64xf32>
    %299 = tpu.concatenate %298, %286, %258, %8 in 1 : vector<1x64xf32>, vector<1x32xf32>, vector<1x16xf32>, vector<1x16xf32> -> vector<1x128xf32>
    %c4 = arith.constant 4 : index
    %c0_89 = arith.constant 0 : index
    %300 = vector.load %arg12[%c4, %c0_89] : memref<8x128xf32, #tpu.memory_space<vmem>>, vector<1x128xf32>
    tpu.vector_store %arg12[%c4, %c0_89], %299 {strides = array<i32>} : memref<8x128xf32, #tpu.memory_space<vmem>>, vector<1x128xf32>,
    %301 = vector.extract_strided_slice %14 {offsets = [5, 0], sizes = [1, 48], strides = [1, 1]} : vector<8x48xf32> to vector<1x48xf32>
    %cst_90 = arith.constant dense<0.000000e+00> : vector<1x128xf32>
    %302 = tpu.matmul %286, %1, %cst_90 {dimension_numbers = #tpu.dot_dimension_numbers<[1], [0], [0], [1], [0, 0, 1, 1], [], []>} : vector<1x32xf32>, vector<32x128xf32>, vector<1x128xf32> -> vector<1x128xf32>
    %303 = arith.addf %302, %2 : vector<1x128xf32>
    %304 = vector.extract_strided_slice %301 {offsets = [0, 0], sizes = [1, 16], strides = [1, 1]} : vector<1x48xf32> to vector<1x16xf32>
    %305 = vector.extract_strided_slice %303 {offsets = [0, 96], sizes = [1, 16], strides = [1, 1]} : vector<1x128xf32> to vector<1x16xf32>
    %306 = arith.addf %304, %305 : vector<1x16xf32>
    %cst_91 = arith.constant dense<0xFF800000> : vector<1xf32>
    %307 = vector.multi_reduction <maximumf>, %306, %cst_91 [1] : vector<1x16xf32> to vector<1xf32>
    %308 = vector.shape_cast %307 : vector<1xf32> to vector<1x1xf32>
    %309 = vector.broadcast %308 : vector<1x1xf32> to vector<1x16xf32>
    %310 = arith.subf %306, %309 : vector<1x16xf32>
    %311 = math.exp %310 : vector<1x16xf32>
    %cst_92 = arith.constant dense<0.000000e+00> : vector<1xf32>
    %312 = vector.multi_reduction <add>, %311, %cst_92 [1] : vector<1x16xf32> to vector<1xf32>
    %313 = vector.shape_cast %312 : vector<1xf32> to vector<1x1xf32>
    %314 = vector.broadcast %313 : vector<1x1xf32> to vector<1x16xf32>
    %315 = arith.divf %311, %314 : vector<1x16xf32>
    %cst_93 = arith.constant dense<0.000000e+00> : vector<1x32xf32>
    %316 = tpu.matmul %315, %0, %cst_93 {dimension_numbers = #tpu.dot_dimension_numbers<[1], [0], [0], [1], [0, 0, 1, 1], [], []>} : vector<1x16xf32>, vector<16x32xf32>, vector<1x32xf32> -> vector<1x32xf32>
    %317 = vector.extract_strided_slice %301 {offsets = [0, 16], sizes = [1, 32], strides = [1, 1]} : vector<1x48xf32> to vector<1x32xf32>
    %cst_94 = arith.constant dense<0.000000e+00> : vector<1x32xf32>
    %318 = tpu.matmul %316, %5, %cst_94 {dimension_numbers = #tpu.dot_dimension_numbers<[1], [0], [0], [1], [0, 0, 1, 1], [], []>} : vector<1x32xf32>, vector<32x32xf32>, vector<1x32xf32> -> vector<1x32xf32>
    %319 = arith.addf %317, %318 : vector<1x32xf32>
    %cst_95 = arith.constant 0.000000e+00 : f32
    %320 = vector.broadcast %cst_95 : f32 to vector<1x32xf32>
    %321 = arith.maximumf %319, %320 : vector<1x32xf32>
    %cst_96 = arith.constant dense<0.000000e+00> : vector<1x128xf32>
    %322 = tpu.matmul %321, %3, %cst_96 {dimension_numbers = #tpu.dot_dimension_numbers<[1], [0], [0], [1], [0, 0, 1, 1], [], []>} : vector<1x32xf32>, vector<32x128xf32>, vector<1x128xf32> -> vector<1x128xf32>
    %323 = arith.addf %322, %4 : vector<1x128xf32>
    %324 = vector.extract_strided_slice %323 {offsets = [0, 0], sizes = [1, 64], strides = [1, 1]} : vector<1x128xf32> to vector<1x64xf32>
    %325 = vector.extract_strided_slice %303 {offsets = [0, 0], sizes = [1, 64], strides = [1, 1]} : vector<1x128xf32> to vector<1x64xf32>
    %326 = arith.addf %324, %325 : vector<1x64xf32>
    %327 = arith.negf %326 : vector<1x64xf32>
    %328 = math.exp %327 : vector<1x64xf32>
    %cst_97 = arith.constant 1.000000e+00 : f32
    %329 = vector.broadcast %cst_97 : f32 to vector<1x64xf32>
    %330 = arith.addf %329, %328 : vector<1x64xf32>
    %331 = arith.divf %329, %330 : vector<1x64xf32>
    %332 = vector.extract_strided_slice %331 {offsets = [0, 0], sizes = [1, 32], strides = [1, 1]} : vector<1x64xf32> to vector<1x32xf32>
    %333 = vector.extract_strided_slice %331 {offsets = [0, 32], sizes = [1, 32], strides = [1, 1]} : vector<1x64xf32> to vector<1x32xf32>
    %334 = vector.extract_strided_slice %323 {offsets = [0, 64], sizes = [1, 32], strides = [1, 1]} : vector<1x128xf32> to vector<1x32xf32>
    %335 = vector.extract_strided_slice %303 {offsets = [0, 64], sizes = [1, 32], strides = [1, 1]} : vector<1x128xf32> to vector<1x32xf32>
    %336 = arith.mulf %332, %335 : vector<1x32xf32>
    %337 = arith.addf %334, %336 : vector<1x32xf32>
    %338 = math.tanh %337 : vector<1x32xf32>
    %cst_98 = arith.constant 1.000000e+00 : f32
    %339 = vector.broadcast %cst_98 : f32 to vector<1x32xf32>
    %340 = arith.subf %339, %333 : vector<1x32xf32>
    %341 = arith.mulf %340, %338 : vector<1x32xf32>
    %342 = arith.mulf %333, %286 : vector<1x32xf32>
    %343 = arith.addf %341, %342 : vector<1x32xf32>
    %cst_99 = arith.constant dense<0.000000e+00> : vector<1x64xf32>
    %344 = tpu.matmul %343, %6, %cst_99 {dimension_numbers = #tpu.dot_dimension_numbers<[1], [0], [0], [1], [0, 0, 1, 1], [], []>} : vector<1x32xf32>, vector<32x64xf32>, vector<1x64xf32> -> vector<1x64xf32>
    %345 = arith.addf %344, %7 : vector<1x64xf32>
    %cst_100 = arith.constant dense<0xFF800000> : vector<1xf32>
    %346 = vector.multi_reduction <maximumf>, %345, %cst_100 [1] : vector<1x64xf32> to vector<1xf32>
    %347 = vector.shape_cast %346 : vector<1xf32> to vector<1x1xf32>
    %348 = vector.broadcast %347 : vector<1x1xf32> to vector<1x64xf32>
    %349 = arith.subf %345, %348 : vector<1x64xf32>
    %350 = math.exp %349 : vector<1x64xf32>
    %cst_101 = arith.constant dense<0.000000e+00> : vector<1xf32>
    %351 = vector.multi_reduction <add>, %350, %cst_101 [1] : vector<1x64xf32> to vector<1xf32>
    %352 = vector.shape_cast %351 : vector<1xf32> to vector<1x1xf32>
    %353 = math.log %352 : vector<1x1xf32>
    %354 = vector.broadcast %353 : vector<1x1xf32> to vector<1x64xf32>
    %355 = arith.subf %349, %354 : vector<1x64xf32>
    %356 = tpu.concatenate %355, %343, %315, %8 in 1 : vector<1x64xf32>, vector<1x32xf32>, vector<1x16xf32>, vector<1x16xf32> -> vector<1x128xf32>
    %c5 = arith.constant 5 : index
    %c0_102 = arith.constant 0 : index
    %357 = vector.load %arg12[%c5, %c0_102] : memref<8x128xf32, #tpu.memory_space<vmem>>, vector<1x128xf32>
    tpu.vector_store %arg12[%c5, %c0_102], %356 {strides = array<i32>} : memref<8x128xf32, #tpu.memory_space<vmem>>, vector<1x128xf32>,
    %358 = vector.extract_strided_slice %14 {offsets = [6, 0], sizes = [1, 48], strides = [1, 1]} : vector<8x48xf32> to vector<1x48xf32>
    %cst_103 = arith.constant dense<0.000000e+00> : vector<1x128xf32>
    %359 = tpu.matmul %343, %1, %cst_103 {dimension_numbers = #tpu.dot_dimension_numbers<[1], [0], [0], [1], [0, 0, 1, 1], [], []>} : vector<1x32xf32>, vector<32x128xf32>, vector<1x128xf32> -> vector<1x128xf32>
    %360 = arith.addf %359, %2 : vector<1x128xf32>
    %361 = vector.extract_strided_slice %358 {offsets = [0, 0], sizes = [1, 16], strides = [1, 1]} : vector<1x48xf32> to vector<1x16xf32>
    %362 = vector.extract_strided_slice %360 {offsets = [0, 96], sizes = [1, 16], strides = [1, 1]} : vector<1x128xf32> to vector<1x16xf32>
    %363 = arith.addf %361, %362 : vector<1x16xf32>
    %cst_104 = arith.constant dense<0xFF800000> : vector<1xf32>
    %364 = vector.multi_reduction <maximumf>, %363, %cst_104 [1] : vector<1x16xf32> to vector<1xf32>
    %365 = vector.shape_cast %364 : vector<1xf32> to vector<1x1xf32>
    %366 = vector.broadcast %365 : vector<1x1xf32> to vector<1x16xf32>
    %367 = arith.subf %363, %366 : vector<1x16xf32>
    %368 = math.exp %367 : vector<1x16xf32>
    %cst_105 = arith.constant dense<0.000000e+00> : vector<1xf32>
    %369 = vector.multi_reduction <add>, %368, %cst_105 [1] : vector<1x16xf32> to vector<1xf32>
    %370 = vector.shape_cast %369 : vector<1xf32> to vector<1x1xf32>
    %371 = vector.broadcast %370 : vector<1x1xf32> to vector<1x16xf32>
    %372 = arith.divf %368, %371 : vector<1x16xf32>
    %cst_106 = arith.constant dense<0.000000e+00> : vector<1x32xf32>
    %373 = tpu.matmul %372, %0, %cst_106 {dimension_numbers = #tpu.dot_dimension_numbers<[1], [0], [0], [1], [0, 0, 1, 1], [], []>} : vector<1x16xf32>, vector<16x32xf32>, vector<1x32xf32> -> vector<1x32xf32>
    %374 = vector.extract_strided_slice %358 {offsets = [0, 16], sizes = [1, 32], strides = [1, 1]} : vector<1x48xf32> to vector<1x32xf32>
    %cst_107 = arith.constant dense<0.000000e+00> : vector<1x32xf32>
    %375 = tpu.matmul %373, %5, %cst_107 {dimension_numbers = #tpu.dot_dimension_numbers<[1], [0], [0], [1], [0, 0, 1, 1], [], []>} : vector<1x32xf32>, vector<32x32xf32>, vector<1x32xf32> -> vector<1x32xf32>
    %376 = arith.addf %374, %375 : vector<1x32xf32>
    %cst_108 = arith.constant 0.000000e+00 : f32
    %377 = vector.broadcast %cst_108 : f32 to vector<1x32xf32>
    %378 = arith.maximumf %376, %377 : vector<1x32xf32>
    %cst_109 = arith.constant dense<0.000000e+00> : vector<1x128xf32>
    %379 = tpu.matmul %378, %3, %cst_109 {dimension_numbers = #tpu.dot_dimension_numbers<[1], [0], [0], [1], [0, 0, 1, 1], [], []>} : vector<1x32xf32>, vector<32x128xf32>, vector<1x128xf32> -> vector<1x128xf32>
    %380 = arith.addf %379, %4 : vector<1x128xf32>
    %381 = vector.extract_strided_slice %380 {offsets = [0, 0], sizes = [1, 64], strides = [1, 1]} : vector<1x128xf32> to vector<1x64xf32>
    %382 = vector.extract_strided_slice %360 {offsets = [0, 0], sizes = [1, 64], strides = [1, 1]} : vector<1x128xf32> to vector<1x64xf32>
    %383 = arith.addf %381, %382 : vector<1x64xf32>
    %384 = arith.negf %383 : vector<1x64xf32>
    %385 = math.exp %384 : vector<1x64xf32>
    %cst_110 = arith.constant 1.000000e+00 : f32
    %386 = vector.broadcast %cst_110 : f32 to vector<1x64xf32>
    %387 = arith.addf %386, %385 : vector<1x64xf32>
    %388 = arith.divf %386, %387 : vector<1x64xf32>
    %389 = vector.extract_strided_slice %388 {offsets = [0, 0], sizes = [1, 32], strides = [1, 1]} : vector<1x64xf32> to vector<1x32xf32>
    %390 = vector.extract_strided_slice %388 {offsets = [0, 32], sizes = [1, 32], strides = [1, 1]} : vector<1x64xf32> to vector<1x32xf32>
    %391 = vector.extract_strided_slice %380 {offsets = [0, 64], sizes = [1, 32], strides = [1, 1]} : vector<1x128xf32> to vector<1x32xf32>
    %392 = vector.extract_strided_slice %360 {offsets = [0, 64], sizes = [1, 32], strides = [1, 1]} : vector<1x128xf32> to vector<1x32xf32>
    %393 = arith.mulf %389, %392 : vector<1x32xf32>
    %394 = arith.addf %391, %393 : vector<1x32xf32>
    %395 = math.tanh %394 : vector<1x32xf32>
    %cst_111 = arith.constant 1.000000e+00 : f32
    %396 = vector.broadcast %cst_111 : f32 to vector<1x32xf32>
    %397 = arith.subf %396, %390 : vector<1x32xf32>
    %398 = arith.mulf %397, %395 : vector<1x32xf32>
    %399 = arith.mulf %390, %343 : vector<1x32xf32>
    %400 = arith.addf %398, %399 : vector<1x32xf32>
    %cst_112 = arith.constant dense<0.000000e+00> : vector<1x64xf32>
    %401 = tpu.matmul %400, %6, %cst_112 {dimension_numbers = #tpu.dot_dimension_numbers<[1], [0], [0], [1], [0, 0, 1, 1], [], []>} : vector<1x32xf32>, vector<32x64xf32>, vector<1x64xf32> -> vector<1x64xf32>
    %402 = arith.addf %401, %7 : vector<1x64xf32>
    %cst_113 = arith.constant dense<0xFF800000> : vector<1xf32>
    %403 = vector.multi_reduction <maximumf>, %402, %cst_113 [1] : vector<1x64xf32> to vector<1xf32>
    %404 = vector.shape_cast %403 : vector<1xf32> to vector<1x1xf32>
    %405 = vector.broadcast %404 : vector<1x1xf32> to vector<1x64xf32>
    %406 = arith.subf %402, %405 : vector<1x64xf32>
    %407 = math.exp %406 : vector<1x64xf32>
    %cst_114 = arith.constant dense<0.000000e+00> : vector<1xf32>
    %408 = vector.multi_reduction <add>, %407, %cst_114 [1] : vector<1x64xf32> to vector<1xf32>
    %409 = vector.shape_cast %408 : vector<1xf32> to vector<1x1xf32>
    %410 = math.log %409 : vector<1x1xf32>
    %411 = vector.broadcast %410 : vector<1x1xf32> to vector<1x64xf32>
    %412 = arith.subf %406, %411 : vector<1x64xf32>
    %413 = tpu.concatenate %412, %400, %372, %8 in 1 : vector<1x64xf32>, vector<1x32xf32>, vector<1x16xf32>, vector<1x16xf32> -> vector<1x128xf32>
    %c6 = arith.constant 6 : index
    %c0_115 = arith.constant 0 : index
    %414 = vector.load %arg12[%c6, %c0_115] : memref<8x128xf32, #tpu.memory_space<vmem>>, vector<1x128xf32>
    tpu.vector_store %arg12[%c6, %c0_115], %413 {strides = array<i32>} : memref<8x128xf32, #tpu.memory_space<vmem>>, vector<1x128xf32>,
    %415 = vector.extract_strided_slice %14 {offsets = [7, 0], sizes = [1, 48], strides = [1, 1]} : vector<8x48xf32> to vector<1x48xf32>
    %cst_116 = arith.constant dense<0.000000e+00> : vector<1x128xf32>
    %416 = tpu.matmul %400, %1, %cst_116 {dimension_numbers = #tpu.dot_dimension_numbers<[1], [0], [0], [1], [0, 0, 1, 1], [], []>} : vector<1x32xf32>, vector<32x128xf32>, vector<1x128xf32> -> vector<1x128xf32>
    %417 = arith.addf %416, %2 : vector<1x128xf32>
    %418 = vector.extract_strided_slice %415 {offsets = [0, 0], sizes = [1, 16], strides = [1, 1]} : vector<1x48xf32> to vector<1x16xf32>
    %419 = vector.extract_strided_slice %417 {offsets = [0, 96], sizes = [1, 16], strides = [1, 1]} : vector<1x128xf32> to vector<1x16xf32>
    %420 = arith.addf %418, %419 : vector<1x16xf32>
    %cst_117 = arith.constant dense<0xFF800000> : vector<1xf32>
    %421 = vector.multi_reduction <maximumf>, %420, %cst_117 [1] : vector<1x16xf32> to vector<1xf32>
    %422 = vector.shape_cast %421 : vector<1xf32> to vector<1x1xf32>
    %423 = vector.broadcast %422 : vector<1x1xf32> to vector<1x16xf32>
    %424 = arith.subf %420, %423 : vector<1x16xf32>
    %425 = math.exp %424 : vector<1x16xf32>
    %cst_118 = arith.constant dense<0.000000e+00> : vector<1xf32>
    %426 = vector.multi_reduction <add>, %425, %cst_118 [1] : vector<1x16xf32> to vector<1xf32>
    %427 = vector.shape_cast %426 : vector<1xf32> to vector<1x1xf32>
    %428 = vector.broadcast %427 : vector<1x1xf32> to vector<1x16xf32>
    %429 = arith.divf %425, %428 : vector<1x16xf32>
    %cst_119 = arith.constant dense<0.000000e+00> : vector<1x32xf32>
    %430 = tpu.matmul %429, %0, %cst_119 {dimension_numbers = #tpu.dot_dimension_numbers<[1], [0], [0], [1], [0, 0, 1, 1], [], []>} : vector<1x16xf32>, vector<16x32xf32>, vector<1x32xf32> -> vector<1x32xf32>
    %431 = vector.extract_strided_slice %415 {offsets = [0, 16], sizes = [1, 32], strides = [1, 1]} : vector<1x48xf32> to vector<1x32xf32>
    %cst_120 = arith.constant dense<0.000000e+00> : vector<1x32xf32>
    %432 = tpu.matmul %430, %5, %cst_120 {dimension_numbers = #tpu.dot_dimension_numbers<[1], [0], [0], [1], [0, 0, 1, 1], [], []>} : vector<1x32xf32>, vector<32x32xf32>, vector<1x32xf32> -> vector<1x32xf32>
    %433 = arith.addf %431, %432 : vector<1x32xf32>
    %cst_121 = arith.constant 0.000000e+00 : f32
    %434 = vector.broadcast %cst_121 : f32 to vector<1x32xf32>
    %435 = arith.maximumf %433, %434 : vector<1x32xf32>
    %cst_122 = arith.constant dense<0.000000e+00> : vector<1x128xf32>
    %436 = tpu.matmul %435, %3, %cst_122 {dimension_numbers = #tpu.dot_dimension_numbers<[1], [0], [0], [1], [0, 0, 1, 1], [], []>} : vector<1x32xf32>, vector<32x128xf32>, vector<1x128xf32> -> vector<1x128xf32>
    %437 = arith.addf %436, %4 : vector<1x128xf32>
    %438 = vector.extract_strided_slice %437 {offsets = [0, 0], sizes = [1, 64], strides = [1, 1]} : vector<1x128xf32> to vector<1x64xf32>
    %439 = vector.extract_strided_slice %417 {offsets = [0, 0], sizes = [1, 64], strides = [1, 1]} : vector<1x128xf32> to vector<1x64xf32>
    %440 = arith.addf %438, %439 : vector<1x64xf32>
    %441 = arith.negf %440 : vector<1x64xf32>
    %442 = math.exp %441 : vector<1x64xf32>
    %cst_123 = arith.constant 1.000000e+00 : f32
    %443 = vector.broadcast %cst_123 : f32 to vector<1x64xf32>
    %444 = arith.addf %443, %442 : vector<1x64xf32>
    %445 = arith.divf %443, %444 : vector<1x64xf32>
    %446 = vector.extract_strided_slice %445 {offsets = [0, 0], sizes = [1, 32], strides = [1, 1]} : vector<1x64xf32> to vector<1x32xf32>
    %447 = vector.extract_strided_slice %445 {offsets = [0, 32], sizes = [1, 32], strides = [1, 1]} : vector<1x64xf32> to vector<1x32xf32>
    %448 = vector.extract_strided_slice %437 {offsets = [0, 64], sizes = [1, 32], strides = [1, 1]} : vector<1x128xf32> to vector<1x32xf32>
    %449 = vector.extract_strided_slice %417 {offsets = [0, 64], sizes = [1, 32], strides = [1, 1]} : vector<1x128xf32> to vector<1x32xf32>
    %450 = arith.mulf %446, %449 : vector<1x32xf32>
    %451 = arith.addf %448, %450 : vector<1x32xf32>
    %452 = math.tanh %451 : vector<1x32xf32>
    %cst_124 = arith.constant 1.000000e+00 : f32
    %453 = vector.broadcast %cst_124 : f32 to vector<1x32xf32>
    %454 = arith.subf %453, %447 : vector<1x32xf32>
    %455 = arith.mulf %454, %452 : vector<1x32xf32>
    %456 = arith.mulf %447, %400 : vector<1x32xf32>
    %457 = arith.addf %455, %456 : vector<1x32xf32>
    %cst_125 = arith.constant dense<0.000000e+00> : vector<1x64xf32>
    %458 = tpu.matmul %457, %6, %cst_125 {dimension_numbers = #tpu.dot_dimension_numbers<[1], [0], [0], [1], [0, 0, 1, 1], [], []>} : vector<1x32xf32>, vector<32x64xf32>, vector<1x64xf32> -> vector<1x64xf32>
    %459 = arith.addf %458, %7 : vector<1x64xf32>
    %cst_126 = arith.constant dense<0xFF800000> : vector<1xf32>
    %460 = vector.multi_reduction <maximumf>, %459, %cst_126 [1] : vector<1x64xf32> to vector<1xf32>
    %461 = vector.shape_cast %460 : vector<1xf32> to vector<1x1xf32>
    %462 = vector.broadcast %461 : vector<1x1xf32> to vector<1x64xf32>
    %463 = arith.subf %459, %462 : vector<1x64xf32>
    %464 = math.exp %463 : vector<1x64xf32>
    %cst_127 = arith.constant dense<0.000000e+00> : vector<1xf32>
    %465 = vector.multi_reduction <add>, %464, %cst_127 [1] : vector<1x64xf32> to vector<1xf32>
    %466 = vector.shape_cast %465 : vector<1xf32> to vector<1x1xf32>
    %467 = math.log %466 : vector<1x1xf32>
    %468 = vector.broadcast %467 : vector<1x1xf32> to vector<1x64xf32>
    %469 = arith.subf %463, %468 : vector<1x64xf32>
    %470 = tpu.concatenate %469, %457, %429, %8 in 1 : vector<1x64xf32>, vector<1x32xf32>, vector<1x16xf32>, vector<1x16xf32> -> vector<1x128xf32>
    %c7 = arith.constant 7 : index
    %c0_128 = arith.constant 0 : index
    %471 = vector.load %arg12[%c7, %c0_128] : memref<8x128xf32, #tpu.memory_space<vmem>>, vector<1x128xf32>
    tpu.vector_store %arg12[%c7, %c0_128], %470 {strides = array<i32>} : memref<8x128xf32, #tpu.memory_space<vmem>>, vector<1x128xf32>,
    return
  }
}

</mosaic_0001>

<llo_original>
// kernel: tpu_custom_call.1
$region0: #{tpu_custom_call.1}
  #allocation0 [shape = 'u32[]', space=smem, size = 0x4, offset = 0x4, fixed_abs, tag = 'smem constant byte address 0x4 - core index']
  #allocation1 [shape = 'u32[144,128]{1,0:T(1,128)}', space=vmem, size = 0x12000, scoped, tag = 'internal scratch']
  %s0 = inlined_call_operand.hbm [shape: f32[8,32], index: 0, kind: input, shape index: {}]
  %s1 = inlined_call_operand.vmem [shape: f32[1,32], index: 1, kind: input, shape index: {}]
  %s2 = inlined_call_operand.hbm [shape: f32[16,32], index: 2, kind: input, shape index: {}]
  %s3 = inlined_call_operand.hbm [shape: f32[32,48], index: 3, kind: input, shape index: {}]
  %s4 = inlined_call_operand.vmem [shape: f32[1,48], index: 4, kind: input, shape index: {}]
  %s5 = inlined_call_operand.hbm [shape: f32[32,128], index: 5, kind: input, shape index: {}]
  %s6 = inlined_call_operand.vmem [shape: f32[1,128], index: 6, kind: input, shape index: {}]
  %s7 = inlined_call_operand.hbm [shape: f32[32,128], index: 7, kind: input, shape index: {}]
  %s8 = inlined_call_operand.vmem [shape: f32[1,128], index: 8, kind: input, shape index: {}]
  %s9 = inlined_call_operand.hbm [shape: f32[32,32], index: 9, kind: input, shape index: {}]
  %s10 = inlined_call_operand.hbm [shape: f32[32,64], index: 10, kind: input, shape index: {}]
  %s11 = inlined_call_operand.vmem [shape: f32[1,64], index: 11, kind: input, shape index: {}]
  %s12 = inlined_call_operand.hbm [shape: f32[8,128], index: 12, kind: output, shape index: {}]
  %s13 = sld [smem:[#allocation0]]
  $region86: #{tpu_custom_call.1} parent=0
    _
  %s15 = ssub.s32 1, %s13
  %s16 = scalar_select 0, %s15, %s13
  $region1: #{tpu_custom_call.1} parent=0
    #allocation2 [shape = 'u8[4096]{0}', space=vmem, size = 0x1000, scoped, tag = 'input window, operand 0, single buffered']
    #allocation3 [shape = 's32[1]{0}', space=sflag, size = 0x4, scoped, tag = 'scoped memory for tpu_custom_call.1']
    #allocation4 [shape = 's32[1]{0}', space=sflag, size = 0x4, scoped, tag = 'scoped memory for tpu_custom_call.1']
    #allocation5 [shape = 'u8[8192]{0}', space=vmem, size = 0x2000, scoped, tag = 'input window, operand 2, single buffered']
    #allocation6 [shape = 's32[1]{0}', space=sflag, size = 0x4, scoped, tag = 'scoped memory for tpu_custom_call.1']
    #allocation7 [shape = 'u8[16384]{0}', space=vmem, size = 0x4000, scoped, tag = 'input window, operand 3, single buffered']
    #allocation8 [shape = 'u8[16384]{0}', space=vmem, size = 0x4000, scoped, tag = 'input window, operand 5, single buffered']
    #allocation9 [shape = 's32[1]{0}', space=sflag, size = 0x4, scoped, tag = 'scoped memory for tpu_custom_call.1']
    #allocation10 [shape = 'u8[16384]{0}', space=vmem, size = 0x4000, scoped, tag = 'input window, operand 7, single buffered']
    #allocation11 [shape = 'u8[16384]{0}', space=vmem, size = 0x4000, scoped, tag = 'input window, operand 9, single buffered']
    #allocation12 [shape = 's32[1]{0}', space=sflag, size = 0x4, scoped, tag = 'scoped memory for tpu_custom_call.1']
    #allocation13 [shape = 'u8[16384]{0}', space=vmem, size = 0x4000, scoped, tag = 'input window, operand 10, single buffered']
    #allocation14 [shape = 'u8[4096]{0}', space=vmem, size = 0x1000, scoped, tag = 'output window, operand 0, single buffered']
    %17 = vsyncpa [#allocation3], 0
    %18 = vsyncpa [#allocation6], 0
    %19 = vsyncpa [#allocation9], 0
    %20 = vsyncpa [#allocation12], 0
    %21 = vsyncpa [#allocation4], 0
    // Predicated region
    $region2: #{tpu_custom_call.1} parent=1 // pred_check
      _
    $region3: #{tpu_custom_call.1} parent=1 // pred_check_branch
      %23 = sbr.rel (0) target = $region5
    $region4: #{tpu_custom_call.1} parent=1 // pred_region
      %s25 = ssub.s32 128, 128
      %26 = vsyncadd [#allocation3], %s25
      %s28 = sshll.u32 [#allocation2], 4
      %s29 = int_to_ptr.vmem [resolvable:$true] %s28
      %31 = dma.hbm_to_vmem [thread:$0]  %s0, 128, %s29, [#allocation3]
    $region5: #{tpu_custom_call.1} parent=1 // pred_fallthru
      _
    // Predicated region
    $region6: #{tpu_custom_call.1} parent=1 // pred_check
      _
    $region7: #{tpu_custom_call.1} parent=1 // pred_check_branch
      %33 = sbr.rel (0) target = $region9
    $region8: #{tpu_custom_call.1} parent=1 // pred_region
      _
    $region9: #{tpu_custom_call.1} parent=1 // pred_fallthru
      _
    // Predicated region
    $region10: #{tpu_custom_call.1} parent=1 // pred_check
      _
    $region11: #{tpu_custom_call.1} parent=1 // pred_check_branch
      %35 = sbr.rel (0) target = $region13
    $region12: #{tpu_custom_call.1} parent=1 // pred_region
      %s37 = ssub.s32 256, 256
      %38 = vsyncadd [#allocation6], %s37
      %s39 = sshll.u32 [#allocation5], 4
      %s40 = int_to_ptr.vmem [resolvable:$true] %s39
      %45 = dma.hbm_to_vmem [thread:$0]  %s2, 256, %s40, [#allocation6], 128, 128, 8
    $region13: #{tpu_custom_call.1} parent=1 // pred_fallthru
      _
    // Predicated region
    $region14: #{tpu_custom_call.1} parent=1 // pred_check
      _
    $region15: #{tpu_custom_call.1} parent=1 // pred_check_branch
      %47 = sbr.rel (0) target = $region17
    $region16: #{tpu_custom_call.1} parent=1 // pred_region
      %s49 = ssub.s32 512, 512
      %50 = vsyncadd [#allocation6], %s49
      %s51 = sshll.u32 [#allocation7], 4
      %s52 = int_to_ptr.vmem [resolvable:$true] %s51
      %57 = dma.hbm_to_vmem [thread:$0]  %s3, 512, %s52, [#allocation6], 128, 128, 8
    $region17: #{tpu_custom_call.1} parent=1 // pred_fallthru
      _
    // Predicated region
    $region18: #{tpu_custom_call.1} parent=1 // pred_check
      _
    $region19: #{tpu_custom_call.1} parent=1 // pred_check_branch
      %59 = sbr.rel (0) target = $region21
    $region20: #{tpu_custom_call.1} parent=1 // pred_region
      _
    $region21: #{tpu_custom_call.1} parent=1 // pred_fallthru
      _
    // Predicated region
    $region22: #{tpu_custom_call.1} parent=1 // pred_check
      _
    $region23: #{tpu_custom_call.1} parent=1 // pred_check_branch
      %61 = sbr.rel (0) target = $region25
    $region24: #{tpu_custom_call.1} parent=1 // pred_region
      %s63 = ssub.s32 512, 512
      %64 = vsyncadd [#allocation9], %s63
      %s65 = sshll.u32 [#allocation8], 4
      %s66 = int_to_ptr.vmem [resolvable:$true] %s65
      %71 = dma.hbm_to_vmem [thread:$0]  %s5, 512, %s66, [#allocation9], 128, 128, 8
    $region25: #{tpu_custom_call.1} parent=1 // pred_fallthru
      _
    // Predicated region
    $region26: #{tpu_custom_call.1} parent=1 // pred_check
      _
    $region27: #{tpu_custom_call.1} parent=1 // pred_check_branch
      %73 = sbr.rel (0) target = $region29
    $region28: #{tpu_custom_call.1} parent=1 // pred_region
      _
    $region29: #{tpu_custom_call.1} parent=1 // pred_fallthru
      _
    // Predicated region
    $region30: #{tpu_custom_call.1} parent=1 // pred_check
      _
    $region31: #{tpu_custom_call.1} parent=1 // pred_check_branch
      %75 = sbr.rel (0) target = $region33
    $region32: #{tpu_custom_call.1} parent=1 // pred_region
      %s77 = ssub.s32 512, 512
      %78 = vsyncadd [#allocation9], %s77
      %s79 = sshll.u32 [#allocation10], 4
      %s80 = int_to_ptr.vmem [resolvable:$true] %s79
      %85 = dma.hbm_to_vmem [thread:$0]  %s7, 512, %s80, [#allocation9], 128, 128, 8
    $region33: #{tpu_custom_call.1} parent=1 // pred_fallthru
      _
    // Predicated region
    $region34: #{tpu_custom_call.1} parent=1 // pred_check
      _
    $region35: #{tpu_custom_call.1} parent=1 // pred_check_branch
      %87 = sbr.rel (0) target = $region37
    $region36: #{tpu_custom_call.1} parent=1 // pred_region
      _
    $region37: #{tpu_custom_call.1} parent=1 // pred_fallthru
      _
    // Predicated region
    $region38: #{tpu_custom_call.1} parent=1 // pred_check
      _
    $region39: #{tpu_custom_call.1} parent=1 // pred_check_branch
      %89 = sbr.rel (0) target = $region41
    $region40: #{tpu_custom_call.1} parent=1 // pred_region
      %s91 = ssub.s32 512, 512
      %92 = vsyncadd [#allocation12], %s91
      %s93 = sshll.u32 [#allocation11], 4
      %s94 = int_to_ptr.vmem [resolvable:$true] %s93
      %99 = dma.hbm_to_vmem [thread:$0]  %s9, 512, %s94, [#allocation12], 128, 128, 8
    $region41: #{tpu_custom_call.1} parent=1 // pred_fallthru
      _
    // Predicated region
    $region42: #{tpu_custom_call.1} parent=1 // pred_check
      _
    $region43: #{tpu_custom_call.1} parent=1 // pred_check_branch
      %101 = sbr.rel (0) target = $region45
    $region44: #{tpu_custom_call.1} parent=1 // pred_region
      %s103 = ssub.s32 512, 512
      %104 = vsyncadd [#allocation12], %s103
      %s105 = sshll.u32 [#allocation13], 4
      %s106 = int_to_ptr.vmem [resolvable:$true] %s105
      %111 = dma.hbm_to_vmem [thread:$0]  %s10, 512, %s106, [#allocation12], 128, 128, 8
    $region45: #{tpu_custom_call.1} parent=1 // pred_fallthru
      _
    // Predicated region
    $region46: #{tpu_custom_call.1} parent=1 // pred_check
      _
    $region47: #{tpu_custom_call.1} parent=1 // pred_check_branch
      %113 = sbr.rel (0) target = $region49
    $region48: #{tpu_custom_call.1} parent=1 // pred_region
      _
    $region49: #{tpu_custom_call.1} parent=1 // pred_fallthru
      _
    // Predicated region
    $region50: #{tpu_custom_call.1} parent=1 // pred_check
      _
    $region51: #{tpu_custom_call.1} parent=1 // pred_check_branch
      %115 = sbr.rel (0) target = $region53
    $region52: #{tpu_custom_call.1} parent=1 // pred_region
      %116 = dma.done [#allocation3], 128
    $region53: #{tpu_custom_call.1} parent=1 // pred_fallthru
      _
    // Predicated region
    $region54: #{tpu_custom_call.1} parent=1 // pred_check
      _
    $region55: #{tpu_custom_call.1} parent=1 // pred_check_branch
      %118 = sbr.rel (0) target = $region57
    $region56: #{tpu_custom_call.1} parent=1 // pred_region
      %119 = dma.done [#allocation6], 256
    $region57: #{tpu_custom_call.1} parent=1 // pred_fallthru
      _
    // Predicated region
    $region58: #{tpu_custom_call.1} parent=1 // pred_check
      _
    $region59: #{tpu_custom_call.1} parent=1 // pred_check_branch
      %121 = sbr.rel (0) target = $region61
    $region60: #{tpu_custom_call.1} parent=1 // pred_region
      %122 = dma.done [#allocation6], 512
    $region61: #{tpu_custom_call.1} parent=1 // pred_fallthru
      _
    // Predicated region
    $region62: #{tpu_custom_call.1} parent=1 // pred_check
      _
    $region63: #{tpu_custom_call.1} parent=1 // pred_check_branch
      %124 = sbr.rel (0) target = $region65
    $region64: #{tpu_custom_call.1} parent=1 // pred_region
      %125 = dma.done [#allocation9], 512
    $region65: #{tpu_custom_call.1} parent=1 // pred_fallthru
      _
    // Predicated region
    $region66: #{tpu_custom_call.1} parent=1 // pred_check
      _
    $region67: #{tpu_custom_call.1} parent=1 // pred_check_branch
      %127 = sbr.rel (0) target = $region69
    $region68: #{tpu_custom_call.1} parent=1 // pred_region
      %128 = dma.done [#allocation9], 512
    $region69: #{tpu_custom_call.1} parent=1 // pred_fallthru
      _
    // Predicated region
    $region70: #{tpu_custom_call.1} parent=1 // pred_check
      _
    $region71: #{tpu_custom_call.1} parent=1 // pred_check_branch
      %130 = sbr.rel (0) target = $region73
    $region72: #{tpu_custom_call.1} parent=1 // pred_region
      %131 = dma.done [#allocation12], 512
    $region73: #{tpu_custom_call.1} parent=1 // pred_fallthru
      _
    // Predicated region
    $region74: #{tpu_custom_call.1} parent=1 // pred_check
      _
    $region75: #{tpu_custom_call.1} parent=1 // pred_check_branch
      %133 = sbr.rel (0) target = $region77
    $region76: #{tpu_custom_call.1} parent=1 // pred_region
      %134 = dma.done [#allocation12], 512
    $region77: #{tpu_custom_call.1} parent=1 // pred_fallthru
      _
    %v135 = vld [vmem:[#allocation5] sm:$0xff]
    %v136 = vld [vmem:[#allocation5 + $0x8] sm:$0xff]
    %v137 = vld [vmem:[#allocation8] sm:$0xff]
    %v138 = vld [vmem:[#allocation8 + $0x8] sm:$0xff]
    %v139 = vld [vmem:[#allocation8 + $0x10] sm:$0xff]
    %v140 = vld [vmem:[#allocation8 + $0x18] sm:$0xff]
    %v141 = vld [vmem:[%s6] sm:$0x1]
    %v142 = vld [vmem:[#allocation10] sm:$0xff]
    %v143 = vld [vmem:[#allocation10 + $0x8] sm:$0xff]
    %v144 = vld [vmem:[#allocation10 + $0x10] sm:$0xff]
    %v145 = vld [vmem:[#allocation10 + $0x18] sm:$0xff]
    %v146 = vld [vmem:[%s8] sm:$0x1]
    %v147 = vld [vmem:[#allocation11] sm:$0xff]
    %v148 = vld [vmem:[#allocation11 + $0x8] sm:$0xff]
    %v149 = vld [vmem:[#allocation11 + $0x10] sm:$0xff]
    %v150 = vld [vmem:[#allocation11 + $0x18] sm:$0xff]
    %v151 = vld [vmem:[#allocation13] sm:$0xff]
    %v152 = vld [vmem:[#allocation13 + $0x8] sm:$0xff]
    %v153 = vld [vmem:[#allocation13 + $0x10] sm:$0xff]
    %v154 = vld [vmem:[#allocation13 + $0x18] sm:$0xff]
    %v155 = vld [vmem:[%s11] sm:$0x1]
    %v156 = vld [vmem:[#allocation2] sm:$0xff]
    %v157 = vld [vmem:[#allocation7] sm:$0xff]
    %v158 = vld [vmem:[#allocation7 + $0x8] sm:$0xff]
    %v159 = vld [vmem:[#allocation7 + $0x10] sm:$0xff]
    %v160 = vld [vmem:[#allocation7 + $0x18] sm:$0xff]
    %v161 = vld [vmem:[%s4] sm:$0x1]
    %v163 = vlaneseq
    %v164 = vshrl.u32 %v163, 7
    %v165 = vsub.s32 0, %v164
    %v166 = vrot.slane %v161, %v165
    %vm168 = vcmask 261120
    %v170 = vsel %vm168, %v156, 0
    %172 = vmatprep.subr.mxu0 0.0
    %173 = vmatpush1.msra.mxu0 0.0
    %174 = vmatprep.subr.mxu0 0.0
    %175 = vmatpush1.msra.mxu0 0.0
    %176 = vmatprep.subr.mxu0 0.0
    %177 = vmatpush1.msra.mxu0 0.0
    %178 = vmatprep.subr.mxu0 0.0
    %179 = vmatpush1.msra.mxu0 0.0
    %180 = vmatprep.subr.mxu0 0.0
    %181 = vmatpush1.msra.mxu0 0.0
    %182 = vmatprep.subr.mxu0 0.0
    %183 = vmatpush1.msra.mxu0 0.0
    %184 = vmatprep.subr.mxu0 0.0
    %185 = vmatpush1.msra.mxu0 0.0
    %186 = vmatprep.subr.mxu0 0.0
    %187 = vmatpush1.msra.mxu0 0.0
    %188 = vmatprep.subr.mxu0 0.0
    %189 = vmatpush1.msra.mxu0 0.0
    %190 = vmatprep.subr.mxu0 0.0
    %191 = vmatpush1.msra.mxu0 0.0
    %192 = vmatprep.subr.mxu0 0.0
    %193 = vmatpush1.msra.mxu0 0.0
    %194 = vmatprep.subr.mxu0 0.0
    %195 = vmatpush1.msra.mxu0 0.0
    %196 = vmatprep.subr.mxu0 0.0
    %197 = vmatpush1.msra.mxu0 %v160
    %198 = vmatprep.subr.mxu0 0.0
    %199 = vmatpush1.msra.mxu0 %v159
    %200 = vmatprep.subr.mxu0 0.0
    %201 = vmatpush1.msra.mxu0 %v158
    %202 = vmatprep.subr.mxu0 0.0
    %203 = vmatpush1.msra.mxu0 %v157
    %204 = vmatprep.subr.mxu0 0.0
    %205 = vmatpush2.msra.mxu0 0.0
    %206 = vmatprep.subr.mxu0 0.0
    %207 = vmatpush2.msra.mxu0 0.0
    %208 = vmatprep.subr.mxu0 0.0
    %209 = vmatpush2.msra.mxu0 0.0
    %210 = vmatprep.subr.mxu0 0.0
    %211 = vmatpush2.msra.mxu0 0.0
    %212 = vmatprep.subr.mxu0 0.0
    %213 = vmatpush2.msra.mxu0 0.0
    %214 = vmatprep.subr.mxu0 0.0
    %215 = vmatpush2.msra.mxu0 0.0
    %216 = vmatprep.subr.mxu0 0.0
    %217 = vmatpush2.msra.mxu0 0.0
    %218 = vmatprep.subr.mxu0 0.0
    %219 = vmatpush2.msra.mxu0 0.0
    %220 = vmatprep.subr.mxu0 0.0
    %221 = vmatpush2.msra.mxu0 0.0
    %222 = vmatprep.subr.mxu0 0.0
    %223 = vmatpush2.msra.mxu0 0.0
    %224 = vmatprep.subr.mxu0 0.0
    %225 = vmatpush2.msra.mxu0 0.0
    %226 = vmatprep.subr.mxu0 0.0
    %227 = vmatpush2.msra.mxu0 0.0
    %228 = vmatprep.subr.mxu0 0.0
    %229 = vmatpush2.msra.mxu0 0.0
    %230 = vmatprep.subr.mxu0 0.0
    %231 = vmatpush2.msra.mxu0 0.0
    %232 = vmatprep.subr.mxu0 0.0
    %233 = vmatpush2.msra.mxu0 0.0
    %234 = vmatprep.subr.mxu0 0.0
    %235 = vmatpush2.msra.mxu0 0.0
    %236 = vmatprep.mubr.f32.mxu0 0.0
    %237 = vmatmul.mubr.f32.gmra.mxu0 %v170
    %v238 = vpop.f32.mrf.mxu0
    %v239 = vadd.f32 %v166, %v238
    %v240 = vpop.f32.mrf.mxu0
    %241 = vdwg.mxu0
    %v242 = vld [vmem:[%s1] sm:$0x1]
    %v244 = vsel %vm168, %v242, 0
    %246 = vmatprep.subr.mxu0 0.0
    %247 = vmatpush1.msra.mxu0 0.0
    %248 = vmatprep.subr.mxu0 0.0
    %249 = vmatpush1.msra.mxu0 0.0
    %250 = vmatprep.subr.mxu0 0.0
    %251 = vmatpush1.msra.mxu0 0.0
    %252 = vmatprep.subr.mxu0 0.0
    %253 = vmatpush1.msra.mxu0 0.0
    %254 = vmatprep.subr.mxu0 0.0
    %255 = vmatpush1.msra.mxu0 0.0
    %256 = vmatprep.subr.mxu0 0.0
    %257 = vmatpush1.msra.mxu0 0.0
    %258 = vmatprep.subr.mxu0 0.0
    %259 = vmatpush1.msra.mxu0 0.0
    %260 = vmatprep.subr.mxu0 0.0
    %261 = vmatpush1.msra.mxu0 0.0
    %262 = vmatprep.subr.mxu0 0.0
    %263 = vmatpush1.msra.mxu0 0.0
    %264 = vmatprep.subr.mxu0 0.0
    %265 = vmatpush1.msra.mxu0 0.0
    %266 = vmatprep.subr.mxu0 0.0
    %267 = vmatpush1.msra.mxu0 0.0
    %268 = vmatprep.subr.mxu0 0.0
    %269 = vmatpush1.msra.mxu0 0.0
    %270 = vmatprep.subr.mxu0 0.0
    %271 = vmatpush1.msra.mxu0 %v140
    %272 = vmatprep.subr.mxu0 0.0
    %273 = vmatpush1.msra.mxu0 %v139
    %274 = vmatprep.subr.mxu0 0.0
    %275 = vmatpush1.msra.mxu0 %v138
    %276 = vmatprep.subr.mxu0 0.0
    %277 = vmatpush1.msra.mxu0 %v137
    %278 = vmatprep.subr.mxu0 0.0
    %279 = vmatpush2.msra.mxu0 0.0
    %280 = vmatprep.subr.mxu0 0.0
    %281 = vmatpush2.msra.mxu0 0.0
    %282 = vmatprep.subr.mxu0 0.0
    %283 = vmatpush2.msra.mxu0 0.0
    %284 = vmatprep.subr.mxu0 0.0
    %285 = vmatpush2.msra.mxu0 0.0
    %286 = vmatprep.subr.mxu0 0.0
    %287 = vmatpush2.msra.mxu0 0.0
    %288 = vmatprep.subr.mxu0 0.0
    %289 = vmatpush2.msra.mxu0 0.0
    %290 = vmatprep.subr.mxu0 0.0
    %291 = vmatpush2.msra.mxu0 0.0
    %292 = vmatprep.subr.mxu0 0.0
    %293 = vmatpush2.msra.mxu0 0.0
    %294 = vmatprep.subr.mxu0 0.0
    %295 = vmatpush2.msra.mxu0 0.0
    %296 = vmatprep.subr.mxu0 0.0
    %297 = vmatpush2.msra.mxu0 0.0
    %298 = vmatprep.subr.mxu0 0.0
    %299 = vmatpush2.msra.mxu0 0.0
    %300 = vmatprep.subr.mxu0 0.0
    %301 = vmatpush2.msra.mxu0 0.0
    %302 = vmatprep.subr.mxu0 0.0
    %303 = vmatpush2.msra.mxu0 0.0
    %304 = vmatprep.subr.mxu0 0.0
    %305 = vmatpush2.msra.mxu0 0.0
    %306 = vmatprep.subr.mxu0 0.0
    %307 = vmatpush2.msra.mxu0 0.0
    %308 = vmatprep.subr.mxu0 0.0
    %309 = vmatpush2.msra.mxu0 0.0
    %310 = vmatprep.mubr.f32.mxu0 0.0
    %311 = vmatmul.mubr.f32.gmra.mxu0 %v244
    %v312 = vpop.f32.mrf.mxu0
    %v313 = vadd.f32 %v141, %v312
    %v314 = vpop.f32.mrf.mxu0
    %315 = vdwg.mxu0
    %317 = vrot.lane.b32.xlu0 %v313, 32
    %v318 = vpop.permute.xlu0 %317
    %v320 = vadd.f32 %v239, %v318
    %vm321 = vcmask 122880
    %v322 = vsel %vm321, %v320, -inf
    %323 = vmax.xlane.f32.xlu0 %v322
    %v324 = vpop.xlane.xlu0 %323
    %v325 = vsub.f32 %v320, %v324
    %v326 = vmul.f32 %v325, 1.442695
    %v327 = vpow.pop %v326
    %v328 = vsel %vm321, %v327, 0.0
    %329 = vadd.xlane.f32.xlu0 %v328
    %v330 = vpop.xlane.xlu0 %329
    %v331 = vrcp.pop %v330
    %v332 = vmul.f32 %v327, %v331
    %vm333 = vcmask 130048
    %v335 = vsel %vm333, %v332, 0
    %337 = vmatprep.subr.mxu0 0.0
    %338 = vmatpush1.msra.mxu0 0.0
    %339 = vmatprep.subr.mxu0 0.0
    %340 = vmatpush1.msra.mxu0 0.0
    %341 = vmatprep.subr.mxu0 0.0
    %342 = vmatpush1.msra.mxu0 0.0
    %343 = vmatprep.subr.mxu0 0.0
    %344 = vmatpush1.msra.mxu0 0.0
    %345 = vmatprep.subr.mxu0 0.0
    %346 = vmatpush1.msra.mxu0 0.0
    %347 = vmatprep.subr.mxu0 0.0
    %348 = vmatpush1.msra.mxu0 0.0
    %349 = vmatprep.subr.mxu0 0.0
    %350 = vmatpush1.msra.mxu0 0.0
    %351 = vmatprep.subr.mxu0 0.0
    %352 = vmatpush1.msra.mxu0 0.0
    %353 = vmatprep.subr.mxu0 0.0
    %354 = vmatpush1.msra.mxu0 0.0
    %355 = vmatprep.subr.mxu0 0.0
    %356 = vmatpush1.msra.mxu0 0.0
    %357 = vmatprep.subr.mxu0 0.0
    %358 = vmatpush1.msra.mxu0 0.0
    %359 = vmatprep.subr.mxu0 0.0
    %360 = vmatpush1.msra.mxu0 0.0
    %361 = vmatprep.subr.mxu0 0.0
    %362 = vmatpush1.msra.mxu0 0.0
    %363 = vmatprep.subr.mxu0 0.0
    %364 = vmatpush1.msra.mxu0 0.0
    %365 = vmatprep.subr.mxu0 0.0
    %366 = vmatpush1.msra.mxu0 %v136
    %367 = vmatprep.subr.mxu0 0.0
    %368 = vmatpush1.msra.mxu0 %v135
    %369 = vmatprep.subr.mxu0 0.0
    %370 = vmatpush2.msra.mxu0 0.0
    %371 = vmatprep.subr.mxu0 0.0
    %372 = vmatpush2.msra.mxu0 0.0
    %373 = vmatprep.subr.mxu0 0.0
    %374 = vmatpush2.msra.mxu0 0.0
    %375 = vmatprep.subr.mxu0 0.0
    %376 = vmatpush2.msra.mxu0 0.0
    %377 = vmatprep.subr.mxu0 0.0
    %378 = vmatpush2.msra.mxu0 0.0
    %379 = vmatprep.subr.mxu0 0.0
    %380 = vmatpush2.msra.mxu0 0.0
    %381 = vmatprep.subr.mxu0 0.0
    %382 = vmatpush2.msra.mxu0 0.0
    %383 = vmatprep.subr.mxu0 0.0
    %384 = vmatpush2.msra.mxu0 0.0
    %385 = vmatprep.subr.mxu0 0.0
    %386 = vmatpush2.msra.mxu0 0.0
    %387 = vmatprep.subr.mxu0 0.0
    %388 = vmatpush2.msra.mxu0 0.0
    %389 = vmatprep.subr.mxu0 0.0
    %390 = vmatpush2.msra.mxu0 0.0
    %391 = vmatprep.subr.mxu0 0.0
    %392 = vmatpush2.msra.mxu0 0.0
    %393 = vmatprep.subr.mxu0 0.0
    %394 = vmatpush2.msra.mxu0 0.0
    %395 = vmatprep.subr.mxu0 0.0
    %396 = vmatpush2.msra.mxu0 0.0
    %397 = vmatprep.subr.mxu0 0.0
    %398 = vmatpush2.msra.mxu0 0.0
    %399 = vmatprep.subr.mxu0 0.0
    %400 = vmatpush2.msra.mxu0 0.0
    %401 = vmatprep.mubr.f32.mxu0 0.0
    %402 = vmatmul.mubr.f32.gmra.mxu0 %v335
    %v403 = vpop.f32.mrf.mxu0
    %v404 = vadd.f32 0.0, %v403
    %v405 = vpop.f32.mrf.mxu0
    %406 = vdwg.mxu0
    %v408 = vsel %vm168, %v404, 0
    %410 = vmatprep.subr.mxu0 0.0
    %411 = vmatpush1.msra.mxu0 0.0
    %412 = vmatprep.subr.mxu0 0.0
    %413 = vmatpush1.msra.mxu0 0.0
    %414 = vmatprep.subr.mxu0 0.0
    %415 = vmatpush1.msra.mxu0 0.0
    %416 = vmatprep.subr.mxu0 0.0
    %417 = vmatpush1.msra.mxu0 0.0
    %418 = vmatprep.subr.mxu0 0.0
    %419 = vmatpush1.msra.mxu0 0.0
    %420 = vmatprep.subr.mxu0 0.0
    %421 = vmatpush1.msra.mxu0 0.0
    %422 = vmatprep.subr.mxu0 0.0
    %423 = vmatpush1.msra.mxu0 0.0
    %424 = vmatprep.subr.mxu0 0.0
    %425 = vmatpush1.msra.mxu0 0.0
    %426 = vmatprep.subr.mxu0 0.0
    %427 = vmatpush1.msra.mxu0 0.0
    %428 = vmatprep.subr.mxu0 0.0
    %429 = vmatpush1.msra.mxu0 0.0
    %430 = vmatprep.subr.mxu0 0.0
    %431 = vmatpush1.msra.mxu0 0.0
    %432 = vmatprep.subr.mxu0 0.0
    %433 = vmatpush1.msra.mxu0 0.0
    %434 = vmatprep.subr.mxu0 0.0
    %435 = vmatpush1.msra.mxu0 %v150
    %436 = vmatprep.subr.mxu0 0.0
    %437 = vmatpush1.msra.mxu0 %v149
    %438 = vmatprep.subr.mxu0 0.0
    %439 = vmatpush1.msra.mxu0 %v148
    %440 = vmatprep.subr.mxu0 0.0
    %441 = vmatpush1.msra.mxu0 %v147
    %442 = vmatprep.subr.mxu0 0.0
    %443 = vmatpush2.msra.mxu0 0.0
    %444 = vmatprep.subr.mxu0 0.0
    %445 = vmatpush2.msra.mxu0 0.0
    %446 = vmatprep.subr.mxu0 0.0
    %447 = vmatpush2.msra.mxu0 0.0
    %448 = vmatprep.subr.mxu0 0.0
    %449 = vmatpush2.msra.mxu0 0.0
    %450 = vmatprep.subr.mxu0 0.0
    %451 = vmatpush2.msra.mxu0 0.0
    %452 = vmatprep.subr.mxu0 0.0
    %453 = vmatpush2.msra.mxu0 0.0
    %454 = vmatprep.subr.mxu0 0.0
    %455 = vmatpush2.msra.mxu0 0.0
    %456 = vmatprep.subr.mxu0 0.0
    %457 = vmatpush2.msra.mxu0 0.0
    %458 = vmatprep.subr.mxu0 0.0
    %459 = vmatpush2.msra.mxu0 0.0
    %460 = vmatprep.subr.mxu0 0.0
    %461 = vmatpush2.msra.mxu0 0.0
    %462 = vmatprep.subr.mxu0 0.0
    %463 = vmatpush2.msra.mxu0 0.0
    %464 = vmatprep.subr.mxu0 0.0
    %465 = vmatpush2.msra.mxu0 0.0
    %466 = vmatprep.subr.mxu0 0.0
    %467 = vmatpush2.msra.mxu0 0.0
    %468 = vmatprep.subr.mxu0 0.0
    %469 = vmatpush2.msra.mxu0 0.0
    %470 = vmatprep.subr.mxu0 0.0
    %471 = vmatpush2.msra.mxu0 0.0
    %472 = vmatprep.subr.mxu0 0.0
    %473 = vmatpush2.msra.mxu0 0.0
    %474 = vmatprep.mubr.f32.mxu0 0.0
    %475 = vmatmul.mubr.f32.gmra.mxu0 %v408
    %v476 = vpop.f32.mrf.mxu0
    %v477 = vadd.f32 0.0, %v476
    %v478 = vpop.f32.mrf.mxu0
    %479 = vdwg.mxu0
    %481 = vrot.lane.b32.xlu0 %v477, 16
    %v482 = vpop.permute.xlu0 %481
    %v484 = vadd.f32 %v239, %v482
    %v485 = vmax.f32 %v484, 0.0
    %487 = vrot.lane.b32.xlu0 %v485, 112
    %v488 = vpop.permute.xlu0 %487
    %v489 = vsel %vm168, %v488, 0
    %491 = vmatprep.subr.mxu0 0.0
    %492 = vmatpush1.msra.mxu0 0.0
    %493 = vmatprep.subr.mxu0 0.0
    %494 = vmatpush1.msra.mxu0 0.0
    %495 = vmatprep.subr.mxu0 0.0
    %496 = vmatpush1.msra.mxu0 0.0
    %497 = vmatprep.subr.mxu0 0.0
    %498 = vmatpush1.msra.mxu0 0.0
    %499 = vmatprep.subr.mxu0 0.0
    %500 = vmatpush1.msra.mxu0 0.0
    %501 = vmatprep.subr.mxu0 0.0
    %502 = vmatpush1.msra.mxu0 0.0
    %503 = vmatprep.subr.mxu0 0.0
    %504 = vmatpush1.msra.mxu0 0.0
    %505 = vmatprep.subr.mxu0 0.0
    %506 = vmatpush1.msra.mxu0 0.0
    %507 = vmatprep.subr.mxu0 0.0
    %508 = vmatpush1.msra.mxu0 0.0
    %509 = vmatprep.subr.mxu0 0.0
    %510 = vmatpush1.msra.mxu0 0.0
    %511 = vmatprep.subr.mxu0 0.0
    %512 = vmatpush1.msra.mxu0 0.0
    %513 = vmatprep.subr.mxu0 0.0
    %514 = vmatpush1.msra.mxu0 0.0
    %515 = vmatprep.subr.mxu0 0.0
    %516 = vmatpush1.msra.mxu0 %v145
    %517 = vmatprep.subr.mxu0 0.0
    %518 = vmatpush1.msra.mxu0 %v144
    %519 = vmatprep.subr.mxu0 0.0
    %520 = vmatpush1.msra.mxu0 %v143
    %521 = vmatprep.subr.mxu0 0.0
    %522 = vmatpush1.msra.mxu0 %v142
    %523 = vmatprep.subr.mxu0 0.0
    %524 = vmatpush2.msra.mxu0 0.0
    %525 = vmatprep.subr.mxu0 0.0
    %526 = vmatpush2.msra.mxu0 0.0
    %527 = vmatprep.subr.mxu0 0.0
    %528 = vmatpush2.msra.mxu0 0.0
    %529 = vmatprep.subr.mxu0 0.0
    %530 = vmatpush2.msra.mxu0 0.0
    %531 = vmatprep.subr.mxu0 0.0
    %532 = vmatpush2.msra.mxu0 0.0
    %533 = vmatprep.subr.mxu0 0.0
    %534 = vmatpush2.msra.mxu0 0.0
    %535 = vmatprep.subr.mxu0 0.0
    %536 = vmatpush2.msra.mxu0 0.0
    %537 = vmatprep.subr.mxu0 0.0
    %538 = vmatpush2.msra.mxu0 0.0
    %539 = vmatprep.subr.mxu0 0.0
    %540 = vmatpush2.msra.mxu0 0.0
    %541 = vmatprep.subr.mxu0 0.0
    %542 = vmatpush2.msra.mxu0 0.0
    %543 = vmatprep.subr.mxu0 0.0
    %544 = vmatpush2.msra.mxu0 0.0
    %545 = vmatprep.subr.mxu0 0.0
    %546 = vmatpush2.msra.mxu0 0.0
    %547 = vmatprep.subr.mxu0 0.0
    %548 = vmatpush2.msra.mxu0 0.0
    %549 = vmatprep.subr.mxu0 0.0
    %550 = vmatpush2.msra.mxu0 0.0
    %551 = vmatprep.subr.mxu0 0.0
    %552 = vmatpush2.msra.mxu0 0.0
    %553 = vmatprep.subr.mxu0 0.0
    %554 = vmatpush2.msra.mxu0 0.0
    %555 = vmatprep.mubr.f32.mxu0 0.0
    %556 = vmatmul.mubr.f32.gmra.mxu0 %v489
    %v557 = vpop.f32.mrf.mxu0
    %v558 = vadd.f32 %v146, %v557
    %v559 = vpop.f32.mrf.mxu0
    %560 = vdwg.mxu0
    %v561 = vadd.f32 %v558, %v313
    %v562 = vxor.u32 %v561, 2147483648
    %v563 = vmul.f32 %v562, 1.442695
    %v564 = vpow.pop %v563
    %v565 = vadd.f32 %v564, 1.0
    %v566 = vrcp.pop %v565
    %v567 = vmul.f32 1.0, %v566
    %568 = vrot.lane.b32.xlu0 %v313, 64
    %v569 = vpop.permute.xlu0 %568
    %v571 = vmul.f32 %v567, %v569
    %573 = vrot.lane.b32.xlu0 %v571, 64
    %v574 = vpop.permute.xlu0 %573
    %v576 = vadd.f32 %v558, %v574
    %v577 = vtanh.pop %v576
    %v578 = vsub.f32 1.0, %v567
    %580 = vrot.lane.b32.xlu0 %v577, 96
    %v581 = vpop.permute.xlu0 %580
    %v583 = vmul.f32 %v578, %v581
    %v584 = vlaneseq
    %v585 = vshrl.u32 %v584, 7
    %v586 = vsub.s32 0, %v585
    %v587 = vrot.slane %v242, %v586
    %588 = vrot.lane.b32.xlu0 %v587, 32
    %v589 = vpop.permute.xlu0 %588
    %v591 = vmul.f32 %v567, %v589
    %v592 = vadd.f32 %v583, %v591
    %594 = vrot.lane.b32.xlu0 %v592, 96
    %v595 = vpop.permute.xlu0 %594
    %v596 = vsel %vm168, %v595, 0
    %598 = vmatprep.subr.mxu0 0.0
    %599 = vmatpush1.msra.mxu0 0.0
    %600 = vmatprep.subr.mxu0 0.0
    %601 = vmatpush1.msra.mxu0 0.0
    %602 = vmatprep.subr.mxu0 0.0
    %603 = vmatpush1.msra.mxu0 0.0
    %604 = vmatprep.subr.mxu0 0.0
    %605 = vmatpush1.msra.mxu0 0.0
    %606 = vmatprep.subr.mxu0 0.0
    %607 = vmatpush1.msra.mxu0 0.0
    %608 = vmatprep.subr.mxu0 0.0
    %609 = vmatpush1.msra.mxu0 0.0
    %610 = vmatprep.subr.mxu0 0.0
    %611 = vmatpush1.msra.mxu0 0.0
    %612 = vmatprep.subr.mxu0 0.0
    %613 = vmatpush1.msra.mxu0 0.0
    %614 = vmatprep.subr.mxu0 0.0
    %615 = vmatpush1.msra.mxu0 0.0
    %616 = vmatprep.subr.mxu0 0.0
    %617 = vmatpush1.msra.mxu0 0.0
    %618 = vmatprep.subr.mxu0 0.0
    %619 = vmatpush1.msra.mxu0 0.0
    %620 = vmatprep.subr.mxu0 0.0
    %621 = vmatpush1.msra.mxu0 0.0
    %622 = vmatprep.subr.mxu0 0.0
    %623 = vmatpush1.msra.mxu0 %v154
    %624 = vmatprep.subr.mxu0 0.0
    %625 = vmatpush1.msra.mxu0 %v153
    %626 = vmatprep.subr.mxu0 0.0
    %627 = vmatpush1.msra.mxu0 %v152
    %628 = vmatprep.subr.mxu0 0.0
    %629 = vmatpush1.msra.mxu0 %v151
    %630 = vmatprep.subr.mxu0 0.0
    %631 = vmatpush2.msra.mxu0 0.0
    %632 = vmatprep.subr.mxu0 0.0
    %633 = vmatpush2.msra.mxu0 0.0
    %634 = vmatprep.subr.mxu0 0.0
    %635 = vmatpush2.msra.mxu0 0.0
    %636 = vmatprep.subr.mxu0 0.0
    %637 = vmatpush2.msra.mxu0 0.0
    %638 = vmatprep.subr.mxu0 0.0
    %639 = vmatpush2.msra.mxu0 0.0
    %640 = vmatprep.subr.mxu0 0.0
    %641 = vmatpush2.msra.mxu0 0.0
    %642 = vmatprep.subr.mxu0 0.0
    %643 = vmatpush2.msra.mxu0 0.0
    %644 = vmatprep.subr.mxu0 0.0
    %645 = vmatpush2.msra.mxu0 0.0
    %646 = vmatprep.subr.mxu0 0.0
    %647 = vmatpush2.msra.mxu0 0.0
    %648 = vmatprep.subr.mxu0 0.0
    %649 = vmatpush2.msra.mxu0 0.0
    %650 = vmatprep.subr.mxu0 0.0
    %651 = vmatpush2.msra.mxu0 0.0
    %652 = vmatprep.subr.mxu0 0.0
    %653 = vmatpush2.msra.mxu0 0.0
    %654 = vmatprep.subr.mxu0 0.0
    %655 = vmatpush2.msra.mxu0 0.0
    %656 = vmatprep.subr.mxu0 0.0
    %657 = vmatpush2.msra.mxu0 0.0
    %658 = vmatprep.subr.mxu0 0.0
    %659 = vmatpush2.msra.mxu0 0.0
    %660 = vmatprep.subr.mxu0 0.0
    %661 = vmatpush2.msra.mxu0 0.0
    %662 = vmatprep.mubr.f32.mxu0 0.0
    %663 = vmatmul.mubr.f32.gmra.mxu0 %v596
    %v664 = vpop.f32.mrf.mxu0
    %v665 = vadd.f32 %v155, %v664
    %v666 = vpop.f32.mrf.mxu0
    %667 = vdwg.mxu0
    %vm668 = vcmask 516096
    %v669 = vsel %vm668, %v665, -inf
    %670 = vmax.xlane.f32.xlu0 %v669
    %v671 = vpop.xlane.xlu0 %670
    %v672 = vsub.f32 %v665, %v671
    %v673 = vmul.f32 %v672, 1.442695
    %v674 = vpow.pop %v673
    %v675 = vsel %vm668, %v674, 0.0
    %676 = vadd.xlane.f32.xlu0 %v675
    %v677 = vpop.xlane.xlu0 %676
    %v678 = vlog2.pop %v677
    %v679 = vmul.f32 %v678, 0.6931472
    %v680 = vsub.f32 %v672, %v679
    %681 = vrot.lane.b32.xlu0 %v592, 32
    %v682 = vpop.permute.xlu0 %681
    %684 = vrot.lane.b32.xlu0 %v332, 96
    %v685 = vpop.permute.xlu0 %684
    %vm687 = vcmask 523264
    %v688 = vsel %vm687, %v680, %v682
    %vm689 = vcmask 785408
    %v690 = vsel %vm689, %v688, %v685
    %vm691 = vcmask 916480
    %v692 = vsel %vm691, %v690, 0.0
    %693 = vst [vmem:[#allocation14] sm:$0x1] %v692
    %694 = vmatprep.subr.mxu0 0.0
    %695 = vmatpush1.msra.mxu0 0.0
    %696 = vmatprep.subr.mxu0 0.0
    %697 = vmatpush1.msra.mxu0 0.0
    %698 = vmatprep.subr.mxu0 0.0
    %699 = vmatpush1.msra.mxu0 0.0
    %700 = vmatprep.subr.mxu0 0.0
    %701 = vmatpush1.msra.mxu0 0.0
    %702 = vmatprep.subr.mxu0 0.0
    %703 = vmatpush1.msra.mxu0 0.0
    %704 = vmatprep.subr.mxu0 0.0
    %705 = vmatpush1.msra.mxu0 0.0
    %706 = vmatprep.subr.mxu0 0.0
    %707 = vmatpush1.msra.mxu0 0.0
    %708 = vmatprep.subr.mxu0 0.0
    %709 = vmatpush1.msra.mxu0 0.0
    %710 = vmatprep.subr.mxu0 0.0
    %711 = vmatpush1.msra.mxu0 0.0
    %712 = vmatprep.subr.mxu0 0.0
    %713 = vmatpush1.msra.mxu0 0.0
    %714 = vmatprep.subr.mxu0 0.0
    %715 = vmatpush1.msra.mxu0 0.0
    %716 = vmatprep.subr.mxu0 0.0
    %717 = vmatpush1.msra.mxu0 0.0
    %718 = vmatprep.subr.mxu0 0.0
    %719 = vmatpush1.msra.mxu0 %v140
    %720 = vmatprep.subr.mxu0 0.0
    %721 = vmatpush1.msra.mxu0 %v139
    %722 = vmatprep.subr.mxu0 0.0
    %723 = vmatpush1.msra.mxu0 %v138
    %724 = vmatprep.subr.mxu0 0.0
    %725 = vmatpush1.msra.mxu0 %v137
    %726 = vmatprep.subr.mxu0 0.0
    %727 = vmatpush2.msra.mxu0 0.0
    %728 = vmatprep.subr.mxu0 0.0
    %729 = vmatpush2.msra.mxu0 0.0
    %730 = vmatprep.subr.mxu0 0.0
    %731 = vmatpush2.msra.mxu0 0.0
    %732 = vmatprep.subr.mxu0 0.0
    %733 = vmatpush2.msra.mxu0 0.0
    %734 = vmatprep.subr.mxu0 0.0
    %735 = vmatpush2.msra.mxu0 0.0
    %736 = vmatprep.subr.mxu0 0.0
    %737 = vmatpush2.msra.mxu0 0.0
    %738 = vmatprep.subr.mxu0 0.0
    %739 = vmatpush2.msra.mxu0 0.0
    %740 = vmatprep.subr.mxu0 0.0
    %741 = vmatpush2.msra.mxu0 0.0
    %742 = vmatprep.subr.mxu0 0.0
    %743 = vmatpush2.msra.mxu0 0.0
    %744 = vmatprep.subr.mxu0 0.0
    %745 = vmatpush2.msra.mxu0 0.0
    %746 = vmatprep.subr.mxu0 0.0
    %747 = vmatpush2.msra.mxu0 0.0
    %748 = vmatprep.subr.mxu0 0.0
    %749 = vmatpush2.msra.mxu0 0.0
    %750 = vmatprep.subr.mxu0 0.0
    %751 = vmatpush2.msra.mxu0 0.0
    %752 = vmatprep.subr.mxu0 0.0
    %753 = vmatpush2.msra.mxu0 0.0
    %754 = vmatprep.subr.mxu0 0.0
    %755 = vmatpush2.msra.mxu0 0.0
    %756 = vmatprep.subr.mxu0 0.0
    %757 = vmatpush2.msra.mxu0 0.0
    %758 = vmatprep.mubr.f32.mxu0 0.0
    %759 = vmatmul.mubr.f32.gmra.mxu0 %v596
    %v760 = vpop.f32.mrf.mxu0
    %v761 = vadd.f32 %v141, %v760
    %v762 = vpop.f32.mrf.mxu0
    %763 = vdwg.mxu0
    %v765 = vrot.slane %v761, 7
    %766 = vrot.lane.b32.xlu0 %v765, 32
    %v767 = vpop.permute.xlu0 %766
    %v769 = vadd.f32 %v239, %v767
    %vm770 = vcmask 123905
    %v771 = vsel %vm770, %v769, -inf
    %772 = vmax.xlane.f32.xlu0 %v771
    %v773 = vpop.xlane.xlu0 %772
    %v774 = vsub.f32 %v769, %v773
    %v775 = vmul.f32 %v774, 1.442695
    %v776 = vpow.pop %v775
    %v777 = vsel %vm770, %v776, 0.0
    %778 = vadd.xlane.f32.xlu0 %v777
    %v779 = vpop.xlane.xlu0 %778
    %v780 = vrcp.pop %v779
    %v781 = vmul.f32 %v776, %v780
    %v783 = vrot.slane %v781, 1
    %v784 = vsel %vm333, %v783, 0
    %786 = vmatprep.subr.mxu0 0.0
    %787 = vmatpush1.msra.mxu0 0.0
    %788 = vmatprep.subr.mxu0 0.0
    %789 = vmatpush1.msra.mxu0 0.0
    %790 = vmatprep.subr.mxu0 0.0
    %791 = vmatpush1.msra.mxu0 0.0
    %792 = vmatprep.subr.mxu0 0.0
    %793 = vmatpush1.msra.mxu0 0.0
    %794 = vmatprep.subr.mxu0 0.0
    %795 = vmatpush1.msra.mxu0 0.0
    %796 = vmatprep.subr.mxu0 0.0
    %797 = vmatpush1.msra.mxu0 0.0
    %798 = vmatprep.subr.mxu0 0.0
    %799 = vmatpush1.msra.mxu0 0.0
    %800 = vmatprep.subr.mxu0 0.0
    %801 = vmatpush1.msra.mxu0 0.0
    %802 = vmatprep.subr.mxu0 0.0
    %803 = vmatpush1.msra.mxu0 0.0
    %804 = vmatprep.subr.mxu0 0.0
    %805 = vmatpush1.msra.mxu0 0.0
    %806 = vmatprep.subr.mxu0 0.0
    %807 = vmatpush1.msra.mxu0 0.0
    %808 = vmatprep.subr.mxu0 0.0
    %809 = vmatpush1.msra.mxu0 0.0
    %810 = vmatprep.subr.mxu0 0.0
    %811 = vmatpush1.msra.mxu0 0.0
    %812 = vmatprep.subr.mxu0 0.0
    %813 = vmatpush1.msra.mxu0 0.0
    %814 = vmatprep.subr.mxu0 0.0
    %815 = vmatpush1.msra.mxu0 %v136
    %816 = vmatprep.subr.mxu0 0.0
    %817 = vmatpush1.msra.mxu0 %v135
    %818 = vmatprep.subr.mxu0 0.0
    %819 = vmatpush2.msra.mxu0 0.0
    %820 = vmatprep.subr.mxu0 0.0
    %821 = vmatpush2.msra.mxu0 0.0
    %822 = vmatprep.subr.mxu0 0.0
    %823 = vmatpush2.msra.mxu0 0.0
    %824 = vmatprep.subr.mxu0 0.0
    %825 = vmatpush2.msra.mxu0 0.0
    %826 = vmatprep.subr.mxu0 0.0
    %827 = vmatpush2.msra.mxu0 0.0
    %828 = vmatprep.subr.mxu0 0.0
    %829 = vmatpush2.msra.mxu0 0.0
    %830 = vmatprep.subr.mxu0 0.0
    %831 = vmatpush2.msra.mxu0 0.0
    %832 = vmatprep.subr.mxu0 0.0
    %833 = vmatpush2.msra.mxu0 0.0
    %834 = vmatprep.subr.mxu0 0.0
    %835 = vmatpush2.msra.mxu0 0.0
    %836 = vmatprep.subr.mxu0 0.0
    %837 = vmatpush2.msra.mxu0 0.0
    %838 = vmatprep.subr.mxu0 0.0
    %839 = vmatpush2.msra.mxu0 0.0
    %840 = vmatprep.subr.mxu0 0.0
    %841 = vmatpush2.msra.mxu0 0.0
    %842 = vmatprep.subr.mxu0 0.0
    %843 = vmatpush2.msra.mxu0 0.0
    %844 = vmatprep.subr.mxu0 0.0
    %845 = vmatpush2.msra.mxu0 0.0
    %846 = vmatprep.subr.mxu0 0.0
    %847 = vmatpush2.msra.mxu0 0.0
    %848 = vmatprep.subr.mxu0 0.0
    %849 = vmatpush2.msra.mxu0 0.0
    %850 = vmatprep.mubr.f32.mxu0 0.0
    %851 = vmatmul.mubr.f32.gmra.mxu0 %v784
    %v852 = vpop.f32.mrf.mxu0
    %v853 = vadd.f32 0.0, %v852
    %v854 = vpop.f32.mrf.mxu0
    %855 = vdwg.mxu0
    %v857 = vsel %vm168, %v853, 0
    %859 = vmatprep.subr.mxu0 0.0
    %860 = vmatpush1.msra.mxu0 0.0
    %861 = vmatprep.subr.mxu0 0.0
    %862 = vmatpush1.msra.mxu0 0.0
    %863 = vmatprep.subr.mxu0 0.0
    %864 = vmatpush1.msra.mxu0 0.0
    %865 = vmatprep.subr.mxu0 0.0
    %866 = vmatpush1.msra.mxu0 0.0
    %867 = vmatprep.subr.mxu0 0.0
    %868 = vmatpush1.msra.mxu0 0.0
    %869 = vmatprep.subr.mxu0 0.0
    %870 = vmatpush1.msra.mxu0 0.0
    %871 = vmatprep.subr.mxu0 0.0
    %872 = vmatpush1.msra.mxu0 0.0
    %873 = vmatprep.subr.mxu0 0.0
    %874 = vmatpush1.msra.mxu0 0.0
    %875 = vmatprep.subr.mxu0 0.0
    %876 = vmatpush1.msra.mxu0 0.0
    %877 = vmatprep.subr.mxu0 0.0
    %878 = vmatpush1.msra.mxu0 0.0
    %879 = vmatprep.subr.mxu0 0.0
    %880 = vmatpush1.msra.mxu0 0.0
    %881 = vmatprep.subr.mxu0 0.0
    %882 = vmatpush1.msra.mxu0 0.0
    %883 = vmatprep.subr.mxu0 0.0
    %884 = vmatpush1.msra.mxu0 %v150
    %885 = vmatprep.subr.mxu0 0.0
    %886 = vmatpush1.msra.mxu0 %v149
    %887 = vmatprep.subr.mxu0 0.0
    %888 = vmatpush1.msra.mxu0 %v148
    %889 = vmatprep.subr.mxu0 0.0
    %890 = vmatpush1.msra.mxu0 %v147
    %891 = vmatprep.subr.mxu0 0.0
    %892 = vmatpush2.msra.mxu0 0.0
    %893 = vmatprep.subr.mxu0 0.0
    %894 = vmatpush2.msra.mxu0 0.0
    %895 = vmatprep.subr.mxu0 0.0
    %896 = vmatpush2.msra.mxu0 0.0
    %897 = vmatprep.subr.mxu0 0.0
    %898 = vmatpush2.msra.mxu0 0.0
    %899 = vmatprep.subr.mxu0 0.0
    %900 = vmatpush2.msra.mxu0 0.0
    %901 = vmatprep.subr.mxu0 0.0
    %902 = vmatpush2.msra.mxu0 0.0
    %903 = vmatprep.subr.mxu0 0.0
    %904 = vmatpush2.msra.mxu0 0.0
    %905 = vmatprep.subr.mxu0 0.0
    %906 = vmatpush2.msra.mxu0 0.0
    %907 = vmatprep.subr.mxu0 0.0
    %908 = vmatpush2.msra.mxu0 0.0
    %909 = vmatprep.subr.mxu0 0.0
    %910 = vmatpush2.msra.mxu0 0.0
    %911 = vmatprep.subr.mxu0 0.0
    %912 = vmatpush2.msra.mxu0 0.0
    %913 = vmatprep.subr.mxu0 0.0
    %914 = vmatpush2.msra.mxu0 0.0
    %915 = vmatprep.subr.mxu0 0.0
    %916 = vmatpush2.msra.mxu0 0.0
    %917 = vmatprep.subr.mxu0 0.0
    %918 = vmatpush2.msra.mxu0 0.0
    %919 = vmatprep.subr.mxu0 0.0
    %920 = vmatpush2.msra.mxu0 0.0
    %921 = vmatprep.subr.mxu0 0.0
    %922 = vmatpush2.msra.mxu0 0.0
    %923 = vmatprep.mubr.f32.mxu0 0.0
    %924 = vmatmul.mubr.f32.gmra.mxu0 %v857
    %v925 = vpop.f32.mrf.mxu0
    %v926 = vadd.f32 0.0, %v925
    %v927 = vpop.f32.mrf.mxu0
    %928 = vdwg.mxu0
    %v930 = vrot.slane %v926, 7
    %931 = vrot.lane.b32.xlu0 %v930, 16
    %v932 = vpop.permute.xlu0 %931
    %v934 = vadd.f32 %v239, %v932
    %v935 = vmax.f32 %v934, 0.0
    %v937 = vrot.slane %v935, 1
    %938 = vrot.lane.b32.xlu0 %v937, 112
    %v939 = vpop.permute.xlu0 %938
    %v940 = vsel %vm168, %v939, 0
    %942 = vmatprep.subr.mxu0 0.0
    %943 = vmatpush1.msra.mxu0 0.0
    %944 = vmatprep.subr.mxu0 0.0
    %945 = vmatpush1.msra.mxu0 0.0
    %946 = vmatprep.subr.mxu0 0.0
    %947 = vmatpush1.msra.mxu0 0.0
    %948 = vmatprep.subr.mxu0 0.0
    %949 = vmatpush1.msra.mxu0 0.0
    %950 = vmatprep.subr.mxu0 0.0
    %951 = vmatpush1.msra.mxu0 0.0
    %952 = vmatprep.subr.mxu0 0.0
    %953 = vmatpush1.msra.mxu0 0.0
    %954 = vmatprep.subr.mxu0 0.0
    %955 = vmatpush1.msra.mxu0 0.0
    %956 = vmatprep.subr.mxu0 0.0
    %957 = vmatpush1.msra.mxu0 0.0
    %958 = vmatprep.subr.mxu0 0.0
    %959 = vmatpush1.msra.mxu0 0.0
    %960 = vmatprep.subr.mxu0 0.0
    %961 = vmatpush1.msra.mxu0 0.0
    %962 = vmatprep.subr.mxu0 0.0
    %963 = vmatpush1.msra.mxu0 0.0
    %964 = vmatprep.subr.mxu0 0.0
    %965 = vmatpush1.msra.mxu0 0.0
    %966 = vmatprep.subr.mxu0 0.0
    %967 = vmatpush1.msra.mxu0 %v145
    %968 = vmatprep.subr.mxu0 0.0
    %969 = vmatpush1.msra.mxu0 %v144
    %970 = vmatprep.subr.mxu0 0.0
    %971 = vmatpush1.msra.mxu0 %v143
    %972 = vmatprep.subr.mxu0 0.0
    %973 = vmatpush1.msra.mxu0 %v142
    %974 = vmatprep.subr.mxu0 0.0
    %975 = vmatpush2.msra.mxu0 0.0
    %976 = vmatprep.subr.mxu0 0.0
    %977 = vmatpush2.msra.mxu0 0.0
    %978 = vmatprep.subr.mxu0 0.0
    %979 = vmatpush2.msra.mxu0 0.0
    %980 = vmatprep.subr.mxu0 0.0
    %981 = vmatpush2.msra.mxu0 0.0
    %982 = vmatprep.subr.mxu0 0.0
    %983 = vmatpush2.msra.mxu0 0.0
    %984 = vmatprep.subr.mxu0 0.0
    %985 = vmatpush2.msra.mxu0 0.0
    %986 = vmatprep.subr.mxu0 0.0
    %987 = vmatpush2.msra.mxu0 0.0
    %988 = vmatprep.subr.mxu0 0.0
    %989 = vmatpush2.msra.mxu0 0.0
    %990 = vmatprep.subr.mxu0 0.0
    %991 = vmatpush2.msra.mxu0 0.0
    %992 = vmatprep.subr.mxu0 0.0
    %993 = vmatpush2.msra.mxu0 0.0
    %994 = vmatprep.subr.mxu0 0.0
    %995 = vmatpush2.msra.mxu0 0.0
    %996 = vmatprep.subr.mxu0 0.0
    %997 = vmatpush2.msra.mxu0 0.0
    %998 = vmatprep.subr.mxu0 0.0
    %999 = vmatpush2.msra.mxu0 0.0
    %1000 = vmatprep.subr.mxu0 0.0
    %1001 = vmatpush2.msra.mxu0 0.0
    %1002 = vmatprep.subr.mxu0 0.0
    %1003 = vmatpush2.msra.mxu0 0.0
    %1004 = vmatprep.subr.mxu0 0.0
    %1005 = vmatpush2.msra.mxu0 0.0
    %1006 = vmatprep.mubr.f32.mxu0 0.0
    %1007 = vmatmul.mubr.f32.gmra.mxu0 %v940
    %v1008 = vpop.f32.mrf.mxu0
    %v1009 = vadd.f32 %v146, %v1008
    %v1010 = vpop.f32.mrf.mxu0
    %1011 = vdwg.mxu0
    %v1012 = vadd.f32 %v1009, %v761
    %v1013 = vxor.u32 %v1012, 2147483648
    %v1014 = vmul.f32 %v1013, 1.442695
    %v1015 = vpow.pop %v1014
    %v1016 = vadd.f32 %v1015, 1.0
    %v1017 = vrcp.pop %v1016
    %v1018 = vmul.f32 1.0, %v1017
    %1019 = vrot.lane.b32.xlu0 %v761, 64
    %v1020 = vpop.permute.xlu0 %1019
    %v1022 = vmul.f32 %v1018, %v1020
    %1024 = vrot.lane.b32.xlu0 %v1022, 64
    %v1025 = vpop.permute.xlu0 %1024
    %v1027 = vadd.f32 %v1009, %v1025
    %v1028 = vtanh.pop %v1027
    %v1029 = vsub.f32 1.0, %v1018
    %1031 = vrot.lane.b32.xlu0 %v1028, 96
    %v1032 = vpop.permute.xlu0 %1031
    %v1034 = vmul.f32 %v1029, %v1032
    %v1035 = vmul.f32 %v1018, %v592
    %v1036 = vadd.f32 %v1034, %v1035
    %1038 = vrot.lane.b32.xlu0 %v1036, 96
    %v1039 = vpop.permute.xlu0 %1038
    %v1040 = vsel %vm168, %v1039, 0
    %1042 = vmatprep.subr.mxu0 0.0
    %1043 = vmatpush1.msra.mxu0 0.0
    %1044 = vmatprep.subr.mxu0 0.0
    %1045 = vmatpush1.msra.mxu0 0.0
    %1046 = vmatprep.subr.mxu0 0.0
    %1047 = vmatpush1.msra.mxu0 0.0
    %1048 = vmatprep.subr.mxu0 0.0
    %1049 = vmatpush1.msra.mxu0 0.0
    %1050 = vmatprep.subr.mxu0 0.0
    %1051 = vmatpush1.msra.mxu0 0.0
    %1052 = vmatprep.subr.mxu0 0.0
    %1053 = vmatpush1.msra.mxu0 0.0
    %1054 = vmatprep.subr.mxu0 0.0
    %1055 = vmatpush1.msra.mxu0 0.0
    %1056 = vmatprep.subr.mxu0 0.0
    %1057 = vmatpush1.msra.mxu0 0.0
    %1058 = vmatprep.subr.mxu0 0.0
    %1059 = vmatpush1.msra.mxu0 0.0
    %1060 = vmatprep.subr.mxu0 0.0
    %1061 = vmatpush1.msra.mxu0 0.0
    %1062 = vmatprep.subr.mxu0 0.0
    %1063 = vmatpush1.msra.mxu0 0.0
    %1064 = vmatprep.subr.mxu0 0.0
    %1065 = vmatpush1.msra.mxu0 0.0
    %1066 = vmatprep.subr.mxu0 0.0
    %1067 = vmatpush1.msra.mxu0 %v154
    %1068 = vmatprep.subr.mxu0 0.0
    %1069 = vmatpush1.msra.mxu0 %v153
    %1070 = vmatprep.subr.mxu0 0.0
    %1071 = vmatpush1.msra.mxu0 %v152
    %1072 = vmatprep.subr.mxu0 0.0
    %1073 = vmatpush1.msra.mxu0 %v151
    %1074 = vmatprep.subr.mxu0 0.0
    %1075 = vmatpush2.msra.mxu0 0.0
    %1076 = vmatprep.subr.mxu0 0.0
    %1077 = vmatpush2.msra.mxu0 0.0
    %1078 = vmatprep.subr.mxu0 0.0
    %1079 = vmatpush2.msra.mxu0 0.0
    %1080 = vmatprep.subr.mxu0 0.0
    %1081 = vmatpush2.msra.mxu0 0.0
    %1082 = vmatprep.subr.mxu0 0.0
    %1083 = vmatpush2.msra.mxu0 0.0
    %1084 = vmatprep.subr.mxu0 0.0
    %1085 = vmatpush2.msra.mxu0 0.0
    %1086 = vmatprep.subr.mxu0 0.0
    %1087 = vmatpush2.msra.mxu0 0.0
    %1088 = vmatprep.subr.mxu0 0.0
    %1089 = vmatpush2.msra.mxu0 0.0
    %1090 = vmatprep.subr.mxu0 0.0
    %1091 = vmatpush2.msra.mxu0 0.0
    %1092 = vmatprep.subr.mxu0 0.0
    %1093 = vmatpush2.msra.mxu0 0.0
    %1094 = vmatprep.subr.mxu0 0.0
    %1095 = vmatpush2.msra.mxu0 0.0
    %1096 = vmatprep.subr.mxu0 0.0
    %1097 = vmatpush2.msra.mxu0 0.0
    %1098 = vmatprep.subr.mxu0 0.0
    %1099 = vmatpush2.msra.mxu0 0.0
    %1100 = vmatprep.subr.mxu0 0.0
    %1101 = vmatpush2.msra.mxu0 0.0
    %1102 = vmatprep.subr.mxu0 0.0
    %1103 = vmatpush2.msra.mxu0 0.0
    %1104 = vmatprep.subr.mxu0 0.0
    %1105 = vmatpush2.msra.mxu0 0.0
    %1106 = vmatprep.mubr.f32.mxu0 0.0
    %1107 = vmatmul.mubr.f32.gmra.mxu0 %v1040
    %v1108 = vpop.f32.mrf.mxu0
    %v1109 = vadd.f32 %v155, %v1108
    %v1110 = vpop.f32.mrf.mxu0
    %1111 = vdwg.mxu0
    %v1112 = vsel %vm668, %v1109, -inf
    %1113 = vmax.xlane.f32.xlu0 %v1112
    %v1114 = vpop.xlane.xlu0 %1113
    %v1115 = vsub.f32 %v1109, %v1114
    %v1116 = vmul.f32 %v1115, 1.442695
    %v1117 = vpow.pop %v1116
    %v1118 = vsel %vm668, %v1117, 0.0
    %1119 = vadd.xlane.f32.xlu0 %v1118
    %v1120 = vpop.xlane.xlu0 %1119
    %v1121 = vlog2.pop %v1120
    %v1122 = vmul.f32 %v1121, 0.6931472
    %v1123 = vsub.f32 %v1115, %v1122
    %1124 = vrot.lane.b32.xlu0 %v1036, 32
    %v1125 = vpop.permute.xlu0 %1124
    %1127 = vrot.lane.b32.xlu0 %v783, 96
    %v1128 = vpop.permute.xlu0 %1127
    %v1130 = vsel %vm687, %v1123, %v1125
    %v1131 = vsel %vm689, %v1130, %v1128
    %v1132 = vsel %vm691, %v1131, 0.0
    %1133 = vst [vmem:[#allocation14 + $0x1] sm:$0x1] %v1132
    %1134 = vmatprep.subr.mxu0 0.0
    %1135 = vmatpush1.msra.mxu0 0.0
    %1136 = vmatprep.subr.mxu0 0.0
    %1137 = vmatpush1.msra.mxu0 0.0
    %1138 = vmatprep.subr.mxu0 0.0
    %1139 = vmatpush1.msra.mxu0 0.0
    %1140 = vmatprep.subr.mxu0 0.0
    %1141 = vmatpush1.msra.mxu0 0.0
    %1142 = vmatprep.subr.mxu0 0.0
    %1143 = vmatpush1.msra.mxu0 0.0
    %1144 = vmatprep.subr.mxu0 0.0
    %1145 = vmatpush1.msra.mxu0 0.0
    %1146 = vmatprep.subr.mxu0 0.0
    %1147 = vmatpush1.msra.mxu0 0.0
    %1148 = vmatprep.subr.mxu0 0.0
    %1149 = vmatpush1.msra.mxu0 0.0
    %1150 = vmatprep.subr.mxu0 0.0
    %1151 = vmatpush1.msra.mxu0 0.0
    %1152 = vmatprep.subr.mxu0 0.0
    %1153 = vmatpush1.msra.mxu0 0.0
    %1154 = vmatprep.subr.mxu0 0.0
    %1155 = vmatpush1.msra.mxu0 0.0
    %1156 = vmatprep.subr.mxu0 0.0
    %1157 = vmatpush1.msra.mxu0 0.0
    %1158 = vmatprep.subr.mxu0 0.0
    %1159 = vmatpush1.msra.mxu0 %v140
    %1160 = vmatprep.subr.mxu0 0.0
    %1161 = vmatpush1.msra.mxu0 %v139
    %1162 = vmatprep.subr.mxu0 0.0
    %1163 = vmatpush1.msra.mxu0 %v138
    %1164 = vmatprep.subr.mxu0 0.0
    %1165 = vmatpush1.msra.mxu0 %v137
    %1166 = vmatprep.subr.mxu0 0.0
    %1167 = vmatpush2.msra.mxu0 0.0
    %1168 = vmatprep.subr.mxu0 0.0
    %1169 = vmatpush2.msra.mxu0 0.0
    %1170 = vmatprep.subr.mxu0 0.0
    %1171 = vmatpush2.msra.mxu0 0.0
    %1172 = vmatprep.subr.mxu0 0.0
    %1173 = vmatpush2.msra.mxu0 0.0
    %1174 = vmatprep.subr.mxu0 0.0
    %1175 = vmatpush2.msra.mxu0 0.0
    %1176 = vmatprep.subr.mxu0 0.0
    %1177 = vmatpush2.msra.mxu0 0.0
    %1178 = vmatprep.subr.mxu0 0.0
    %1179 = vmatpush2.msra.mxu0 0.0
    %1180 = vmatprep.subr.mxu0 0.0
    %1181 = vmatpush2.msra.mxu0 0.0
    %1182 = vmatprep.subr.mxu0 0.0
    %1183 = vmatpush2.msra.mxu0 0.0
    %1184 = vmatprep.subr.mxu0 0.0
    %1185 = vmatpush2.msra.mxu0 0.0
    %1186 = vmatprep.subr.mxu0 0.0
    %1187 = vmatpush2.msra.mxu0 0.0
    %1188 = vmatprep.subr.mxu0 0.0
    %1189 = vmatpush2.msra.mxu0 0.0
    %1190 = vmatprep.subr.mxu0 0.0
    %1191 = vmatpush2.msra.mxu0 0.0
    %1192 = vmatprep.subr.mxu0 0.0
    %1193 = vmatpush2.msra.mxu0 0.0
    %1194 = vmatprep.subr.mxu0 0.0
    %1195 = vmatpush2.msra.mxu0 0.0
    %1196 = vmatprep.subr.mxu0 0.0
    %1197 = vmatpush2.msra.mxu0 0.0
    %1198 = vmatprep.mubr.f32.mxu0 0.0
    %1199 = vmatmul.mubr.f32.gmra.mxu0 %v1040
    %v1200 = vpop.f32.mrf.mxu0
    %v1201 = vadd.f32 %v141, %v1200
    %v1202 = vpop.f32.mrf.mxu0
    %1203 = vdwg.mxu0
    %v1205 = vrot.slane %v1201, 6
    %1206 = vrot.lane.b32.xlu0 %v1205, 32
    %v1207 = vpop.permute.xlu0 %1206
    %v1209 = vadd.f32 %v239, %v1207
    %vm1210 = vcmask 124930
    %v1211 = vsel %vm1210, %v1209, -inf
    %1212 = vmax.xlane.f32.xlu0 %v1211
    %v1213 = vpop.xlane.xlu0 %1212
    %v1214 = vsub.f32 %v1209, %v1213
    %v1215 = vmul.f32 %v1214, 1.442695
    %v1216 = vpow.pop %v1215
    %v1217 = vsel %vm1210, %v1216, 0.0
    %1218 = vadd.xlane.f32.xlu0 %v1217
    %v1219 = vpop.xlane.xlu0 %1218
    %v1220 = vrcp.pop %v1219
    %v1221 = vmul.f32 %v1216, %v1220
    %v1223 = vrot.slane %v1221, 2
    %v1224 = vsel %vm333, %v1223, 0
    %1226 = vmatprep.subr.mxu0 0.0
    %1227 = vmatpush1.msra.mxu0 0.0
    %1228 = vmatprep.subr.mxu0 0.0
    %1229 = vmatpush1.msra.mxu0 0.0
    %1230 = vmatprep.subr.mxu0 0.0
    %1231 = vmatpush1.msra.mxu0 0.0
    %1232 = vmatprep.subr.mxu0 0.0
    %1233 = vmatpush1.msra.mxu0 0.0
    %1234 = vmatprep.subr.mxu0 0.0
    %1235 = vmatpush1.msra.mxu0 0.0
    %1236 = vmatprep.subr.mxu0 0.0
    %1237 = vmatpush1.msra.mxu0 0.0
    %1238 = vmatprep.subr.mxu0 0.0
    %1239 = vmatpush1.msra.mxu0 0.0
    %1240 = vmatprep.subr.mxu0 0.0
    %1241 = vmatpush1.msra.mxu0 0.0
    %1242 = vmatprep.subr.mxu0 0.0
    %1243 = vmatpush1.msra.mxu0 0.0
    %1244 = vmatprep.subr.mxu0 0.0
    %1245 = vmatpush1.msra.mxu0 0.0
    %1246 = vmatprep.subr.mxu0 0.0
    %1247 = vmatpush1.msra.mxu0 0.0
    %1248 = vmatprep.subr.mxu0 0.0
    %1249 = vmatpush1.msra.mxu0 0.0
    %1250 = vmatprep.subr.mxu0 0.0
    %1251 = vmatpush1.msra.mxu0 0.0
    %1252 = vmatprep.subr.mxu0 0.0
    %1253 = vmatpush1.msra.mxu0 0.0
    %1254 = vmatprep.subr.mxu0 0.0
    %1255 = vmatpush1.msra.mxu0 %v136
    %1256 = vmatprep.subr.mxu0 0.0
    %1257 = vmatpush1.msra.mxu0 %v135
    %1258 = vmatprep.subr.mxu0 0.0
    %1259 = vmatpush2.msra.mxu0 0.0
    %1260 = vmatprep.subr.mxu0 0.0
    %1261 = vmatpush2.msra.mxu0 0.0
    %1262 = vmatprep.subr.mxu0 0.0
    %1263 = vmatpush2.msra.mxu0 0.0
    %1264 = vmatprep.subr.mxu0 0.0
    %1265 = vmatpush2.msra.mxu0 0.0
    %1266 = vmatprep.subr.mxu0 0.0
    %1267 = vmatpush2.msra.mxu0 0.0
    %1268 = vmatprep.subr.mxu0 0.0
    %1269 = vmatpush2.msra.mxu0 0.0
    %1270 = vmatprep.subr.mxu0 0.0
    %1271 = vmatpush2.msra.mxu0 0.0
    %1272 = vmatprep.subr.mxu0 0.0
    %1273 = vmatpush2.msra.mxu0 0.0
    %1274 = vmatprep.subr.mxu0 0.0
    %1275 = vmatpush2.msra.mxu0 0.0
    %1276 = vmatprep.subr.mxu0 0.0
    %1277 = vmatpush2.msra.mxu0 0.0
    %1278 = vmatprep.subr.mxu0 0.0
    %1279 = vmatpush2.msra.mxu0 0.0
    %1280 = vmatprep.subr.mxu0 0.0
    %1281 = vmatpush2.msra.mxu0 0.0
    %1282 = vmatprep.subr.mxu0 0.0
    %1283 = vmatpush2.msra.mxu0 0.0
    %1284 = vmatprep.subr.mxu0 0.0
    %1285 = vmatpush2.msra.mxu0 0.0
    %1286 = vmatprep.subr.mxu0 0.0
    %1287 = vmatpush2.msra.mxu0 0.0
    %1288 = vmatprep.subr.mxu0 0.0
    %1289 = vmatpush2.msra.mxu0 0.0
    %1290 = vmatprep.mubr.f32.mxu0 0.0
    %1291 = vmatmul.mubr.f32.gmra.mxu0 %v1224
    %v1292 = vpop.f32.mrf.mxu0
    %v1293 = vadd.f32 0.0, %v1292
    %v1294 = vpop.f32.mrf.mxu0
    %1295 = vdwg.mxu0
    %v1297 = vsel %vm168, %v1293, 0
    %1299 = vmatprep.subr.mxu0 0.0
    %1300 = vmatpush1.msra.mxu0 0.0
    %1301 = vmatprep.subr.mxu0 0.0
    %1302 = vmatpush1.msra.mxu0 0.0
    %1303 = vmatprep.subr.mxu0 0.0
    %1304 = vmatpush1.msra.mxu0 0.0
    %1305 = vmatprep.subr.mxu0 0.0
    %1306 = vmatpush1.msra.mxu0 0.0
    %1307 = vmatprep.subr.mxu0 0.0
    %1308 = vmatpush1.msra.mxu0 0.0
    %1309 = vmatprep.subr.mxu0 0.0
    %1310 = vmatpush1.msra.mxu0 0.0
    %1311 = vmatprep.subr.mxu0 0.0
    %1312 = vmatpush1.msra.mxu0 0.0
    %1313 = vmatprep.subr.mxu0 0.0
    %1314 = vmatpush1.msra.mxu0 0.0
    %1315 = vmatprep.subr.mxu0 0.0
    %1316 = vmatpush1.msra.mxu0 0.0
    %1317 = vmatprep.subr.mxu0 0.0
    %1318 = vmatpush1.msra.mxu0 0.0
    %1319 = vmatprep.subr.mxu0 0.0
    %1320 = vmatpush1.msra.mxu0 0.0
    %1321 = vmatprep.subr.mxu0 0.0
    %1322 = vmatpush1.msra.mxu0 0.0
    %1323 = vmatprep.subr.mxu0 0.0
    %1324 = vmatpush1.msra.mxu0 %v150
    %1325 = vmatprep.subr.mxu0 0.0
    %1326 = vmatpush1.msra.mxu0 %v149
    %1327 = vmatprep.subr.mxu0 0.0
    %1328 = vmatpush1.msra.mxu0 %v148
    %1329 = vmatprep.subr.mxu0 0.0
    %1330 = vmatpush1.msra.mxu0 %v147
    %1331 = vmatprep.subr.mxu0 0.0
    %1332 = vmatpush2.msra.mxu0 0.0
    %1333 = vmatprep.subr.mxu0 0.0
    %1334 = vmatpush2.msra.mxu0 0.0
    %1335 = vmatprep.subr.mxu0 0.0
    %1336 = vmatpush2.msra.mxu0 0.0
    %1337 = vmatprep.subr.mxu0 0.0
    %1338 = vmatpush2.msra.mxu0 0.0
    %1339 = vmatprep.subr.mxu0 0.0
    %1340 = vmatpush2.msra.mxu0 0.0
    %1341 = vmatprep.subr.mxu0 0.0
    %1342 = vmatpush2.msra.mxu0 0.0
    %1343 = vmatprep.subr.mxu0 0.0
    %1344 = vmatpush2.msra.mxu0 0.0
    %1345 = vmatprep.subr.mxu0 0.0
    %1346 = vmatpush2.msra.mxu0 0.0
    %1347 = vmatprep.subr.mxu0 0.0
    %1348 = vmatpush2.msra.mxu0 0.0
    %1349 = vmatprep.subr.mxu0 0.0
    %1350 = vmatpush2.msra.mxu0 0.0
    %1351 = vmatprep.subr.mxu0 0.0
    %1352 = vmatpush2.msra.mxu0 0.0
    %1353 = vmatprep.subr.mxu0 0.0
    %1354 = vmatpush2.msra.mxu0 0.0
    %1355 = vmatprep.subr.mxu0 0.0
    %1356 = vmatpush2.msra.mxu0 0.0
    %1357 = vmatprep.subr.mxu0 0.0
    %1358 = vmatpush2.msra.mxu0 0.0
    %1359 = vmatprep.subr.mxu0 0.0
    %1360 = vmatpush2.msra.mxu0 0.0
    %1361 = vmatprep.subr.mxu0 0.0
    %1362 = vmatpush2.msra.mxu0 0.0
    %1363 = vmatprep.mubr.f32.mxu0 0.0
    %1364 = vmatmul.mubr.f32.gmra.mxu0 %v1297
    %v1365 = vpop.f32.mrf.mxu0
    %v1366 = vadd.f32 0.0, %v1365
    %v1367 = vpop.f32.mrf.mxu0
    %1368 = vdwg.mxu0
    %v1370 = vrot.slane %v1366, 6
    %1371 = vrot.lane.b32.xlu0 %v1370, 16
    %v1372 = vpop.permute.xlu0 %1371
    %v1374 = vadd.f32 %v239, %v1372
    %v1375 = vmax.f32 %v1374, 0.0
    %v1377 = vrot.slane %v1375, 2
    %1378 = vrot.lane.b32.xlu0 %v1377, 112
    %v1379 = vpop.permute.xlu0 %1378
    %v1380 = vsel %vm168, %v1379, 0
    %1382 = vmatprep.subr.mxu0 0.0
    %1383 = vmatpush1.msra.mxu0 0.0
    %1384 = vmatprep.subr.mxu0 0.0
    %1385 = vmatpush1.msra.mxu0 0.0
    %1386 = vmatprep.subr.mxu0 0.0
    %1387 = vmatpush1.msra.mxu0 0.0
    %1388 = vmatprep.subr.mxu0 0.0
    %1389 = vmatpush1.msra.mxu0 0.0
    %1390 = vmatprep.subr.mxu0 0.0
    %1391 = vmatpush1.msra.mxu0 0.0
    %1392 = vmatprep.subr.mxu0 0.0
    %1393 = vmatpush1.msra.mxu0 0.0
    %1394 = vmatprep.subr.mxu0 0.0
    %1395 = vmatpush1.msra.mxu0 0.0
    %1396 = vmatprep.subr.mxu0 0.0
    %1397 = vmatpush1.msra.mxu0 0.0
    %1398 = vmatprep.subr.mxu0 0.0
    %1399 = vmatpush1.msra.mxu0 0.0
    %1400 = vmatprep.subr.mxu0 0.0
    %1401 = vmatpush1.msra.mxu0 0.0
    %1402 = vmatprep.subr.mxu0 0.0
    %1403 = vmatpush1.msra.mxu0 0.0
    %1404 = vmatprep.subr.mxu0 0.0
    %1405 = vmatpush1.msra.mxu0 0.0
    %1406 = vmatprep.subr.mxu0 0.0
    %1407 = vmatpush1.msra.mxu0 %v145
    %1408 = vmatprep.subr.mxu0 0.0
    %1409 = vmatpush1.msra.mxu0 %v144
    %1410 = vmatprep.subr.mxu0 0.0
    %1411 = vmatpush1.msra.mxu0 %v143
    %1412 = vmatprep.subr.mxu0 0.0
    %1413 = vmatpush1.msra.mxu0 %v142
    %1414 = vmatprep.subr.mxu0 0.0
    %1415 = vmatpush2.msra.mxu0 0.0
    %1416 = vmatprep.subr.mxu0 0.0
    %1417 = vmatpush2.msra.mxu0 0.0
    %1418 = vmatprep.subr.mxu0 0.0
    %1419 = vmatpush2.msra.mxu0 0.0
    %1420 = vmatprep.subr.mxu0 0.0
    %1421 = vmatpush2.msra.mxu0 0.0
    %1422 = vmatprep.subr.mxu0 0.0
    %1423 = vmatpush2.msra.mxu0 0.0
    %1424 = vmatprep.subr.mxu0 0.0
    %1425 = vmatpush2.msra.mxu0 0.0
    %1426 = vmatprep.subr.mxu0 0.0
    %1427 = vmatpush2.msra.mxu0 0.0
    %1428 = vmatprep.subr.mxu0 0.0
    %1429 = vmatpush2.msra.mxu0 0.0
    %1430 = vmatprep.subr.mxu0 0.0
    %1431 = vmatpush2.msra.mxu0 0.0
    %1432 = vmatprep.subr.mxu0 0.0
    %1433 = vmatpush2.msra.mxu0 0.0
    %1434 = vmatprep.subr.mxu0 0.0
    %1435 = vmatpush2.msra.mxu0 0.0
    %1436 = vmatprep.subr.mxu0 0.0
    %1437 = vmatpush2.msra.mxu0 0.0
    %1438 = vmatprep.subr.mxu0 0.0
    %1439 = vmatpush2.msra.mxu0 0.0
    %1440 = vmatprep.subr.mxu0 0.0
    %1441 = vmatpush2.msra.mxu0 0.0
    %1442 = vmatprep.subr.mxu0 0.0
    %1443 = vmatpush2.msra.mxu0 0.0
    %1444 = vmatprep.subr.mxu0 0.0
    %1445 = vmatpush2.msra.mxu0 0.0
    %1446 = vmatprep.mubr.f32.mxu0 0.0
    %1447 = vmatmul.mubr.f32.gmra.mxu0 %v1380
    %v1448 = vpop.f32.mrf.mxu0
    %v1449 = vadd.f32 %v146, %v1448
    %v1450 = vpop.f32.mrf.mxu0
    %1451 = vdwg.mxu0
    %v1452 = vadd.f32 %v1449, %v1201
    %v1453 = vxor.u32 %v1452, 2147483648
    %v1454 = vmul.f32 %v1453, 1.442695
    %v1455 = vpow.pop %v1454
    %v1456 = vadd.f32 %v1455, 1.0
    %v1457 = vrcp.pop %v1456
    %v1458 = vmul.f32 1.0, %v1457
    %1459 = vrot.lane.b32.xlu0 %v1201, 64
    %v1460 = vpop.permute.xlu0 %1459
    %v1462 = vmul.f32 %v1458, %v1460
    %1464 = vrot.lane.b32.xlu0 %v1462, 64
    %v1465 = vpop.permute.xlu0 %1464
    %v1467 = vadd.f32 %v1449, %v1465
    %v1468 = vtanh.pop %v1467
    %v1469 = vsub.f32 1.0, %v1458
    %1471 = vrot.lane.b32.xlu0 %v1468, 96
    %v1472 = vpop.permute.xlu0 %1471
    %v1474 = vmul.f32 %v1469, %v1472
    %v1475 = vmul.f32 %v1458, %v1036
    %v1476 = vadd.f32 %v1474, %v1475
    %1478 = vrot.lane.b32.xlu0 %v1476, 96
    %v1479 = vpop.permute.xlu0 %1478
    %v1480 = vsel %vm168, %v1479, 0
    %1482 = vmatprep.subr.mxu0 0.0
    %1483 = vmatpush1.msra.mxu0 0.0
    %1484 = vmatprep.subr.mxu0 0.0
    %1485 = vmatpush1.msra.mxu0 0.0
    %1486 = vmatprep.subr.mxu0 0.0
    %1487 = vmatpush1.msra.mxu0 0.0
    %1488 = vmatprep.subr.mxu0 0.0
    %1489 = vmatpush1.msra.mxu0 0.0
    %1490 = vmatprep.subr.mxu0 0.0
    %1491 = vmatpush1.msra.mxu0 0.0
    %1492 = vmatprep.subr.mxu0 0.0
    %1493 = vmatpush1.msra.mxu0 0.0
    %1494 = vmatprep.subr.mxu0 0.0
    %1495 = vmatpush1.msra.mxu0 0.0
    %1496 = vmatprep.subr.mxu0 0.0
    %1497 = vmatpush1.msra.mxu0 0.0
    %1498 = vmatprep.subr.mxu0 0.0
    %1499 = vmatpush1.msra.mxu0 0.0
    %1500 = vmatprep.subr.mxu0 0.0
    %1501 = vmatpush1.msra.mxu0 0.0
    %1502 = vmatprep.subr.mxu0 0.0
    %1503 = vmatpush1.msra.mxu0 0.0
    %1504 = vmatprep.subr.mxu0 0.0
    %1505 = vmatpush1.msra.mxu0 0.0
    %1506 = vmatprep.subr.mxu0 0.0
    %1507 = vmatpush1.msra.mxu0 %v154
    %1508 = vmatprep.subr.mxu0 0.0
    %1509 = vmatpush1.msra.mxu0 %v153
    %1510 = vmatprep.subr.mxu0 0.0
    %1511 = vmatpush1.msra.mxu0 %v152
    %1512 = vmatprep.subr.mxu0 0.0
    %1513 = vmatpush1.msra.mxu0 %v151
    %1514 = vmatprep.subr.mxu0 0.0
    %1515 = vmatpush2.msra.mxu0 0.0
    %1516 = vmatprep.subr.mxu0 0.0
    %1517 = vmatpush2.msra.mxu0 0.0
    %1518 = vmatprep.subr.mxu0 0.0
    %1519 = vmatpush2.msra.mxu0 0.0
    %1520 = vmatprep.subr.mxu0 0.0
    %1521 = vmatpush2.msra.mxu0 0.0
    %1522 = vmatprep.subr.mxu0 0.0
    %1523 = vmatpush2.msra.mxu0 0.0
    %1524 = vmatprep.subr.mxu0 0.0
    %1525 = vmatpush2.msra.mxu0 0.0
    %1526 = vmatprep.subr.mxu0 0.0
    %1527 = vmatpush2.msra.mxu0 0.0
    %1528 = vmatprep.subr.mxu0 0.0
    %1529 = vmatpush2.msra.mxu0 0.0
    %1530 = vmatprep.subr.mxu0 0.0
    %1531 = vmatpush2.msra.mxu0 0.0
    %1532 = vmatprep.subr.mxu0 0.0
    %1533 = vmatpush2.msra.mxu0 0.0
    %1534 = vmatprep.subr.mxu0 0.0
    %1535 = vmatpush2.msra.mxu0 0.0
    %1536 = vmatprep.subr.mxu0 0.0
    %1537 = vmatpush2.msra.mxu0 0.0
    %1538 = vmatprep.subr.mxu0 0.0
    %1539 = vmatpush2.msra.mxu0 0.0
    %1540 = vmatprep.subr.mxu0 0.0
    %1541 = vmatpush2.msra.mxu0 0.0
    %1542 = vmatprep.subr.mxu0 0.0
    %1543 = vmatpush2.msra.mxu0 0.0
    %1544 = vmatprep.subr.mxu0 0.0
    %1545 = vmatpush2.msra.mxu0 0.0
    %1546 = vmatprep.mubr.f32.mxu0 0.0
    %1547 = vmatmul.mubr.f32.gmra.mxu0 %v1480
    %v1548 = vpop.f32.mrf.mxu0
    %v1549 = vadd.f32 %v155, %v1548
    %v1550 = vpop.f32.mrf.mxu0
    %1551 = vdwg.mxu0
    %v1552 = vsel %vm668, %v1549, -inf
    %1553 = vmax.xlane.f32.xlu0 %v1552
    %v1554 = vpop.xlane.xlu0 %1553
    %v1555 = vsub.f32 %v1549, %v1554
    %v1556 = vmul.f32 %v1555, 1.442695
    %v1557 = vpow.pop %v1556
    %v1558 = vsel %vm668, %v1557, 0.0
    %1559 = vadd.xlane.f32.xlu0 %v1558
    %v1560 = vpop.xlane.xlu0 %1559
    %v1561 = vlog2.pop %v1560
    %v1562 = vmul.f32 %v1561, 0.6931472
    %v1563 = vsub.f32 %v1555, %v1562
    %1564 = vrot.lane.b32.xlu0 %v1476, 32
    %v1565 = vpop.permute.xlu0 %1564
    %1567 = vrot.lane.b32.xlu0 %v1223, 96
    %v1568 = vpop.permute.xlu0 %1567
    %v1570 = vsel %vm687, %v1563, %v1565
    %v1571 = vsel %vm689, %v1570, %v1568
    %v1572 = vsel %vm691, %v1571, 0.0
    %1573 = vst [vmem:[#allocation14 + $0x2] sm:$0x1] %v1572
    %1574 = vmatprep.subr.mxu0 0.0
    %1575 = vmatpush1.msra.mxu0 0.0
    %1576 = vmatprep.subr.mxu0 0.0
    %1577 = vmatpush1.msra.mxu0 0.0
    %1578 = vmatprep.subr.mxu0 0.0
    %1579 = vmatpush1.msra.mxu0 0.0
    %1580 = vmatprep.subr.mxu0 0.0
    %1581 = vmatpush1.msra.mxu0 0.0
    %1582 = vmatprep.subr.mxu0 0.0
    %1583 = vmatpush1.msra.mxu0 0.0
    %1584 = vmatprep.subr.mxu0 0.0
    %1585 = vmatpush1.msra.mxu0 0.0
    %1586 = vmatprep.subr.mxu0 0.0
    %1587 = vmatpush1.msra.mxu0 0.0
    %1588 = vmatprep.subr.mxu0 0.0
    %1589 = vmatpush1.msra.mxu0 0.0
    %1590 = vmatprep.subr.mxu0 0.0
    %1591 = vmatpush1.msra.mxu0 0.0
    %1592 = vmatprep.subr.mxu0 0.0
    %1593 = vmatpush1.msra.mxu0 0.0
    %1594 = vmatprep.subr.mxu0 0.0
    %1595 = vmatpush1.msra.mxu0 0.0
    %1596 = vmatprep.subr.mxu0 0.0
    %1597 = vmatpush1.msra.mxu0 0.0
    %1598 = vmatprep.subr.mxu0 0.0
    %1599 = vmatpush1.msra.mxu0 %v140
    %1600 = vmatprep.subr.mxu0 0.0
    %1601 = vmatpush1.msra.mxu0 %v139
    %1602 = vmatprep.subr.mxu0 0.0
    %1603 = vmatpush1.msra.mxu0 %v138
    %1604 = vmatprep.subr.mxu0 0.0
    %1605 = vmatpush1.msra.mxu0 %v137
    %1606 = vmatprep.subr.mxu0 0.0
    %1607 = vmatpush2.msra.mxu0 0.0
    %1608 = vmatprep.subr.mxu0 0.0
    %1609 = vmatpush2.msra.mxu0 0.0
    %1610 = vmatprep.subr.mxu0 0.0
    %1611 = vmatpush2.msra.mxu0 0.0
    %1612 = vmatprep.subr.mxu0 0.0
    %1613 = vmatpush2.msra.mxu0 0.0
    %1614 = vmatprep.subr.mxu0 0.0
    %1615 = vmatpush2.msra.mxu0 0.0
    %1616 = vmatprep.subr.mxu0 0.0
    %1617 = vmatpush2.msra.mxu0 0.0
    %1618 = vmatprep.subr.mxu0 0.0
    %1619 = vmatpush2.msra.mxu0 0.0
    %1620 = vmatprep.subr.mxu0 0.0
    %1621 = vmatpush2.msra.mxu0 0.0
    %1622 = vmatprep.subr.mxu0 0.0
    %1623 = vmatpush2.msra.mxu0 0.0
    %1624 = vmatprep.subr.mxu0 0.0
    %1625 = vmatpush2.msra.mxu0 0.0
    %1626 = vmatprep.subr.mxu0 0.0
    %1627 = vmatpush2.msra.mxu0 0.0
    %1628 = vmatprep.subr.mxu0 0.0
    %1629 = vmatpush2.msra.mxu0 0.0
    %1630 = vmatprep.subr.mxu0 0.0
    %1631 = vmatpush2.msra.mxu0 0.0
    %1632 = vmatprep.subr.mxu0 0.0
    %1633 = vmatpush2.msra.mxu0 0.0
    %1634 = vmatprep.subr.mxu0 0.0
    %1635 = vmatpush2.msra.mxu0 0.0
    %1636 = vmatprep.subr.mxu0 0.0
    %1637 = vmatpush2.msra.mxu0 0.0
    %1638 = vmatprep.mubr.f32.mxu0 0.0
    %1639 = vmatmul.mubr.f32.gmra.mxu0 %v1480
    %v1640 = vpop.f32.mrf.mxu0
    %v1641 = vadd.f32 %v141, %v1640
    %v1642 = vpop.f32.mrf.mxu0
    %1643 = vdwg.mxu0
    %v1645 = vrot.slane %v1641, 5
    %1646 = vrot.lane.b32.xlu0 %v1645, 32
    %v1647 = vpop.permute.xlu0 %1646
    %v1649 = vadd.f32 %v239, %v1647
    %vm1650 = vcmask 125955
    %v1651 = vsel %vm1650, %v1649, -inf
    %1652 = vmax.xlane.f32.xlu0 %v1651
    %v1653 = vpop.xlane.xlu0 %1652
    %v1654 = vsub.f32 %v1649, %v1653
    %v1655 = vmul.f32 %v1654, 1.442695
    %v1656 = vpow.pop %v1655
    %v1657 = vsel %vm1650, %v1656, 0.0
    %1658 = vadd.xlane.f32.xlu0 %v1657
    %v1659 = vpop.xlane.xlu0 %1658
    %v1660 = vrcp.pop %v1659
    %v1661 = vmul.f32 %v1656, %v1660
    %v1663 = vrot.slane %v1661, 3
    %v1664 = vsel %vm333, %v1663, 0
    %1666 = vmatprep.subr.mxu0 0.0
    %1667 = vmatpush1.msra.mxu0 0.0
    %1668 = vmatprep.subr.mxu0 0.0
    %1669 = vmatpush1.msra.mxu0 0.0
    %1670 = vmatprep.subr.mxu0 0.0
    %1671 = vmatpush1.msra.mxu0 0.0
    %1672 = vmatprep.subr.mxu0 0.0
    %1673 = vmatpush1.msra.mxu0 0.0
    %1674 = vmatprep.subr.mxu0 0.0
    %1675 = vmatpush1.msra.mxu0 0.0
    %1676 = vmatprep.subr.mxu0 0.0
    %1677 = vmatpush1.msra.mxu0 0.0
    %1678 = vmatprep.subr.mxu0 0.0
    %1679 = vmatpush1.msra.mxu0 0.0
    %1680 = vmatprep.subr.mxu0 0.0
    %1681 = vmatpush1.msra.mxu0 0.0
    %1682 = vmatprep.subr.mxu0 0.0
    %1683 = vmatpush1.msra.mxu0 0.0
    %1684 = vmatprep.subr.mxu0 0.0
    %1685 = vmatpush1.msra.mxu0 0.0
    %1686 = vmatprep.subr.mxu0 0.0
    %1687 = vmatpush1.msra.mxu0 0.0
    %1688 = vmatprep.subr.mxu0 0.0
    %1689 = vmatpush1.msra.mxu0 0.0
    %1690 = vmatprep.subr.mxu0 0.0
    %1691 = vmatpush1.msra.mxu0 0.0
    %1692 = vmatprep.subr.mxu0 0.0
    %1693 = vmatpush1.msra.mxu0 0.0
    %1694 = vmatprep.subr.mxu0 0.0
    %1695 = vmatpush1.msra.mxu0 %v136
    %1696 = vmatprep.subr.mxu0 0.0
    %1697 = vmatpush1.msra.mxu0 %v135
    %1698 = vmatprep.subr.mxu0 0.0
    %1699 = vmatpush2.msra.mxu0 0.0
    %1700 = vmatprep.subr.mxu0 0.0
    %1701 = vmatpush2.msra.mxu0 0.0
    %1702 = vmatprep.subr.mxu0 0.0
    %1703 = vmatpush2.msra.mxu0 0.0
    %1704 = vmatprep.subr.mxu0 0.0
    %1705 = vmatpush2.msra.mxu0 0.0
    %1706 = vmatprep.subr.mxu0 0.0
    %1707 = vmatpush2.msra.mxu0 0.0
    %1708 = vmatprep.subr.mxu0 0.0
    %1709 = vmatpush2.msra.mxu0 0.0
    %1710 = vmatprep.subr.mxu0 0.0
    %1711 = vmatpush2.msra.mxu0 0.0
    %1712 = vmatprep.subr.mxu0 0.0
    %1713 = vmatpush2.msra.mxu0 0.0
    %1714 = vmatprep.subr.mxu0 0.0
    %1715 = vmatpush2.msra.mxu0 0.0
    %1716 = vmatprep.subr.mxu0 0.0
    %1717 = vmatpush2.msra.mxu0 0.0
    %1718 = vmatprep.subr.mxu0 0.0
    %1719 = vmatpush2.msra.mxu0 0.0
    %1720 = vmatprep.subr.mxu0 0.0
    %1721 = vmatpush2.msra.mxu0 0.0
    %1722 = vmatprep.subr.mxu0 0.0
    %1723 = vmatpush2.msra.mxu0 0.0
    %1724 = vmatprep.subr.mxu0 0.0
    %1725 = vmatpush2.msra.mxu0 0.0
    %1726 = vmatprep.subr.mxu0 0.0
    %1727 = vmatpush2.msra.mxu0 0.0
    %1728 = vmatprep.subr.mxu0 0.0
    %1729 = vmatpush2.msra.mxu0 0.0
    %1730 = vmatprep.mubr.f32.mxu0 0.0
    %1731 = vmatmul.mubr.f32.gmra.mxu0 %v1664
    %v1732 = vpop.f32.mrf.mxu0
    %v1733 = vadd.f32 0.0, %v1732
    %v1734 = vpop.f32.mrf.mxu0
    %1735 = vdwg.mxu0
    %v1737 = vsel %vm168, %v1733, 0
    %1739 = vmatprep.subr.mxu0 0.0
    %1740 = vmatpush1.msra.mxu0 0.0
    %1741 = vmatprep.subr.mxu0 0.0
    %1742 = vmatpush1.msra.mxu0 0.0
    %1743 = vmatprep.subr.mxu0 0.0
    %1744 = vmatpush1.msra.mxu0 0.0
    %1745 = vmatprep.subr.mxu0 0.0
    %1746 = vmatpush1.msra.mxu0 0.0
    %1747 = vmatprep.subr.mxu0 0.0
    %1748 = vmatpush1.msra.mxu0 0.0
    %1749 = vmatprep.subr.mxu0 0.0
    %1750 = vmatpush1.msra.mxu0 0.0
    %1751 = vmatprep.subr.mxu0 0.0
    %1752 = vmatpush1.msra.mxu0 0.0
    %1753 = vmatprep.subr.mxu0 0.0
    %1754 = vmatpush1.msra.mxu0 0.0
    %1755 = vmatprep.subr.mxu0 0.0
    %1756 = vmatpush1.msra.mxu0 0.0
    %1757 = vmatprep.subr.mxu0 0.0
    %1758 = vmatpush1.msra.mxu0 0.0
    %1759 = vmatprep.subr.mxu0 0.0
    %1760 = vmatpush1.msra.mxu0 0.0
    %1761 = vmatprep.subr.mxu0 0.0
    %1762 = vmatpush1.msra.mxu0 0.0
    %1763 = vmatprep.subr.mxu0 0.0
    %1764 = vmatpush1.msra.mxu0 %v150
    %1765 = vmatprep.subr.mxu0 0.0
    %1766 = vmatpush1.msra.mxu0 %v149
    %1767 = vmatprep.subr.mxu0 0.0
    %1768 = vmatpush1.msra.mxu0 %v148
    %1769 = vmatprep.subr.mxu0 0.0
    %1770 = vmatpush1.msra.mxu0 %v147
    %1771 = vmatprep.subr.mxu0 0.0
    %1772 = vmatpush2.msra.mxu0 0.0
    %1773 = vmatprep.subr.mxu0 0.0
    %1774 = vmatpush2.msra.mxu0 0.0
    %1775 = vmatprep.subr.mxu0 0.0
    %1776 = vmatpush2.msra.mxu0 0.0
    %1777 = vmatprep.subr.mxu0 0.0
    %1778 = vmatpush2.msra.mxu0 0.0
    %1779 = vmatprep.subr.mxu0 0.0
    %1780 = vmatpush2.msra.mxu0 0.0
    %1781 = vmatprep.subr.mxu0 0.0
    %1782 = vmatpush2.msra.mxu0 0.0
    %1783 = vmatprep.subr.mxu0 0.0
    %1784 = vmatpush2.msra.mxu0 0.0
    %1785 = vmatprep.subr.mxu0 0.0
    %1786 = vmatpush2.msra.mxu0 0.0
    %1787 = vmatprep.subr.mxu0 0.0
    %1788 = vmatpush2.msra.mxu0 0.0
    %1789 = vmatprep.subr.mxu0 0.0
    %1790 = vmatpush2.msra.mxu0 0.0
    %1791 = vmatprep.subr.mxu0 0.0
    %1792 = vmatpush2.msra.mxu0 0.0
    %1793 = vmatprep.subr.mxu0 0.0
    %1794 = vmatpush2.msra.mxu0 0.0
    %1795 = vmatprep.subr.mxu0 0.0
    %1796 = vmatpush2.msra.mxu0 0.0
    %1797 = vmatprep.subr.mxu0 0.0
    %1798 = vmatpush2.msra.mxu0 0.0
    %1799 = vmatprep.subr.mxu0 0.0
    %1800 = vmatpush2.msra.mxu0 0.0
    %1801 = vmatprep.subr.mxu0 0.0
    %1802 = vmatpush2.msra.mxu0 0.0
    %1803 = vmatprep.mubr.f32.mxu0 0.0
    %1804 = vmatmul.mubr.f32.gmra.mxu0 %v1737
    %v1805 = vpop.f32.mrf.mxu0
    %v1806 = vadd.f32 0.0, %v1805
    %v1807 = vpop.f32.mrf.mxu0
    %1808 = vdwg.mxu0
    %v1810 = vrot.slane %v1806, 5
    %1811 = vrot.lane.b32.xlu0 %v1810, 16
    %v1812 = vpop.permute.xlu0 %1811
    %v1814 = vadd.f32 %v239, %v1812
    %v1815 = vmax.f32 %v1814, 0.0
    %v1817 = vrot.slane %v1815, 3
    %1818 = vrot.lane.b32.xlu0 %v1817, 112
    %v1819 = vpop.permute.xlu0 %1818
    %v1820 = vsel %vm168, %v1819, 0
    %1822 = vmatprep.subr.mxu0 0.0
    %1823 = vmatpush1.msra.mxu0 0.0
    %1824 = vmatprep.subr.mxu0 0.0
    %1825 = vmatpush1.msra.mxu0 0.0
    %1826 = vmatprep.subr.mxu0 0.0
    %1827 = vmatpush1.msra.mxu0 0.0
    %1828 = vmatprep.subr.mxu0 0.0
    %1829 = vmatpush1.msra.mxu0 0.0
    %1830 = vmatprep.subr.mxu0 0.0
    %1831 = vmatpush1.msra.mxu0 0.0
    %1832 = vmatprep.subr.mxu0 0.0
    %1833 = vmatpush1.msra.mxu0 0.0
    %1834 = vmatprep.subr.mxu0 0.0
    %1835 = vmatpush1.msra.mxu0 0.0
    %1836 = vmatprep.subr.mxu0 0.0
    %1837 = vmatpush1.msra.mxu0 0.0
    %1838 = vmatprep.subr.mxu0 0.0
    %1839 = vmatpush1.msra.mxu0 0.0
    %1840 = vmatprep.subr.mxu0 0.0
    %1841 = vmatpush1.msra.mxu0 0.0
    %1842 = vmatprep.subr.mxu0 0.0
    %1843 = vmatpush1.msra.mxu0 0.0
    %1844 = vmatprep.subr.mxu0 0.0
    %1845 = vmatpush1.msra.mxu0 0.0
    %1846 = vmatprep.subr.mxu0 0.0
    %1847 = vmatpush1.msra.mxu0 %v145
    %1848 = vmatprep.subr.mxu0 0.0
    %1849 = vmatpush1.msra.mxu0 %v144
    %1850 = vmatprep.subr.mxu0 0.0
    %1851 = vmatpush1.msra.mxu0 %v143
    %1852 = vmatprep.subr.mxu0 0.0
    %1853 = vmatpush1.msra.mxu0 %v142
    %1854 = vmatprep.subr.mxu0 0.0
    %1855 = vmatpush2.msra.mxu0 0.0
    %1856 = vmatprep.subr.mxu0 0.0
    %1857 = vmatpush2.msra.mxu0 0.0
    %1858 = vmatprep.subr.mxu0 0.0
    %1859 = vmatpush2.msra.mxu0 0.0
    %1860 = vmatprep.subr.mxu0 0.0
    %1861 = vmatpush2.msra.mxu0 0.0
    %1862 = vmatprep.subr.mxu0 0.0
    %1863 = vmatpush2.msra.mxu0 0.0
    %1864 = vmatprep.subr.mxu0 0.0
    %1865 = vmatpush2.msra.mxu0 0.0
    %1866 = vmatprep.subr.mxu0 0.0
    %1867 = vmatpush2.msra.mxu0 0.0
    %1868 = vmatprep.subr.mxu0 0.0
    %1869 = vmatpush2.msra.mxu0 0.0
    %1870 = vmatprep.subr.mxu0 0.0
    %1871 = vmatpush2.msra.mxu0 0.0
    %1872 = vmatprep.subr.mxu0 0.0
    %1873 = vmatpush2.msra.mxu0 0.0
    %1874 = vmatprep.subr.mxu0 0.0
    %1875 = vmatpush2.msra.mxu0 0.0
    %1876 = vmatprep.subr.mxu0 0.0
    %1877 = vmatpush2.msra.mxu0 0.0
    %1878 = vmatprep.subr.mxu0 0.0
    %1879 = vmatpush2.msra.mxu0 0.0
    %1880 = vmatprep.subr.mxu0 0.0
    %1881 = vmatpush2.msra.mxu0 0.0
    %1882 = vmatprep.subr.mxu0 0.0
    %1883 = vmatpush2.msra.mxu0 0.0
    %1884 = vmatprep.subr.mxu0 0.0
    %1885 = vmatpush2.msra.mxu0 0.0
    %1886 = vmatprep.mubr.f32.mxu0 0.0
    %1887 = vmatmul.mubr.f32.gmra.mxu0 %v1820
    %v1888 = vpop.f32.mrf.mxu0
    %v1889 = vadd.f32 %v146, %v1888
    %v1890 = vpop.f32.mrf.mxu0
    %1891 = vdwg.mxu0
    %v1892 = vadd.f32 %v1889, %v1641
    %v1893 = vxor.u32 %v1892, 2147483648
    %v1894 = vmul.f32 %v1893, 1.442695
    %v1895 = vpow.pop %v1894
    %v1896 = vadd.f32 %v1895, 1.0
    %v1897 = vrcp.pop %v1896
    %v1898 = vmul.f32 1.0, %v1897
    %1899 = vrot.lane.b32.xlu0 %v1641, 64
    %v1900 = vpop.permute.xlu0 %1899
    %v1902 = vmul.f32 %v1898, %v1900
    %1904 = vrot.lane.b32.xlu0 %v1902, 64
    %v1905 = vpop.permute.xlu0 %1904
    %v1907 = vadd.f32 %v1889, %v1905
    %v1908 = vtanh.pop %v1907
    %v1909 = vsub.f32 1.0, %v1898
    %1911 = vrot.lane.b32.xlu0 %v1908, 96
    %v1912 = vpop.permute.xlu0 %1911
    %v1914 = vmul.f32 %v1909, %v1912
    %v1915 = vmul.f32 %v1898, %v1476
    %v1916 = vadd.f32 %v1914, %v1915
    %1918 = vrot.lane.b32.xlu0 %v1916, 96
    %v1919 = vpop.permute.xlu0 %1918
    %v1920 = vsel %vm168, %v1919, 0
    %1922 = vmatprep.subr.mxu0 0.0
    %1923 = vmatpush1.msra.mxu0 0.0
    %1924 = vmatprep.subr.mxu0 0.0
    %1925 = vmatpush1.msra.mxu0 0.0
    %1926 = vmatprep.subr.mxu0 0.0
    %1927 = vmatpush1.msra.mxu0 0.0
    %1928 = vmatprep.subr.mxu0 0.0
    %1929 = vmatpush1.msra.mxu0 0.0
    %1930 = vmatprep.subr.mxu0 0.0
    %1931 = vmatpush1.msra.mxu0 0.0
    %1932 = vmatprep.subr.mxu0 0.0
    %1933 = vmatpush1.msra.mxu0 0.0
    %1934 = vmatprep.subr.mxu0 0.0
    %1935 = vmatpush1.msra.mxu0 0.0
    %1936 = vmatprep.subr.mxu0 0.0
    %1937 = vmatpush1.msra.mxu0 0.0
    %1938 = vmatprep.subr.mxu0 0.0
    %1939 = vmatpush1.msra.mxu0 0.0
    %1940 = vmatprep.subr.mxu0 0.0
    %1941 = vmatpush1.msra.mxu0 0.0
    %1942 = vmatprep.subr.mxu0 0.0
    %1943 = vmatpush1.msra.mxu0 0.0
    %1944 = vmatprep.subr.mxu0 0.0
    %1945 = vmatpush1.msra.mxu0 0.0
    %1946 = vmatprep.subr.mxu0 0.0
    %1947 = vmatpush1.msra.mxu0 %v154
    %1948 = vmatprep.subr.mxu0 0.0
    %1949 = vmatpush1.msra.mxu0 %v153
    %1950 = vmatprep.subr.mxu0 0.0
    %1951 = vmatpush1.msra.mxu0 %v152
    %1952 = vmatprep.subr.mxu0 0.0
    %1953 = vmatpush1.msra.mxu0 %v151
    %1954 = vmatprep.subr.mxu0 0.0
    %1955 = vmatpush2.msra.mxu0 0.0
    %1956 = vmatprep.subr.mxu0 0.0
    %1957 = vmatpush2.msra.mxu0 0.0
    %1958 = vmatprep.subr.mxu0 0.0
    %1959 = vmatpush2.msra.mxu0 0.0
    %1960 = vmatprep.subr.mxu0 0.0
    %1961 = vmatpush2.msra.mxu0 0.0
    %1962 = vmatprep.subr.mxu0 0.0
    %1963 = vmatpush2.msra.mxu0 0.0
    %1964 = vmatprep.subr.mxu0 0.0
    %1965 = vmatpush2.msra.mxu0 0.0
    %1966 = vmatprep.subr.mxu0 0.0
    %1967 = vmatpush2.msra.mxu0 0.0
    %1968 = vmatprep.subr.mxu0 0.0
    %1969 = vmatpush2.msra.mxu0 0.0
    %1970 = vmatprep.subr.mxu0 0.0
    %1971 = vmatpush2.msra.mxu0 0.0
    %1972 = vmatprep.subr.mxu0 0.0
    %1973 = vmatpush2.msra.mxu0 0.0
    %1974 = vmatprep.subr.mxu0 0.0
    %1975 = vmatpush2.msra.mxu0 0.0
    %1976 = vmatprep.subr.mxu0 0.0
    %1977 = vmatpush2.msra.mxu0 0.0
    %1978 = vmatprep.subr.mxu0 0.0
    %1979 = vmatpush2.msra.mxu0 0.0
    %1980 = vmatprep.subr.mxu0 0.0
    %1981 = vmatpush2.msra.mxu0 0.0
    %1982 = vmatprep.subr.mxu0 0.0
    %1983 = vmatpush2.msra.mxu0 0.0
    %1984 = vmatprep.subr.mxu0 0.0
    %1985 = vmatpush2.msra.mxu0 0.0
    %1986 = vmatprep.mubr.f32.mxu0 0.0
    %1987 = vmatmul.mubr.f32.gmra.mxu0 %v1920
    %v1988 = vpop.f32.mrf.mxu0
    %v1989 = vadd.f32 %v155, %v1988
    %v1990 = vpop.f32.mrf.mxu0
    %1991 = vdwg.mxu0
    %v1992 = vsel %vm668, %v1989, -inf
    %1993 = vmax.xlane.f32.xlu0 %v1992
    %v1994 = vpop.xlane.xlu0 %1993
    %v1995 = vsub.f32 %v1989, %v1994
    %v1996 = vmul.f32 %v1995, 1.442695
    %v1997 = vpow.pop %v1996
    %v1998 = vsel %vm668, %v1997, 0.0
    %1999 = vadd.xlane.f32.xlu0 %v1998
    %v2000 = vpop.xlane.xlu0 %1999
    %v2001 = vlog2.pop %v2000
    %v2002 = vmul.f32 %v2001, 0.6931472
    %v2003 = vsub.f32 %v1995, %v2002
    %2004 = vrot.lane.b32.xlu0 %v1916, 32
    %v2005 = vpop.permute.xlu0 %2004
    %2007 = vrot.lane.b32.xlu0 %v1663, 96
    %v2008 = vpop.permute.xlu0 %2007
    %v2010 = vsel %vm687, %v2003, %v2005
    %v2011 = vsel %vm689, %v2010, %v2008
    %v2012 = vsel %vm691, %v2011, 0.0
    %2013 = vst [vmem:[#allocation14 + $0x3] sm:$0x1] %v2012
    %2014 = vmatprep.subr.mxu0 0.0
    %2015 = vmatpush1.msra.mxu0 0.0
    %2016 = vmatprep.subr.mxu0 0.0
    %2017 = vmatpush1.msra.mxu0 0.0
    %2018 = vmatprep.subr.mxu0 0.0
    %2019 = vmatpush1.msra.mxu0 0.0
    %2020 = vmatprep.subr.mxu0 0.0
    %2021 = vmatpush1.msra.mxu0 0.0
    %2022 = vmatprep.subr.mxu0 0.0
    %2023 = vmatpush1.msra.mxu0 0.0
    %2024 = vmatprep.subr.mxu0 0.0
    %2025 = vmatpush1.msra.mxu0 0.0
    %2026 = vmatprep.subr.mxu0 0.0
    %2027 = vmatpush1.msra.mxu0 0.0
    %2028 = vmatprep.subr.mxu0 0.0
    %2029 = vmatpush1.msra.mxu0 0.0
    %2030 = vmatprep.subr.mxu0 0.0
    %2031 = vmatpush1.msra.mxu0 0.0
    %2032 = vmatprep.subr.mxu0 0.0
    %2033 = vmatpush1.msra.mxu0 0.0
    %2034 = vmatprep.subr.mxu0 0.0
    %2035 = vmatpush1.msra.mxu0 0.0
    %2036 = vmatprep.subr.mxu0 0.0
    %2037 = vmatpush1.msra.mxu0 0.0
    %2038 = vmatprep.subr.mxu0 0.0
    %2039 = vmatpush1.msra.mxu0 %v140
    %2040 = vmatprep.subr.mxu0 0.0
    %2041 = vmatpush1.msra.mxu0 %v139
    %2042 = vmatprep.subr.mxu0 0.0
    %2043 = vmatpush1.msra.mxu0 %v138
    %2044 = vmatprep.subr.mxu0 0.0
    %2045 = vmatpush1.msra.mxu0 %v137
    %2046 = vmatprep.subr.mxu0 0.0
    %2047 = vmatpush2.msra.mxu0 0.0
    %2048 = vmatprep.subr.mxu0 0.0
    %2049 = vmatpush2.msra.mxu0 0.0
    %2050 = vmatprep.subr.mxu0 0.0
    %2051 = vmatpush2.msra.mxu0 0.0
    %2052 = vmatprep.subr.mxu0 0.0
    %2053 = vmatpush2.msra.mxu0 0.0
    %2054 = vmatprep.subr.mxu0 0.0
    %2055 = vmatpush2.msra.mxu0 0.0
    %2056 = vmatprep.subr.mxu0 0.0
    %2057 = vmatpush2.msra.mxu0 0.0
    %2058 = vmatprep.subr.mxu0 0.0
    %2059 = vmatpush2.msra.mxu0 0.0
    %2060 = vmatprep.subr.mxu0 0.0
    %2061 = vmatpush2.msra.mxu0 0.0
    %2062 = vmatprep.subr.mxu0 0.0
    %2063 = vmatpush2.msra.mxu0 0.0
    %2064 = vmatprep.subr.mxu0 0.0
    %2065 = vmatpush2.msra.mxu0 0.0
    %2066 = vmatprep.subr.mxu0 0.0
    %2067 = vmatpush2.msra.mxu0 0.0
    %2068 = vmatprep.subr.mxu0 0.0
    %2069 = vmatpush2.msra.mxu0 0.0
    %2070 = vmatprep.subr.mxu0 0.0
    %2071 = vmatpush2.msra.mxu0 0.0
    %2072 = vmatprep.subr.mxu0 0.0
    %2073 = vmatpush2.msra.mxu0 0.0
    %2074 = vmatprep.subr.mxu0 0.0
    %2075 = vmatpush2.msra.mxu0 0.0
    %2076 = vmatprep.subr.mxu0 0.0
    %2077 = vmatpush2.msra.mxu0 0.0
    %2078 = vmatprep.mubr.f32.mxu0 0.0
    %2079 = vmatmul.mubr.f32.gmra.mxu0 %v1920
    %v2080 = vpop.f32.mrf.mxu0
    %v2081 = vadd.f32 %v141, %v2080
    %v2082 = vpop.f32.mrf.mxu0
    %2083 = vdwg.mxu0
    %v2085 = vrot.slane %v2081, 4
    %2086 = vrot.lane.b32.xlu0 %v2085, 32
    %v2087 = vpop.permute.xlu0 %2086
    %v2089 = vadd.f32 %v239, %v2087
    %vm2090 = vcmask 126980
    %v2091 = vsel %vm2090, %v2089, -inf
    %2092 = vmax.xlane.f32.xlu0 %v2091
    %v2093 = vpop.xlane.xlu0 %2092
    %v2094 = vsub.f32 %v2089, %v2093
    %v2095 = vmul.f32 %v2094, 1.442695
    %v2096 = vpow.pop %v2095
    %v2097 = vsel %vm2090, %v2096, 0.0
    %2098 = vadd.xlane.f32.xlu0 %v2097
    %v2099 = vpop.xlane.xlu0 %2098
    %v2100 = vrcp.pop %v2099
    %v2101 = vmul.f32 %v2096, %v2100
    %v2103 = vrot.slane %v2101, 4
    %v2104 = vsel %vm333, %v2103, 0
    %2106 = vmatprep.subr.mxu0 0.0
    %2107 = vmatpush1.msra.mxu0 0.0
    %2108 = vmatprep.subr.mxu0 0.0
    %2109 = vmatpush1.msra.mxu0 0.0
    %2110 = vmatprep.subr.mxu0 0.0
    %2111 = vmatpush1.msra.mxu0 0.0
    %2112 = vmatprep.subr.mxu0 0.0
    %2113 = vmatpush1.msra.mxu0 0.0
    %2114 = vmatprep.subr.mxu0 0.0
    %2115 = vmatpush1.msra.mxu0 0.0
    %2116 = vmatprep.subr.mxu0 0.0
    %2117 = vmatpush1.msra.mxu0 0.0
    %2118 = vmatprep.subr.mxu0 0.0
    %2119 = vmatpush1.msra.mxu0 0.0
    %2120 = vmatprep.subr.mxu0 0.0
    %2121 = vmatpush1.msra.mxu0 0.0
    %2122 = vmatprep.subr.mxu0 0.0
    %2123 = vmatpush1.msra.mxu0 0.0
    %2124 = vmatprep.subr.mxu0 0.0
    %2125 = vmatpush1.msra.mxu0 0.0
    %2126 = vmatprep.subr.mxu0 0.0
    %2127 = vmatpush1.msra.mxu0 0.0
    %2128 = vmatprep.subr.mxu0 0.0
    %2129 = vmatpush1.msra.mxu0 0.0
    %2130 = vmatprep.subr.mxu0 0.0
    %2131 = vmatpush1.msra.mxu0 0.0
    %2132 = vmatprep.subr.mxu0 0.0
    %2133 = vmatpush1.msra.mxu0 0.0
    %2134 = vmatprep.subr.mxu0 0.0
    %2135 = vmatpush1.msra.mxu0 %v136
    %2136 = vmatprep.subr.mxu0 0.0
    %2137 = vmatpush1.msra.mxu0 %v135
    %2138 = vmatprep.subr.mxu0 0.0
    %2139 = vmatpush2.msra.mxu0 0.0
    %2140 = vmatprep.subr.mxu0 0.0
    %2141 = vmatpush2.msra.mxu0 0.0
    %2142 = vmatprep.subr.mxu0 0.0
    %2143 = vmatpush2.msra.mxu0 0.0
    %2144 = vmatprep.subr.mxu0 0.0
    %2145 = vmatpush2.msra.mxu0 0.0
    %2146 = vmatprep.subr.mxu0 0.0
    %2147 = vmatpush2.msra.mxu0 0.0
    %2148 = vmatprep.subr.mxu0 0.0
    %2149 = vmatpush2.msra.mxu0 0.0
    %2150 = vmatprep.subr.mxu0 0.0
    %2151 = vmatpush2.msra.mxu0 0.0
    %2152 = vmatprep.subr.mxu0 0.0
    %2153 = vmatpush2.msra.mxu0 0.0
    %2154 = vmatprep.subr.mxu0 0.0
    %2155 = vmatpush2.msra.mxu0 0.0
    %2156 = vmatprep.subr.mxu0 0.0
    %2157 = vmatpush2.msra.mxu0 0.0
    %2158 = vmatprep.subr.mxu0 0.0
    %2159 = vmatpush2.msra.mxu0 0.0
    %2160 = vmatprep.subr.mxu0 0.0
    %2161 = vmatpush2.msra.mxu0 0.0
    %2162 = vmatprep.subr.mxu0 0.0
    %2163 = vmatpush2.msra.mxu0 0.0
    %2164 = vmatprep.subr.mxu0 0.0
    %2165 = vmatpush2.msra.mxu0 0.0
    %2166 = vmatprep.subr.mxu0 0.0
    %2167 = vmatpush2.msra.mxu0 0.0
    %2168 = vmatprep.subr.mxu0 0.0
    %2169 = vmatpush2.msra.mxu0 0.0
    %2170 = vmatprep.mubr.f32.mxu0 0.0
    %2171 = vmatmul.mubr.f32.gmra.mxu0 %v2104
    %v2172 = vpop.f32.mrf.mxu0
    %v2173 = vadd.f32 0.0, %v2172
    %v2174 = vpop.f32.mrf.mxu0
    %2175 = vdwg.mxu0
    %v2177 = vsel %vm168, %v2173, 0
    %2179 = vmatprep.subr.mxu0 0.0
    %2180 = vmatpush1.msra.mxu0 0.0
    %2181 = vmatprep.subr.mxu0 0.0
    %2182 = vmatpush1.msra.mxu0 0.0
    %2183 = vmatprep.subr.mxu0 0.0
    %2184 = vmatpush1.msra.mxu0 0.0
    %2185 = vmatprep.subr.mxu0 0.0
    %2186 = vmatpush1.msra.mxu0 0.0
    %2187 = vmatprep.subr.mxu0 0.0
    %2188 = vmatpush1.msra.mxu0 0.0
    %2189 = vmatprep.subr.mxu0 0.0
    %2190 = vmatpush1.msra.mxu0 0.0
    %2191 = vmatprep.subr.mxu0 0.0
    %2192 = vmatpush1.msra.mxu0 0.0
    %2193 = vmatprep.subr.mxu0 0.0
    %2194 = vmatpush1.msra.mxu0 0.0
    %2195 = vmatprep.subr.mxu0 0.0
    %2196 = vmatpush1.msra.mxu0 0.0
    %2197 = vmatprep.subr.mxu0 0.0
    %2198 = vmatpush1.msra.mxu0 0.0
    %2199 = vmatprep.subr.mxu0 0.0
    %2200 = vmatpush1.msra.mxu0 0.0
    %2201 = vmatprep.subr.mxu0 0.0
    %2202 = vmatpush1.msra.mxu0 0.0
    %2203 = vmatprep.subr.mxu0 0.0
    %2204 = vmatpush1.msra.mxu0 %v150
    %2205 = vmatprep.subr.mxu0 0.0
    %2206 = vmatpush1.msra.mxu0 %v149
    %2207 = vmatprep.subr.mxu0 0.0
    %2208 = vmatpush1.msra.mxu0 %v148
    %2209 = vmatprep.subr.mxu0 0.0
    %2210 = vmatpush1.msra.mxu0 %v147
    %2211 = vmatprep.subr.mxu0 0.0
    %2212 = vmatpush2.msra.mxu0 0.0
    %2213 = vmatprep.subr.mxu0 0.0
    %2214 = vmatpush2.msra.mxu0 0.0
    %2215 = vmatprep.subr.mxu0 0.0
    %2216 = vmatpush2.msra.mxu0 0.0
    %2217 = vmatprep.subr.mxu0 0.0
    %2218 = vmatpush2.msra.mxu0 0.0
    %2219 = vmatprep.subr.mxu0 0.0
    %2220 = vmatpush2.msra.mxu0 0.0
    %2221 = vmatprep.subr.mxu0 0.0
    %2222 = vmatpush2.msra.mxu0 0.0
    %2223 = vmatprep.subr.mxu0 0.0
    %2224 = vmatpush2.msra.mxu0 0.0
    %2225 = vmatprep.subr.mxu0 0.0
    %2226 = vmatpush2.msra.mxu0 0.0
    %2227 = vmatprep.subr.mxu0 0.0
    %2228 = vmatpush2.msra.mxu0 0.0
    %2229 = vmatprep.subr.mxu0 0.0
    %2230 = vmatpush2.msra.mxu0 0.0
    %2231 = vmatprep.subr.mxu0 0.0
    %2232 = vmatpush2.msra.mxu0 0.0
    %2233 = vmatprep.subr.mxu0 0.0
    %2234 = vmatpush2.msra.mxu0 0.0
    %2235 = vmatprep.subr.mxu0 0.0
    %2236 = vmatpush2.msra.mxu0 0.0
    %2237 = vmatprep.subr.mxu0 0.0
    %2238 = vmatpush2.msra.mxu0 0.0
    %2239 = vmatprep.subr.mxu0 0.0
    %2240 = vmatpush2.msra.mxu0 0.0
    %2241 = vmatprep.subr.mxu0 0.0
    %2242 = vmatpush2.msra.mxu0 0.0
    %2243 = vmatprep.mubr.f32.mxu0 0.0
    %2244 = vmatmul.mubr.f32.gmra.mxu0 %v2177
    %v2245 = vpop.f32.mrf.mxu0
    %v2246 = vadd.f32 0.0, %v2245
    %v2247 = vpop.f32.mrf.mxu0
    %2248 = vdwg.mxu0
    %v2250 = vrot.slane %v2246, 4
    %2251 = vrot.lane.b32.xlu0 %v2250, 16
    %v2252 = vpop.permute.xlu0 %2251
    %v2254 = vadd.f32 %v239, %v2252
    %v2255 = vmax.f32 %v2254, 0.0
    %v2257 = vrot.slane %v2255, 4
    %2258 = vrot.lane.b32.xlu0 %v2257, 112
    %v2259 = vpop.permute.xlu0 %2258
    %v2260 = vsel %vm168, %v2259, 0
    %2262 = vmatprep.subr.mxu0 0.0
    %2263 = vmatpush1.msra.mxu0 0.0
    %2264 = vmatprep.subr.mxu0 0.0
    %2265 = vmatpush1.msra.mxu0 0.0
    %2266 = vmatprep.subr.mxu0 0.0
    %2267 = vmatpush1.msra.mxu0 0.0
    %2268 = vmatprep.subr.mxu0 0.0
    %2269 = vmatpush1.msra.mxu0 0.0
    %2270 = vmatprep.subr.mxu0 0.0
    %2271 = vmatpush1.msra.mxu0 0.0
    %2272 = vmatprep.subr.mxu0 0.0
    %2273 = vmatpush1.msra.mxu0 0.0
    %2274 = vmatprep.subr.mxu0 0.0
    %2275 = vmatpush1.msra.mxu0 0.0
    %2276 = vmatprep.subr.mxu0 0.0
    %2277 = vmatpush1.msra.mxu0 0.0
    %2278 = vmatprep.subr.mxu0 0.0
    %2279 = vmatpush1.msra.mxu0 0.0
    %2280 = vmatprep.subr.mxu0 0.0
    %2281 = vmatpush1.msra.mxu0 0.0
    %2282 = vmatprep.subr.mxu0 0.0
    %2283 = vmatpush1.msra.mxu0 0.0
    %2284 = vmatprep.subr.mxu0 0.0
    %2285 = vmatpush1.msra.mxu0 0.0
    %2286 = vmatprep.subr.mxu0 0.0
    %2287 = vmatpush1.msra.mxu0 %v145
    %2288 = vmatprep.subr.mxu0 0.0
    %2289 = vmatpush1.msra.mxu0 %v144
    %2290 = vmatprep.subr.mxu0 0.0
    %2291 = vmatpush1.msra.mxu0 %v143
    %2292 = vmatprep.subr.mxu0 0.0
    %2293 = vmatpush1.msra.mxu0 %v142
    %2294 = vmatprep.subr.mxu0 0.0
    %2295 = vmatpush2.msra.mxu0 0.0
    %2296 = vmatprep.subr.mxu0 0.0
    %2297 = vmatpush2.msra.mxu0 0.0
    %2298 = vmatprep.subr.mxu0 0.0
    %2299 = vmatpush2.msra.mxu0 0.0
    %2300 = vmatprep.subr.mxu0 0.0
    %2301 = vmatpush2.msra.mxu0 0.0
    %2302 = vmatprep.subr.mxu0 0.0
    %2303 = vmatpush2.msra.mxu0 0.0
    %2304 = vmatprep.subr.mxu0 0.0
    %2305 = vmatpush2.msra.mxu0 0.0
    %2306 = vmatprep.subr.mxu0 0.0
    %2307 = vmatpush2.msra.mxu0 0.0
    %2308 = vmatprep.subr.mxu0 0.0
    %2309 = vmatpush2.msra.mxu0 0.0
    %2310 = vmatprep.subr.mxu0 0.0
    %2311 = vmatpush2.msra.mxu0 0.0
    %2312 = vmatprep.subr.mxu0 0.0
    %2313 = vmatpush2.msra.mxu0 0.0
    %2314 = vmatprep.subr.mxu0 0.0
    %2315 = vmatpush2.msra.mxu0 0.0
    %2316 = vmatprep.subr.mxu0 0.0
    %2317 = vmatpush2.msra.mxu0 0.0
    %2318 = vmatprep.subr.mxu0 0.0
    %2319 = vmatpush2.msra.mxu0 0.0
    %2320 = vmatprep.subr.mxu0 0.0
    %2321 = vmatpush2.msra.mxu0 0.0
    %2322 = vmatprep.subr.mxu0 0.0
    %2323 = vmatpush2.msra.mxu0 0.0
    %2324 = vmatprep.subr.mxu0 0.0
    %2325 = vmatpush2.msra.mxu0 0.0
    %2326 = vmatprep.mubr.f32.mxu0 0.0
    %2327 = vmatmul.mubr.f32.gmra.mxu0 %v2260
    %v2328 = vpop.f32.mrf.mxu0
    %v2329 = vadd.f32 %v146, %v2328
    %v2330 = vpop.f32.mrf.mxu0
    %2331 = vdwg.mxu0
    %v2332 = vadd.f32 %v2329, %v2081
    %v2333 = vxor.u32 %v2332, 2147483648
    %v2334 = vmul.f32 %v2333, 1.442695
    %v2335 = vpow.pop %v2334
    %v2336 = vadd.f32 %v2335, 1.0
    %v2337 = vrcp.pop %v2336
    %v2338 = vmul.f32 1.0, %v2337
    %2339 = vrot.lane.b32.xlu0 %v2081, 64
    %v2340 = vpop.permute.xlu0 %2339
    %v2342 = vmul.f32 %v2338, %v2340
    %2344 = vrot.lane.b32.xlu0 %v2342, 64
    %v2345 = vpop.permute.xlu0 %2344
    %v2347 = vadd.f32 %v2329, %v2345
    %v2348 = vtanh.pop %v2347
    %v2349 = vsub.f32 1.0, %v2338
    %2351 = vrot.lane.b32.xlu0 %v2348, 96
    %v2352 = vpop.permute.xlu0 %2351
    %v2354 = vmul.f32 %v2349, %v2352
    %v2355 = vmul.f32 %v2338, %v1916
    %v2356 = vadd.f32 %v2354, %v2355
    %2358 = vrot.lane.b32.xlu0 %v2356, 96
    %v2359 = vpop.permute.xlu0 %2358
    %v2360 = vsel %vm168, %v2359, 0
    %2362 = vmatprep.subr.mxu0 0.0
    %2363 = vmatpush1.msra.mxu0 0.0
    %2364 = vmatprep.subr.mxu0 0.0
    %2365 = vmatpush1.msra.mxu0 0.0
    %2366 = vmatprep.subr.mxu0 0.0
    %2367 = vmatpush1.msra.mxu0 0.0
    %2368 = vmatprep.subr.mxu0 0.0
    %2369 = vmatpush1.msra.mxu0 0.0
    %2370 = vmatprep.subr.mxu0 0.0
    %2371 = vmatpush1.msra.mxu0 0.0
    %2372 = vmatprep.subr.mxu0 0.0
    %2373 = vmatpush1.msra.mxu0 0.0
    %2374 = vmatprep.subr.mxu0 0.0
    %2375 = vmatpush1.msra.mxu0 0.0
    %2376 = vmatprep.subr.mxu0 0.0
    %2377 = vmatpush1.msra.mxu0 0.0
    %2378 = vmatprep.subr.mxu0 0.0
    %2379 = vmatpush1.msra.mxu0 0.0
    %2380 = vmatprep.subr.mxu0 0.0
    %2381 = vmatpush1.msra.mxu0 0.0
    %2382 = vmatprep.subr.mxu0 0.0
    %2383 = vmatpush1.msra.mxu0 0.0
    %2384 = vmatprep.subr.mxu0 0.0
    %2385 = vmatpush1.msra.mxu0 0.0
    %2386 = vmatprep.subr.mxu0 0.0
    %2387 = vmatpush1.msra.mxu0 %v154
    %2388 = vmatprep.subr.mxu0 0.0
    %2389 = vmatpush1.msra.mxu0 %v153
    %2390 = vmatprep.subr.mxu0 0.0
    %2391 = vmatpush1.msra.mxu0 %v152
    %2392 = vmatprep.subr.mxu0 0.0
    %2393 = vmatpush1.msra.mxu0 %v151
    %2394 = vmatprep.subr.mxu0 0.0
    %2395 = vmatpush2.msra.mxu0 0.0
    %2396 = vmatprep.subr.mxu0 0.0
    %2397 = vmatpush2.msra.mxu0 0.0
    %2398 = vmatprep.subr.mxu0 0.0
    %2399 = vmatpush2.msra.mxu0 0.0
    %2400 = vmatprep.subr.mxu0 0.0
    %2401 = vmatpush2.msra.mxu0 0.0
    %2402 = vmatprep.subr.mxu0 0.0
    %2403 = vmatpush2.msra.mxu0 0.0
    %2404 = vmatprep.subr.mxu0 0.0
    %2405 = vmatpush2.msra.mxu0 0.0
    %2406 = vmatprep.subr.mxu0 0.0
    %2407 = vmatpush2.msra.mxu0 0.0
    %2408 = vmatprep.subr.mxu0 0.0
    %2409 = vmatpush2.msra.mxu0 0.0
    %2410 = vmatprep.subr.mxu0 0.0
    %2411 = vmatpush2.msra.mxu0 0.0
    %2412 = vmatprep.subr.mxu0 0.0
    %2413 = vmatpush2.msra.mxu0 0.0
    %2414 = vmatprep.subr.mxu0 0.0
    %2415 = vmatpush2.msra.mxu0 0.0
    %2416 = vmatprep.subr.mxu0 0.0
    %2417 = vmatpush2.msra.mxu0 0.0
    %2418 = vmatprep.subr.mxu0 0.0
    %2419 = vmatpush2.msra.mxu0 0.0
    %2420 = vmatprep.subr.mxu0 0.0
    %2421 = vmatpush2.msra.mxu0 0.0
    %2422 = vmatprep.subr.mxu0 0.0
    %2423 = vmatpush2.msra.mxu0 0.0
    %2424 = vmatprep.subr.mxu0 0.0
    %2425 = vmatpush2.msra.mxu0 0.0
    %2426 = vmatprep.mubr.f32.mxu0 0.0
    %2427 = vmatmul.mubr.f32.gmra.mxu0 %v2360
    %v2428 = vpop.f32.mrf.mxu0
    %v2429 = vadd.f32 %v155, %v2428
    %v2430 = vpop.f32.mrf.mxu0
    %2431 = vdwg.mxu0
    %v2432 = vsel %vm668, %v2429, -inf
    %2433 = vmax.xlane.f32.xlu0 %v2432
    %v2434 = vpop.xlane.xlu0 %2433
    %v2435 = vsub.f32 %v2429, %v2434
    %v2436 = vmul.f32 %v2435, 1.442695
    %v2437 = vpow.pop %v2436
    %v2438 = vsel %vm668, %v2437, 0.0
    %2439 = vadd.xlane.f32.xlu0 %v2438
    %v2440 = vpop.xlane.xlu0 %2439
    %v2441 = vlog2.pop %v2440
    %v2442 = vmul.f32 %v2441, 0.6931472
    %v2443 = vsub.f32 %v2435, %v2442
    %2444 = vrot.lane.b32.xlu0 %v2356, 32
    %v2445 = vpop.permute.xlu0 %2444
    %2447 = vrot.lane.b32.xlu0 %v2103, 96
    %v2448 = vpop.permute.xlu0 %2447
    %v2450 = vsel %vm687, %v2443, %v2445
    %v2451 = vsel %vm689, %v2450, %v2448
    %v2452 = vsel %vm691, %v2451, 0.0
    %2453 = vst [vmem:[#allocation14 + $0x4] sm:$0x1] %v2452
    %2454 = vmatprep.subr.mxu0 0.0
    %2455 = vmatpush1.msra.mxu0 0.0
    %2456 = vmatprep.subr.mxu0 0.0
    %2457 = vmatpush1.msra.mxu0 0.0
    %2458 = vmatprep.subr.mxu0 0.0
    %2459 = vmatpush1.msra.mxu0 0.0
    %2460 = vmatprep.subr.mxu0 0.0
    %2461 = vmatpush1.msra.mxu0 0.0
    %2462 = vmatprep.subr.mxu0 0.0
    %2463 = vmatpush1.msra.mxu0 0.0
    %2464 = vmatprep.subr.mxu0 0.0
    %2465 = vmatpush1.msra.mxu0 0.0
    %2466 = vmatprep.subr.mxu0 0.0
    %2467 = vmatpush1.msra.mxu0 0.0
    %2468 = vmatprep.subr.mxu0 0.0
    %2469 = vmatpush1.msra.mxu0 0.0
    %2470 = vmatprep.subr.mxu0 0.0
    %2471 = vmatpush1.msra.mxu0 0.0
    %2472 = vmatprep.subr.mxu0 0.0
    %2473 = vmatpush1.msra.mxu0 0.0
    %2474 = vmatprep.subr.mxu0 0.0
    %2475 = vmatpush1.msra.mxu0 0.0
    %2476 = vmatprep.subr.mxu0 0.0
    %2477 = vmatpush1.msra.mxu0 0.0
    %2478 = vmatprep.subr.mxu0 0.0
    %2479 = vmatpush1.msra.mxu0 %v140
    %2480 = vmatprep.subr.mxu0 0.0
    %2481 = vmatpush1.msra.mxu0 %v139
    %2482 = vmatprep.subr.mxu0 0.0
    %2483 = vmatpush1.msra.mxu0 %v138
    %2484 = vmatprep.subr.mxu0 0.0
    %2485 = vmatpush1.msra.mxu0 %v137
    %2486 = vmatprep.subr.mxu0 0.0
    %2487 = vmatpush2.msra.mxu0 0.0
    %2488 = vmatprep.subr.mxu0 0.0
    %2489 = vmatpush2.msra.mxu0 0.0
    %2490 = vmatprep.subr.mxu0 0.0
    %2491 = vmatpush2.msra.mxu0 0.0
    %2492 = vmatprep.subr.mxu0 0.0
    %2493 = vmatpush2.msra.mxu0 0.0
    %2494 = vmatprep.subr.mxu0 0.0
    %2495 = vmatpush2.msra.mxu0 0.0
    %2496 = vmatprep.subr.mxu0 0.0
    %2497 = vmatpush2.msra.mxu0 0.0
    %2498 = vmatprep.subr.mxu0 0.0
    %2499 = vmatpush2.msra.mxu0 0.0
    %2500 = vmatprep.subr.mxu0 0.0
    %2501 = vmatpush2.msra.mxu0 0.0
    %2502 = vmatprep.subr.mxu0 0.0
    %2503 = vmatpush2.msra.mxu0 0.0
    %2504 = vmatprep.subr.mxu0 0.0
    %2505 = vmatpush2.msra.mxu0 0.0
    %2506 = vmatprep.subr.mxu0 0.0
    %2507 = vmatpush2.msra.mxu0 0.0
    %2508 = vmatprep.subr.mxu0 0.0
    %2509 = vmatpush2.msra.mxu0 0.0
    %2510 = vmatprep.subr.mxu0 0.0
    %2511 = vmatpush2.msra.mxu0 0.0
    %2512 = vmatprep.subr.mxu0 0.0
    %2513 = vmatpush2.msra.mxu0 0.0
    %2514 = vmatprep.subr.mxu0 0.0
    %2515 = vmatpush2.msra.mxu0 0.0
    %2516 = vmatprep.subr.mxu0 0.0
    %2517 = vmatpush2.msra.mxu0 0.0
    %2518 = vmatprep.mubr.f32.mxu0 0.0
    %2519 = vmatmul.mubr.f32.gmra.mxu0 %v2360
    %v2520 = vpop.f32.mrf.mxu0
    %v2521 = vadd.f32 %v141, %v2520
    %v2522 = vpop.f32.mrf.mxu0
    %2523 = vdwg.mxu0
    %v2525 = vrot.slane %v2521, 3
    %2526 = vrot.lane.b32.xlu0 %v2525, 32
    %v2527 = vpop.permute.xlu0 %2526
    %v2529 = vadd.f32 %v239, %v2527
    %vm2530 = vcmask 128005
    %v2531 = vsel %vm2530, %v2529, -inf
    %2532 = vmax.xlane.f32.xlu0 %v2531
    %v2533 = vpop.xlane.xlu0 %2532
    %v2534 = vsub.f32 %v2529, %v2533
    %v2535 = vmul.f32 %v2534, 1.442695
    %v2536 = vpow.pop %v2535
    %v2537 = vsel %vm2530, %v2536, 0.0
    %2538 = vadd.xlane.f32.xlu0 %v2537
    %v2539 = vpop.xlane.xlu0 %2538
    %v2540 = vrcp.pop %v2539
    %v2541 = vmul.f32 %v2536, %v2540
    %v2543 = vrot.slane %v2541, 5
    %v2544 = vsel %vm333, %v2543, 0
    %2546 = vmatprep.subr.mxu0 0.0
    %2547 = vmatpush1.msra.mxu0 0.0
    %2548 = vmatprep.subr.mxu0 0.0
    %2549 = vmatpush1.msra.mxu0 0.0
    %2550 = vmatprep.subr.mxu0 0.0
    %2551 = vmatpush1.msra.mxu0 0.0
    %2552 = vmatprep.subr.mxu0 0.0
    %2553 = vmatpush1.msra.mxu0 0.0
    %2554 = vmatprep.subr.mxu0 0.0
    %2555 = vmatpush1.msra.mxu0 0.0
    %2556 = vmatprep.subr.mxu0 0.0
    %2557 = vmatpush1.msra.mxu0 0.0
    %2558 = vmatprep.subr.mxu0 0.0
    %2559 = vmatpush1.msra.mxu0 0.0
    %2560 = vmatprep.subr.mxu0 0.0
    %2561 = vmatpush1.msra.mxu0 0.0
    %2562 = vmatprep.subr.mxu0 0.0
    %2563 = vmatpush1.msra.mxu0 0.0
    %2564 = vmatprep.subr.mxu0 0.0
    %2565 = vmatpush1.msra.mxu0 0.0
    %2566 = vmatprep.subr.mxu0 0.0
    %2567 = vmatpush1.msra.mxu0 0.0
    %2568 = vmatprep.subr.mxu0 0.0
    %2569 = vmatpush1.msra.mxu0 0.0
    %2570 = vmatprep.subr.mxu0 0.0
    %2571 = vmatpush1.msra.mxu0 0.0
    %2572 = vmatprep.subr.mxu0 0.0
    %2573 = vmatpush1.msra.mxu0 0.0
    %2574 = vmatprep.subr.mxu0 0.0
    %2575 = vmatpush1.msra.mxu0 %v136
    %2576 = vmatprep.subr.mxu0 0.0
    %2577 = vmatpush1.msra.mxu0 %v135
    %2578 = vmatprep.subr.mxu0 0.0
    %2579 = vmatpush2.msra.mxu0 0.0
    %2580 = vmatprep.subr.mxu0 0.0
    %2581 = vmatpush2.msra.mxu0 0.0
    %2582 = vmatprep.subr.mxu0 0.0
    %2583 = vmatpush2.msra.mxu0 0.0
    %2584 = vmatprep.subr.mxu0 0.0
    %2585 = vmatpush2.msra.mxu0 0.0
    %2586 = vmatprep.subr.mxu0 0.0
    %2587 = vmatpush2.msra.mxu0 0.0
    %2588 = vmatprep.subr.mxu0 0.0
    %2589 = vmatpush2.msra.mxu0 0.0
    %2590 = vmatprep.subr.mxu0 0.0
    %2591 = vmatpush2.msra.mxu0 0.0
    %2592 = vmatprep.subr.mxu0 0.0
    %2593 = vmatpush2.msra.mxu0 0.0
    %2594 = vmatprep.subr.mxu0 0.0
    %2595 = vmatpush2.msra.mxu0 0.0
    %2596 = vmatprep.subr.mxu0 0.0
    %2597 = vmatpush2.msra.mxu0 0.0
    %2598 = vmatprep.subr.mxu0 0.0
    %2599 = vmatpush2.msra.mxu0 0.0
    %2600 = vmatprep.subr.mxu0 0.0
    %2601 = vmatpush2.msra.mxu0 0.0
    %2602 = vmatprep.subr.mxu0 0.0
    %2603 = vmatpush2.msra.mxu0 0.0
    %2604 = vmatprep.subr.mxu0 0.0
    %2605 = vmatpush2.msra.mxu0 0.0
    %2606 = vmatprep.subr.mxu0 0.0
    %2607 = vmatpush2.msra.mxu0 0.0
    %2608 = vmatprep.subr.mxu0 0.0
    %2609 = vmatpush2.msra.mxu0 0.0
    %2610 = vmatprep.mubr.f32.mxu0 0.0
    %2611 = vmatmul.mubr.f32.gmra.mxu0 %v2544
    %v2612 = vpop.f32.mrf.mxu0
    %v2613 = vadd.f32 0.0, %v2612
    %v2614 = vpop.f32.mrf.mxu0
    %2615 = vdwg.mxu0
    %v2617 = vsel %vm168, %v2613, 0
    %2619 = vmatprep.subr.mxu0 0.0
    %2620 = vmatpush1.msra.mxu0 0.0
    %2621 = vmatprep.subr.mxu0 0.0
    %2622 = vmatpush1.msra.mxu0 0.0
    %2623 = vmatprep.subr.mxu0 0.0
    %2624 = vmatpush1.msra.mxu0 0.0
    %2625 = vmatprep.subr.mxu0 0.0
    %2626 = vmatpush1.msra.mxu0 0.0
    %2627 = vmatprep.subr.mxu0 0.0
    %2628 = vmatpush1.msra.mxu0 0.0
    %2629 = vmatprep.subr.mxu0 0.0
    %2630 = vmatpush1.msra.mxu0 0.0
    %2631 = vmatprep.subr.mxu0 0.0
    %2632 = vmatpush1.msra.mxu0 0.0
    %2633 = vmatprep.subr.mxu0 0.0
    %2634 = vmatpush1.msra.mxu0 0.0
    %2635 = vmatprep.subr.mxu0 0.0
    %2636 = vmatpush1.msra.mxu0 0.0
    %2637 = vmatprep.subr.mxu0 0.0
    %2638 = vmatpush1.msra.mxu0 0.0
    %2639 = vmatprep.subr.mxu0 0.0
    %2640 = vmatpush1.msra.mxu0 0.0
    %2641 = vmatprep.subr.mxu0 0.0
    %2642 = vmatpush1.msra.mxu0 0.0
    %2643 = vmatprep.subr.mxu0 0.0
    %2644 = vmatpush1.msra.mxu0 %v150
    %2645 = vmatprep.subr.mxu0 0.0
    %2646 = vmatpush1.msra.mxu0 %v149
    %2647 = vmatprep.subr.mxu0 0.0
    %2648 = vmatpush1.msra.mxu0 %v148
    %2649 = vmatprep.subr.mxu0 0.0
    %2650 = vmatpush1.msra.mxu0 %v147
    %2651 = vmatprep.subr.mxu0 0.0
    %2652 = vmatpush2.msra.mxu0 0.0
    %2653 = vmatprep.subr.mxu0 0.0
    %2654 = vmatpush2.msra.mxu0 0.0
    %2655 = vmatprep.subr.mxu0 0.0
    %2656 = vmatpush2.msra.mxu0 0.0
    %2657 = vmatprep.subr.mxu0 0.0
    %2658 = vmatpush2.msra.mxu0 0.0
    %2659 = vmatprep.subr.mxu0 0.0
    %2660 = vmatpush2.msra.mxu0 0.0
    %2661 = vmatprep.subr.mxu0 0.0
    %2662 = vmatpush2.msra.mxu0 0.0
    %2663 = vmatprep.subr.mxu0 0.0
    %2664 = vmatpush2.msra.mxu0 0.0
    %2665 = vmatprep.subr.mxu0 0.0
    %2666 = vmatpush2.msra.mxu0 0.0
    %2667 = vmatprep.subr.mxu0 0.0
    %2668 = vmatpush2.msra.mxu0 0.0
    %2669 = vmatprep.subr.mxu0 0.0
    %2670 = vmatpush2.msra.mxu0 0.0
    %2671 = vmatprep.subr.mxu0 0.0
    %2672 = vmatpush2.msra.mxu0 0.0
    %2673 = vmatprep.subr.mxu0 0.0
    %2674 = vmatpush2.msra.mxu0 0.0
    %2675 = vmatprep.subr.mxu0 0.0
    %2676 = vmatpush2.msra.mxu0 0.0
    %2677 = vmatprep.subr.mxu0 0.0
    %2678 = vmatpush2.msra.mxu0 0.0
    %2679 = vmatprep.subr.mxu0 0.0
    %2680 = vmatpush2.msra.mxu0 0.0
    %2681 = vmatprep.subr.mxu0 0.0
    %2682 = vmatpush2.msra.mxu0 0.0
    %2683 = vmatprep.mubr.f32.mxu0 0.0
    %2684 = vmatmul.mubr.f32.gmra.mxu0 %v2617
    %v2685 = vpop.f32.mrf.mxu0
    %v2686 = vadd.f32 0.0, %v2685
    %v2687 = vpop.f32.mrf.mxu0
    %2688 = vdwg.mxu0
    %v2690 = vrot.slane %v2686, 3
    %2691 = vrot.lane.b32.xlu0 %v2690, 16
    %v2692 = vpop.permute.xlu0 %2691
    %v2694 = vadd.f32 %v239, %v2692
    %v2695 = vmax.f32 %v2694, 0.0
    %v2697 = vrot.slane %v2695, 5
    %2698 = vrot.lane.b32.xlu0 %v2697, 112
    %v2699 = vpop.permute.xlu0 %2698
    %v2700 = vsel %vm168, %v2699, 0
    %2702 = vmatprep.subr.mxu0 0.0
    %2703 = vmatpush1.msra.mxu0 0.0
    %2704 = vmatprep.subr.mxu0 0.0
    %2705 = vmatpush1.msra.mxu0 0.0
    %2706 = vmatprep.subr.mxu0 0.0
    %2707 = vmatpush1.msra.mxu0 0.0
    %2708 = vmatprep.subr.mxu0 0.0
    %2709 = vmatpush1.msra.mxu0 0.0
    %2710 = vmatprep.subr.mxu0 0.0
    %2711 = vmatpush1.msra.mxu0 0.0
    %2712 = vmatprep.subr.mxu0 0.0
    %2713 = vmatpush1.msra.mxu0 0.0
    %2714 = vmatprep.subr.mxu0 0.0
    %2715 = vmatpush1.msra.mxu0 0.0
    %2716 = vmatprep.subr.mxu0 0.0
    %2717 = vmatpush1.msra.mxu0 0.0
    %2718 = vmatprep.subr.mxu0 0.0
    %2719 = vmatpush1.msra.mxu0 0.0
    %2720 = vmatprep.subr.mxu0 0.0
    %2721 = vmatpush1.msra.mxu0 0.0
    %2722 = vmatprep.subr.mxu0 0.0
    %2723 = vmatpush1.msra.mxu0 0.0
    %2724 = vmatprep.subr.mxu0 0.0
    %2725 = vmatpush1.msra.mxu0 0.0
    %2726 = vmatprep.subr.mxu0 0.0
    %2727 = vmatpush1.msra.mxu0 %v145
    %2728 = vmatprep.subr.mxu0 0.0
    %2729 = vmatpush1.msra.mxu0 %v144
    %2730 = vmatprep.subr.mxu0 0.0
    %2731 = vmatpush1.msra.mxu0 %v143
    %2732 = vmatprep.subr.mxu0 0.0
    %2733 = vmatpush1.msra.mxu0 %v142
    %2734 = vmatprep.subr.mxu0 0.0
    %2735 = vmatpush2.msra.mxu0 0.0
    %2736 = vmatprep.subr.mxu0 0.0
    %2737 = vmatpush2.msra.mxu0 0.0
    %2738 = vmatprep.subr.mxu0 0.0
    %2739 = vmatpush2.msra.mxu0 0.0
    %2740 = vmatprep.subr.mxu0 0.0
    %2741 = vmatpush2.msra.mxu0 0.0
    %2742 = vmatprep.subr.mxu0 0.0
    %2743 = vmatpush2.msra.mxu0 0.0
    %2744 = vmatprep.subr.mxu0 0.0
    %2745 = vmatpush2.msra.mxu0 0.0
    %2746 = vmatprep.subr.mxu0 0.0
    %2747 = vmatpush2.msra.mxu0 0.0
    %2748 = vmatprep.subr.mxu0 0.0
    %2749 = vmatpush2.msra.mxu0 0.0
    %2750 = vmatprep.subr.mxu0 0.0
    %2751 = vmatpush2.msra.mxu0 0.0
    %2752 = vmatprep.subr.mxu0 0.0
    %2753 = vmatpush2.msra.mxu0 0.0
    %2754 = vmatprep.subr.mxu0 0.0
    %2755 = vmatpush2.msra.mxu0 0.0
    %2756 = vmatprep.subr.mxu0 0.0
    %2757 = vmatpush2.msra.mxu0 0.0
    %2758 = vmatprep.subr.mxu0 0.0
    %2759 = vmatpush2.msra.mxu0 0.0
    %2760 = vmatprep.subr.mxu0 0.0
    %2761 = vmatpush2.msra.mxu0 0.0
    %2762 = vmatprep.subr.mxu0 0.0
    %2763 = vmatpush2.msra.mxu0 0.0
    %2764 = vmatprep.subr.mxu0 0.0
    %2765 = vmatpush2.msra.mxu0 0.0
    %2766 = vmatprep.mubr.f32.mxu0 0.0
    %2767 = vmatmul.mubr.f32.gmra.mxu0 %v2700
    %v2768 = vpop.f32.mrf.mxu0
    %v2769 = vadd.f32 %v146, %v2768
    %v2770 = vpop.f32.mrf.mxu0
    %2771 = vdwg.mxu0
    %v2772 = vadd.f32 %v2769, %v2521
    %v2773 = vxor.u32 %v2772, 2147483648
    %v2774 = vmul.f32 %v2773, 1.442695
    %v2775 = vpow.pop %v2774
    %v2776 = vadd.f32 %v2775, 1.0
    %v2777 = vrcp.pop %v2776
    %v2778 = vmul.f32 1.0, %v2777
    %2779 = vrot.lane.b32.xlu0 %v2521, 64
    %v2780 = vpop.permute.xlu0 %2779
    %v2782 = vmul.f32 %v2778, %v2780
    %2784 = vrot.lane.b32.xlu0 %v2782, 64
    %v2785 = vpop.permute.xlu0 %2784
    %v2787 = vadd.f32 %v2769, %v2785
    %v2788 = vtanh.pop %v2787
    %v2789 = vsub.f32 1.0, %v2778
    %2791 = vrot.lane.b32.xlu0 %v2788, 96
    %v2792 = vpop.permute.xlu0 %2791
    %v2794 = vmul.f32 %v2789, %v2792
    %v2795 = vmul.f32 %v2778, %v2356
    %v2796 = vadd.f32 %v2794, %v2795
    %2798 = vrot.lane.b32.xlu0 %v2796, 96
    %v2799 = vpop.permute.xlu0 %2798
    %v2800 = vsel %vm168, %v2799, 0
    %2802 = vmatprep.subr.mxu0 0.0
    %2803 = vmatpush1.msra.mxu0 0.0
    %2804 = vmatprep.subr.mxu0 0.0
    %2805 = vmatpush1.msra.mxu0 0.0
    %2806 = vmatprep.subr.mxu0 0.0
    %2807 = vmatpush1.msra.mxu0 0.0
    %2808 = vmatprep.subr.mxu0 0.0
    %2809 = vmatpush1.msra.mxu0 0.0
    %2810 = vmatprep.subr.mxu0 0.0
    %2811 = vmatpush1.msra.mxu0 0.0
    %2812 = vmatprep.subr.mxu0 0.0
    %2813 = vmatpush1.msra.mxu0 0.0
    %2814 = vmatprep.subr.mxu0 0.0
    %2815 = vmatpush1.msra.mxu0 0.0
    %2816 = vmatprep.subr.mxu0 0.0
    %2817 = vmatpush1.msra.mxu0 0.0
    %2818 = vmatprep.subr.mxu0 0.0
    %2819 = vmatpush1.msra.mxu0 0.0
    %2820 = vmatprep.subr.mxu0 0.0
    %2821 = vmatpush1.msra.mxu0 0.0
    %2822 = vmatprep.subr.mxu0 0.0
    %2823 = vmatpush1.msra.mxu0 0.0
    %2824 = vmatprep.subr.mxu0 0.0
    %2825 = vmatpush1.msra.mxu0 0.0
    %2826 = vmatprep.subr.mxu0 0.0
    %2827 = vmatpush1.msra.mxu0 %v154
    %2828 = vmatprep.subr.mxu0 0.0
    %2829 = vmatpush1.msra.mxu0 %v153
    %2830 = vmatprep.subr.mxu0 0.0
    %2831 = vmatpush1.msra.mxu0 %v152
    %2832 = vmatprep.subr.mxu0 0.0
    %2833 = vmatpush1.msra.mxu0 %v151
    %2834 = vmatprep.subr.mxu0 0.0
    %2835 = vmatpush2.msra.mxu0 0.0
    %2836 = vmatprep.subr.mxu0 0.0
    %2837 = vmatpush2.msra.mxu0 0.0
    %2838 = vmatprep.subr.mxu0 0.0
    %2839 = vmatpush2.msra.mxu0 0.0
    %2840 = vmatprep.subr.mxu0 0.0
    %2841 = vmatpush2.msra.mxu0 0.0
    %2842 = vmatprep.subr.mxu0 0.0
    %2843 = vmatpush2.msra.mxu0 0.0
    %2844 = vmatprep.subr.mxu0 0.0
    %2845 = vmatpush2.msra.mxu0 0.0
    %2846 = vmatprep.subr.mxu0 0.0
    %2847 = vmatpush2.msra.mxu0 0.0
    %2848 = vmatprep.subr.mxu0 0.0
    %2849 = vmatpush2.msra.mxu0 0.0
    %2850 = vmatprep.subr.mxu0 0.0
    %2851 = vmatpush2.msra.mxu0 0.0
    %2852 = vmatprep.subr.mxu0 0.0
    %2853 = vmatpush2.msra.mxu0 0.0
    %2854 = vmatprep.subr.mxu0 0.0
    %2855 = vmatpush2.msra.mxu0 0.0
    %2856 = vmatprep.subr.mxu0 0.0
    %2857 = vmatpush2.msra.mxu0 0.0
    %2858 = vmatprep.subr.mxu0 0.0
    %2859 = vmatpush2.msra.mxu0 0.0
    %2860 = vmatprep.subr.mxu0 0.0
    %2861 = vmatpush2.msra.mxu0 0.0
    %2862 = vmatprep.subr.mxu0 0.0
    %2863 = vmatpush2.msra.mxu0 0.0
    %2864 = vmatprep.subr.mxu0 0.0
    %2865 = vmatpush2.msra.mxu0 0.0
    %2866 = vmatprep.mubr.f32.mxu0 0.0
    %2867 = vmatmul.mubr.f32.gmra.mxu0 %v2800
    %v2868 = vpop.f32.mrf.mxu0
    %v2869 = vadd.f32 %v155, %v2868
    %v2870 = vpop.f32.mrf.mxu0
    %2871 = vdwg.mxu0
    %v2872 = vsel %vm668, %v2869, -inf
    %2873 = vmax.xlane.f32.xlu0 %v2872
    %v2874 = vpop.xlane.xlu0 %2873
    %v2875 = vsub.f32 %v2869, %v2874
    %v2876 = vmul.f32 %v2875, 1.442695
    %v2877 = vpow.pop %v2876
    %v2878 = vsel %vm668, %v2877, 0.0
    %2879 = vadd.xlane.f32.xlu0 %v2878
    %v2880 = vpop.xlane.xlu0 %2879
    %v2881 = vlog2.pop %v2880
    %v2882 = vmul.f32 %v2881, 0.6931472
    %v2883 = vsub.f32 %v2875, %v2882
    %2884 = vrot.lane.b32.xlu0 %v2796, 32
    %v2885 = vpop.permute.xlu0 %2884
    %2887 = vrot.lane.b32.xlu0 %v2543, 96
    %v2888 = vpop.permute.xlu0 %2887
    %v2890 = vsel %vm687, %v2883, %v2885
    %v2891 = vsel %vm689, %v2890, %v2888
    %v2892 = vsel %vm691, %v2891, 0.0
    %2893 = vst [vmem:[#allocation14 + $0x5] sm:$0x1] %v2892
    %2894 = vmatprep.subr.mxu0 0.0
    %2895 = vmatpush1.msra.mxu0 0.0
    %2896 = vmatprep.subr.mxu0 0.0
    %2897 = vmatpush1.msra.mxu0 0.0
    %2898 = vmatprep.subr.mxu0 0.0
    %2899 = vmatpush1.msra.mxu0 0.0
    %2900 = vmatprep.subr.mxu0 0.0
    %2901 = vmatpush1.msra.mxu0 0.0
    %2902 = vmatprep.subr.mxu0 0.0
    %2903 = vmatpush1.msra.mxu0 0.0
    %2904 = vmatprep.subr.mxu0 0.0
    %2905 = vmatpush1.msra.mxu0 0.0
    %2906 = vmatprep.subr.mxu0 0.0
    %2907 = vmatpush1.msra.mxu0 0.0
    %2908 = vmatprep.subr.mxu0 0.0
    %2909 = vmatpush1.msra.mxu0 0.0
    %2910 = vmatprep.subr.mxu0 0.0
    %2911 = vmatpush1.msra.mxu0 0.0
    %2912 = vmatprep.subr.mxu0 0.0
    %2913 = vmatpush1.msra.mxu0 0.0
    %2914 = vmatprep.subr.mxu0 0.0
    %2915 = vmatpush1.msra.mxu0 0.0
    %2916 = vmatprep.subr.mxu0 0.0
    %2917 = vmatpush1.msra.mxu0 0.0
    %2918 = vmatprep.subr.mxu0 0.0
    %2919 = vmatpush1.msra.mxu0 %v140
    %2920 = vmatprep.subr.mxu0 0.0
    %2921 = vmatpush1.msra.mxu0 %v139
    %2922 = vmatprep.subr.mxu0 0.0
    %2923 = vmatpush1.msra.mxu0 %v138
    %2924 = vmatprep.subr.mxu0 0.0
    %2925 = vmatpush1.msra.mxu0 %v137
    %2926 = vmatprep.subr.mxu0 0.0
    %2927 = vmatpush2.msra.mxu0 0.0
    %2928 = vmatprep.subr.mxu0 0.0
    %2929 = vmatpush2.msra.mxu0 0.0
    %2930 = vmatprep.subr.mxu0 0.0
    %2931 = vmatpush2.msra.mxu0 0.0
    %2932 = vmatprep.subr.mxu0 0.0
    %2933 = vmatpush2.msra.mxu0 0.0
    %2934 = vmatprep.subr.mxu0 0.0
    %2935 = vmatpush2.msra.mxu0 0.0
    %2936 = vmatprep.subr.mxu0 0.0
    %2937 = vmatpush2.msra.mxu0 0.0
    %2938 = vmatprep.subr.mxu0 0.0
    %2939 = vmatpush2.msra.mxu0 0.0
    %2940 = vmatprep.subr.mxu0 0.0
    %2941 = vmatpush2.msra.mxu0 0.0
    %2942 = vmatprep.subr.mxu0 0.0
    %2943 = vmatpush2.msra.mxu0 0.0
    %2944 = vmatprep.subr.mxu0 0.0
    %2945 = vmatpush2.msra.mxu0 0.0
    %2946 = vmatprep.subr.mxu0 0.0
    %2947 = vmatpush2.msra.mxu0 0.0
    %2948 = vmatprep.subr.mxu0 0.0
    %2949 = vmatpush2.msra.mxu0 0.0
    %2950 = vmatprep.subr.mxu0 0.0
    %2951 = vmatpush2.msra.mxu0 0.0
    %2952 = vmatprep.subr.mxu0 0.0
    %2953 = vmatpush2.msra.mxu0 0.0
    %2954 = vmatprep.subr.mxu0 0.0
    %2955 = vmatpush2.msra.mxu0 0.0
    %2956 = vmatprep.subr.mxu0 0.0
    %2957 = vmatpush2.msra.mxu0 0.0
    %2958 = vmatprep.mubr.f32.mxu0 0.0
    %2959 = vmatmul.mubr.f32.gmra.mxu0 %v2800
    %v2960 = vpop.f32.mrf.mxu0
    %v2961 = vadd.f32 %v141, %v2960
    %v2962 = vpop.f32.mrf.mxu0
    %2963 = vdwg.mxu0
    %v2965 = vrot.slane %v2961, 2
    %2966 = vrot.lane.b32.xlu0 %v2965, 32
    %v2967 = vpop.permute.xlu0 %2966
    %v2969 = vadd.f32 %v239, %v2967
    %vm2970 = vcmask 129030
    %v2971 = vsel %vm2970, %v2969, -inf
    %2972 = vmax.xlane.f32.xlu0 %v2971
    %v2973 = vpop.xlane.xlu0 %2972
    %v2974 = vsub.f32 %v2969, %v2973
    %v2975 = vmul.f32 %v2974, 1.442695
    %v2976 = vpow.pop %v2975
    %v2977 = vsel %vm2970, %v2976, 0.0
    %2978 = vadd.xlane.f32.xlu0 %v2977
    %v2979 = vpop.xlane.xlu0 %2978
    %v2980 = vrcp.pop %v2979
    %v2981 = vmul.f32 %v2976, %v2980
    %v2983 = vrot.slane %v2981, 6
    %v2984 = vsel %vm333, %v2983, 0
    %2986 = vmatprep.subr.mxu0 0.0
    %2987 = vmatpush1.msra.mxu0 0.0
    %2988 = vmatprep.subr.mxu0 0.0
    %2989 = vmatpush1.msra.mxu0 0.0
    %2990 = vmatprep.subr.mxu0 0.0
    %2991 = vmatpush1.msra.mxu0 0.0
    %2992 = vmatprep.subr.mxu0 0.0
    %2993 = vmatpush1.msra.mxu0 0.0
    %2994 = vmatprep.subr.mxu0 0.0
    %2995 = vmatpush1.msra.mxu0 0.0
    %2996 = vmatprep.subr.mxu0 0.0
    %2997 = vmatpush1.msra.mxu0 0.0
    %2998 = vmatprep.subr.mxu0 0.0
    %2999 = vmatpush1.msra.mxu0 0.0
    %3000 = vmatprep.subr.mxu0 0.0
    %3001 = vmatpush1.msra.mxu0 0.0
    %3002 = vmatprep.subr.mxu0 0.0
    %3003 = vmatpush1.msra.mxu0 0.0
    %3004 = vmatprep.subr.mxu0 0.0
    %3005 = vmatpush1.msra.mxu0 0.0
    %3006 = vmatprep.subr.mxu0 0.0
    %3007 = vmatpush1.msra.mxu0 0.0
    %3008 = vmatprep.subr.mxu0 0.0
    %3009 = vmatpush1.msra.mxu0 0.0
    %3010 = vmatprep.subr.mxu0 0.0
    %3011 = vmatpush1.msra.mxu0 0.0
    %3012 = vmatprep.subr.mxu0 0.0
    %3013 = vmatpush1.msra.mxu0 0.0
    %3014 = vmatprep.subr.mxu0 0.0
    %3015 = vmatpush1.msra.mxu0 %v136
    %3016 = vmatprep.subr.mxu0 0.0
    %3017 = vmatpush1.msra.mxu0 %v135
    %3018 = vmatprep.subr.mxu0 0.0
    %3019 = vmatpush2.msra.mxu0 0.0
    %3020 = vmatprep.subr.mxu0 0.0
    %3021 = vmatpush2.msra.mxu0 0.0
    %3022 = vmatprep.subr.mxu0 0.0
    %3023 = vmatpush2.msra.mxu0 0.0
    %3024 = vmatprep.subr.mxu0 0.0
    %3025 = vmatpush2.msra.mxu0 0.0
    %3026 = vmatprep.subr.mxu0 0.0
    %3027 = vmatpush2.msra.mxu0 0.0
    %3028 = vmatprep.subr.mxu0 0.0
    %3029 = vmatpush2.msra.mxu0 0.0
    %3030 = vmatprep.subr.mxu0 0.0
    %3031 = vmatpush2.msra.mxu0 0.0
    %3032 = vmatprep.subr.mxu0 0.0
    %3033 = vmatpush2.msra.mxu0 0.0
    %3034 = vmatprep.subr.mxu0 0.0
    %3035 = vmatpush2.msra.mxu0 0.0
    %3036 = vmatprep.subr.mxu0 0.0
    %3037 = vmatpush2.msra.mxu0 0.0
    %3038 = vmatprep.subr.mxu0 0.0
    %3039 = vmatpush2.msra.mxu0 0.0
    %3040 = vmatprep.subr.mxu0 0.0
    %3041 = vmatpush2.msra.mxu0 0.0
    %3042 = vmatprep.subr.mxu0 0.0
    %3043 = vmatpush2.msra.mxu0 0.0
    %3044 = vmatprep.subr.mxu0 0.0
    %3045 = vmatpush2.msra.mxu0 0.0
    %3046 = vmatprep.subr.mxu0 0.0
    %3047 = vmatpush2.msra.mxu0 0.0
    %3048 = vmatprep.subr.mxu0 0.0
    %3049 = vmatpush2.msra.mxu0 0.0
    %3050 = vmatprep.mubr.f32.mxu0 0.0
    %3051 = vmatmul.mubr.f32.gmra.mxu0 %v2984
    %v3052 = vpop.f32.mrf.mxu0
    %v3053 = vadd.f32 0.0, %v3052
    %v3054 = vpop.f32.mrf.mxu0
    %3055 = vdwg.mxu0
    %v3057 = vsel %vm168, %v3053, 0
    %3059 = vmatprep.subr.mxu0 0.0
    %3060 = vmatpush1.msra.mxu0 0.0
    %3061 = vmatprep.subr.mxu0 0.0
    %3062 = vmatpush1.msra.mxu0 0.0
    %3063 = vmatprep.subr.mxu0 0.0
    %3064 = vmatpush1.msra.mxu0 0.0
    %3065 = vmatprep.subr.mxu0 0.0
    %3066 = vmatpush1.msra.mxu0 0.0
    %3067 = vmatprep.subr.mxu0 0.0
    %3068 = vmatpush1.msra.mxu0 0.0
    %3069 = vmatprep.subr.mxu0 0.0
    %3070 = vmatpush1.msra.mxu0 0.0
    %3071 = vmatprep.subr.mxu0 0.0
    %3072 = vmatpush1.msra.mxu0 0.0
    %3073 = vmatprep.subr.mxu0 0.0
    %3074 = vmatpush1.msra.mxu0 0.0
    %3075 = vmatprep.subr.mxu0 0.0
    %3076 = vmatpush1.msra.mxu0 0.0
    %3077 = vmatprep.subr.mxu0 0.0
    %3078 = vmatpush1.msra.mxu0 0.0
    %3079 = vmatprep.subr.mxu0 0.0
    %3080 = vmatpush1.msra.mxu0 0.0
    %3081 = vmatprep.subr.mxu0 0.0
    %3082 = vmatpush1.msra.mxu0 0.0
    %3083 = vmatprep.subr.mxu0 0.0
    %3084 = vmatpush1.msra.mxu0 %v150
    %3085 = vmatprep.subr.mxu0 0.0
    %3086 = vmatpush1.msra.mxu0 %v149
    %3087 = vmatprep.subr.mxu0 0.0
    %3088 = vmatpush1.msra.mxu0 %v148
    %3089 = vmatprep.subr.mxu0 0.0
    %3090 = vmatpush1.msra.mxu0 %v147
    %3091 = vmatprep.subr.mxu0 0.0
    %3092 = vmatpush2.msra.mxu0 0.0
    %3093 = vmatprep.subr.mxu0 0.0
    %3094 = vmatpush2.msra.mxu0 0.0
    %3095 = vmatprep.subr.mxu0 0.0
    %3096 = vmatpush2.msra.mxu0 0.0
    %3097 = vmatprep.subr.mxu0 0.0
    %3098 = vmatpush2.msra.mxu0 0.0
    %3099 = vmatprep.subr.mxu0 0.0
    %3100 = vmatpush2.msra.mxu0 0.0
    %3101 = vmatprep.subr.mxu0 0.0
    %3102 = vmatpush2.msra.mxu0 0.0
    %3103 = vmatprep.subr.mxu0 0.0
    %3104 = vmatpush2.msra.mxu0 0.0
    %3105 = vmatprep.subr.mxu0 0.0
    %3106 = vmatpush2.msra.mxu0 0.0
    %3107 = vmatprep.subr.mxu0 0.0
    %3108 = vmatpush2.msra.mxu0 0.0
    %3109 = vmatprep.subr.mxu0 0.0
    %3110 = vmatpush2.msra.mxu0 0.0
    %3111 = vmatprep.subr.mxu0 0.0
    %3112 = vmatpush2.msra.mxu0 0.0
    %3113 = vmatprep.subr.mxu0 0.0
    %3114 = vmatpush2.msra.mxu0 0.0
    %3115 = vmatprep.subr.mxu0 0.0
    %3116 = vmatpush2.msra.mxu0 0.0
    %3117 = vmatprep.subr.mxu0 0.0
    %3118 = vmatpush2.msra.mxu0 0.0
    %3119 = vmatprep.subr.mxu0 0.0
    %3120 = vmatpush2.msra.mxu0 0.0
    %3121 = vmatprep.subr.mxu0 0.0
    %3122 = vmatpush2.msra.mxu0 0.0
    %3123 = vmatprep.mubr.f32.mxu0 0.0
    %3124 = vmatmul.mubr.f32.gmra.mxu0 %v3057
    %v3125 = vpop.f32.mrf.mxu0
    %v3126 = vadd.f32 0.0, %v3125
    %v3127 = vpop.f32.mrf.mxu0
    %3128 = vdwg.mxu0
    %v3130 = vrot.slane %v3126, 2
    %3131 = vrot.lane.b32.xlu0 %v3130, 16
    %v3132 = vpop.permute.xlu0 %3131
    %v3134 = vadd.f32 %v239, %v3132
    %v3135 = vmax.f32 %v3134, 0.0
    %v3137 = vrot.slane %v3135, 6
    %3138 = vrot.lane.b32.xlu0 %v3137, 112
    %v3139 = vpop.permute.xlu0 %3138
    %v3140 = vsel %vm168, %v3139, 0
    %3142 = vmatprep.subr.mxu0 0.0
    %3143 = vmatpush1.msra.mxu0 0.0
    %3144 = vmatprep.subr.mxu0 0.0
    %3145 = vmatpush1.msra.mxu0 0.0
    %3146 = vmatprep.subr.mxu0 0.0
    %3147 = vmatpush1.msra.mxu0 0.0
    %3148 = vmatprep.subr.mxu0 0.0
    %3149 = vmatpush1.msra.mxu0 0.0
    %3150 = vmatprep.subr.mxu0 0.0
    %3151 = vmatpush1.msra.mxu0 0.0
    %3152 = vmatprep.subr.mxu0 0.0
    %3153 = vmatpush1.msra.mxu0 0.0
    %3154 = vmatprep.subr.mxu0 0.0
    %3155 = vmatpush1.msra.mxu0 0.0
    %3156 = vmatprep.subr.mxu0 0.0
    %3157 = vmatpush1.msra.mxu0 0.0
    %3158 = vmatprep.subr.mxu0 0.0
    %3159 = vmatpush1.msra.mxu0 0.0
    %3160 = vmatprep.subr.mxu0 0.0
    %3161 = vmatpush1.msra.mxu0 0.0
    %3162 = vmatprep.subr.mxu0 0.0
    %3163 = vmatpush1.msra.mxu0 0.0
    %3164 = vmatprep.subr.mxu0 0.0
    %3165 = vmatpush1.msra.mxu0 0.0
    %3166 = vmatprep.subr.mxu0 0.0
    %3167 = vmatpush1.msra.mxu0 %v145
    %3168 = vmatprep.subr.mxu0 0.0
    %3169 = vmatpush1.msra.mxu0 %v144
    %3170 = vmatprep.subr.mxu0 0.0
    %3171 = vmatpush1.msra.mxu0 %v143
    %3172 = vmatprep.subr.mxu0 0.0
    %3173 = vmatpush1.msra.mxu0 %v142
    %3174 = vmatprep.subr.mxu0 0.0
    %3175 = vmatpush2.msra.mxu0 0.0
    %3176 = vmatprep.subr.mxu0 0.0
    %3177 = vmatpush2.msra.mxu0 0.0
    %3178 = vmatprep.subr.mxu0 0.0
    %3179 = vmatpush2.msra.mxu0 0.0
    %3180 = vmatprep.subr.mxu0 0.0
    %3181 = vmatpush2.msra.mxu0 0.0
    %3182 = vmatprep.subr.mxu0 0.0
    %3183 = vmatpush2.msra.mxu0 0.0
    %3184 = vmatprep.subr.mxu0 0.0
    %3185 = vmatpush2.msra.mxu0 0.0
    %3186 = vmatprep.subr.mxu0 0.0
    %3187 = vmatpush2.msra.mxu0 0.0
    %3188 = vmatprep.subr.mxu0 0.0
    %3189 = vmatpush2.msra.mxu0 0.0
    %3190 = vmatprep.subr.mxu0 0.0
    %3191 = vmatpush2.msra.mxu0 0.0
    %3192 = vmatprep.subr.mxu0 0.0
    %3193 = vmatpush2.msra.mxu0 0.0
    %3194 = vmatprep.subr.mxu0 0.0
    %3195 = vmatpush2.msra.mxu0 0.0
    %3196 = vmatprep.subr.mxu0 0.0
    %3197 = vmatpush2.msra.mxu0 0.0
    %3198 = vmatprep.subr.mxu0 0.0
    %3199 = vmatpush2.msra.mxu0 0.0
    %3200 = vmatprep.subr.mxu0 0.0
    %3201 = vmatpush2.msra.mxu0 0.0
    %3202 = vmatprep.subr.mxu0 0.0
    %3203 = vmatpush2.msra.mxu0 0.0
    %3204 = vmatprep.subr.mxu0 0.0
    %3205 = vmatpush2.msra.mxu0 0.0
    %3206 = vmatprep.mubr.f32.mxu0 0.0
    %3207 = vmatmul.mubr.f32.gmra.mxu0 %v3140
    %v3208 = vpop.f32.mrf.mxu0
    %v3209 = vadd.f32 %v146, %v3208
    %v3210 = vpop.f32.mrf.mxu0
    %3211 = vdwg.mxu0
    %v3212 = vadd.f32 %v3209, %v2961
    %v3213 = vxor.u32 %v3212, 2147483648
    %v3214 = vmul.f32 %v3213, 1.442695
    %v3215 = vpow.pop %v3214
    %v3216 = vadd.f32 %v3215, 1.0
    %v3217 = vrcp.pop %v3216
    %v3218 = vmul.f32 1.0, %v3217
    %3219 = vrot.lane.b32.xlu0 %v2961, 64
    %v3220 = vpop.permute.xlu0 %3219
    %v3222 = vmul.f32 %v3218, %v3220
    %3224 = vrot.lane.b32.xlu0 %v3222, 64
    %v3225 = vpop.permute.xlu0 %3224
    %v3227 = vadd.f32 %v3209, %v3225
    %v3228 = vtanh.pop %v3227
    %v3229 = vsub.f32 1.0, %v3218
    %3231 = vrot.lane.b32.xlu0 %v3228, 96
    %v3232 = vpop.permute.xlu0 %3231
    %v3234 = vmul.f32 %v3229, %v3232
    %v3235 = vmul.f32 %v3218, %v2796
    %v3236 = vadd.f32 %v3234, %v3235
    %3238 = vrot.lane.b32.xlu0 %v3236, 96
    %v3239 = vpop.permute.xlu0 %3238
    %v3240 = vsel %vm168, %v3239, 0
    %3242 = vmatprep.subr.mxu0 0.0
    %3243 = vmatpush1.msra.mxu0 0.0
    %3244 = vmatprep.subr.mxu0 0.0
    %3245 = vmatpush1.msra.mxu0 0.0
    %3246 = vmatprep.subr.mxu0 0.0
    %3247 = vmatpush1.msra.mxu0 0.0
    %3248 = vmatprep.subr.mxu0 0.0
    %3249 = vmatpush1.msra.mxu0 0.0
    %3250 = vmatprep.subr.mxu0 0.0
    %3251 = vmatpush1.msra.mxu0 0.0
    %3252 = vmatprep.subr.mxu0 0.0
    %3253 = vmatpush1.msra.mxu0 0.0
    %3254 = vmatprep.subr.mxu0 0.0
    %3255 = vmatpush1.msra.mxu0 0.0
    %3256 = vmatprep.subr.mxu0 0.0
    %3257 = vmatpush1.msra.mxu0 0.0
    %3258 = vmatprep.subr.mxu0 0.0
    %3259 = vmatpush1.msra.mxu0 0.0
    %3260 = vmatprep.subr.mxu0 0.0
    %3261 = vmatpush1.msra.mxu0 0.0
    %3262 = vmatprep.subr.mxu0 0.0
    %3263 = vmatpush1.msra.mxu0 0.0
    %3264 = vmatprep.subr.mxu0 0.0
    %3265 = vmatpush1.msra.mxu0 0.0
    %3266 = vmatprep.subr.mxu0 0.0
    %3267 = vmatpush1.msra.mxu0 %v154
    %3268 = vmatprep.subr.mxu0 0.0
    %3269 = vmatpush1.msra.mxu0 %v153
    %3270 = vmatprep.subr.mxu0 0.0
    %3271 = vmatpush1.msra.mxu0 %v152
    %3272 = vmatprep.subr.mxu0 0.0
    %3273 = vmatpush1.msra.mxu0 %v151
    %3274 = vmatprep.subr.mxu0 0.0
    %3275 = vmatpush2.msra.mxu0 0.0
    %3276 = vmatprep.subr.mxu0 0.0
    %3277 = vmatpush2.msra.mxu0 0.0
    %3278 = vmatprep.subr.mxu0 0.0
    %3279 = vmatpush2.msra.mxu0 0.0
    %3280 = vmatprep.subr.mxu0 0.0
    %3281 = vmatpush2.msra.mxu0 0.0
    %3282 = vmatprep.subr.mxu0 0.0
    %3283 = vmatpush2.msra.mxu0 0.0
    %3284 = vmatprep.subr.mxu0 0.0
    %3285 = vmatpush2.msra.mxu0 0.0
    %3286 = vmatprep.subr.mxu0 0.0
    %3287 = vmatpush2.msra.mxu0 0.0
    %3288 = vmatprep.subr.mxu0 0.0
    %3289 = vmatpush2.msra.mxu0 0.0
    %3290 = vmatprep.subr.mxu0 0.0
    %3291 = vmatpush2.msra.mxu0 0.0
    %3292 = vmatprep.subr.mxu0 0.0
    %3293 = vmatpush2.msra.mxu0 0.0
    %3294 = vmatprep.subr.mxu0 0.0
    %3295 = vmatpush2.msra.mxu0 0.0
    %3296 = vmatprep.subr.mxu0 0.0
    %3297 = vmatpush2.msra.mxu0 0.0
    %3298 = vmatprep.subr.mxu0 0.0
    %3299 = vmatpush2.msra.mxu0 0.0
    %3300 = vmatprep.subr.mxu0 0.0
    %3301 = vmatpush2.msra.mxu0 0.0
    %3302 = vmatprep.subr.mxu0 0.0
    %3303 = vmatpush2.msra.mxu0 0.0
    %3304 = vmatprep.subr.mxu0 0.0
    %3305 = vmatpush2.msra.mxu0 0.0
    %3306 = vmatprep.mubr.f32.mxu0 0.0
    %3307 = vmatmul.mubr.f32.gmra.mxu0 %v3240
    %v3308 = vpop.f32.mrf.mxu0
    %v3309 = vadd.f32 %v155, %v3308
    %v3310 = vpop.f32.mrf.mxu0
    %3311 = vdwg.mxu0
    %v3312 = vsel %vm668, %v3309, -inf
    %3313 = vmax.xlane.f32.xlu0 %v3312
    %v3314 = vpop.xlane.xlu0 %3313
    %v3315 = vsub.f32 %v3309, %v3314
    %v3316 = vmul.f32 %v3315, 1.442695
    %v3317 = vpow.pop %v3316
    %v3318 = vsel %vm668, %v3317, 0.0
    %3319 = vadd.xlane.f32.xlu0 %v3318
    %v3320 = vpop.xlane.xlu0 %3319
    %v3321 = vlog2.pop %v3320
    %v3322 = vmul.f32 %v3321, 0.6931472
    %v3323 = vsub.f32 %v3315, %v3322
    %3324 = vrot.lane.b32.xlu0 %v3236, 32
    %v3325 = vpop.permute.xlu0 %3324
    %3327 = vrot.lane.b32.xlu0 %v2983, 96
    %v3328 = vpop.permute.xlu0 %3327
    %v3330 = vsel %vm687, %v3323, %v3325
    %v3331 = vsel %vm689, %v3330, %v3328
    %v3332 = vsel %vm691, %v3331, 0.0
    %3333 = vst [vmem:[#allocation14 + $0x6] sm:$0x1] %v3332
    %3334 = vmatprep.subr.mxu0 0.0
    %3335 = vmatpush1.msra.mxu0 0.0
    %3336 = vmatprep.subr.mxu0 0.0
    %3337 = vmatpush1.msra.mxu0 0.0
    %3338 = vmatprep.subr.mxu0 0.0
    %3339 = vmatpush1.msra.mxu0 0.0
    %3340 = vmatprep.subr.mxu0 0.0
    %3341 = vmatpush1.msra.mxu0 0.0
    %3342 = vmatprep.subr.mxu0 0.0
    %3343 = vmatpush1.msra.mxu0 0.0
    %3344 = vmatprep.subr.mxu0 0.0
    %3345 = vmatpush1.msra.mxu0 0.0
    %3346 = vmatprep.subr.mxu0 0.0
    %3347 = vmatpush1.msra.mxu0 0.0
    %3348 = vmatprep.subr.mxu0 0.0
    %3349 = vmatpush1.msra.mxu0 0.0
    %3350 = vmatprep.subr.mxu0 0.0
    %3351 = vmatpush1.msra.mxu0 0.0
    %3352 = vmatprep.subr.mxu0 0.0
    %3353 = vmatpush1.msra.mxu0 0.0
    %3354 = vmatprep.subr.mxu0 0.0
    %3355 = vmatpush1.msra.mxu0 0.0
    %3356 = vmatprep.subr.mxu0 0.0
    %3357 = vmatpush1.msra.mxu0 0.0
    %3358 = vmatprep.subr.mxu0 0.0
    %3359 = vmatpush1.msra.mxu0 %v140
    %3360 = vmatprep.subr.mxu0 0.0
    %3361 = vmatpush1.msra.mxu0 %v139
    %3362 = vmatprep.subr.mxu0 0.0
    %3363 = vmatpush1.msra.mxu0 %v138
    %3364 = vmatprep.subr.mxu0 0.0
    %3365 = vmatpush1.msra.mxu0 %v137
    %3366 = vmatprep.subr.mxu0 0.0
    %3367 = vmatpush2.msra.mxu0 0.0
    %3368 = vmatprep.subr.mxu0 0.0
    %3369 = vmatpush2.msra.mxu0 0.0
    %3370 = vmatprep.subr.mxu0 0.0
    %3371 = vmatpush2.msra.mxu0 0.0
    %3372 = vmatprep.subr.mxu0 0.0
    %3373 = vmatpush2.msra.mxu0 0.0
    %3374 = vmatprep.subr.mxu0 0.0
    %3375 = vmatpush2.msra.mxu0 0.0
    %3376 = vmatprep.subr.mxu0 0.0
    %3377 = vmatpush2.msra.mxu0 0.0
    %3378 = vmatprep.subr.mxu0 0.0
    %3379 = vmatpush2.msra.mxu0 0.0
    %3380 = vmatprep.subr.mxu0 0.0
    %3381 = vmatpush2.msra.mxu0 0.0
    %3382 = vmatprep.subr.mxu0 0.0
    %3383 = vmatpush2.msra.mxu0 0.0
    %3384 = vmatprep.subr.mxu0 0.0
    %3385 = vmatpush2.msra.mxu0 0.0
    %3386 = vmatprep.subr.mxu0 0.0
    %3387 = vmatpush2.msra.mxu0 0.0
    %3388 = vmatprep.subr.mxu0 0.0
    %3389 = vmatpush2.msra.mxu0 0.0
    %3390 = vmatprep.subr.mxu0 0.0
    %3391 = vmatpush2.msra.mxu0 0.0
    %3392 = vmatprep.subr.mxu0 0.0
    %3393 = vmatpush2.msra.mxu0 0.0
    %3394 = vmatprep.subr.mxu0 0.0
    %3395 = vmatpush2.msra.mxu0 0.0
    %3396 = vmatprep.subr.mxu0 0.0
    %3397 = vmatpush2.msra.mxu0 0.0
    %3398 = vmatprep.mubr.f32.mxu0 0.0
    %3399 = vmatmul.mubr.f32.gmra.mxu0 %v3240
    %v3400 = vpop.f32.mrf.mxu0
    %v3401 = vadd.f32 %v141, %v3400
    %v3402 = vpop.f32.mrf.mxu0
    %3403 = vdwg.mxu0
    %v3405 = vrot.slane %v3401, 1
    %3406 = vrot.lane.b32.xlu0 %v3405, 32
    %v3407 = vpop.permute.xlu0 %3406
    %v3409 = vadd.f32 %v239, %v3407
    %vm3410 = vcmask 130055
    %v3411 = vsel %vm3410, %v3409, -inf
    %3412 = vmax.xlane.f32.xlu0 %v3411
    %v3413 = vpop.xlane.xlu0 %3412
    %v3414 = vsub.f32 %v3409, %v3413
    %v3415 = vmul.f32 %v3414, 1.442695
    %v3416 = vpow.pop %v3415
    %v3417 = vsel %vm3410, %v3416, 0.0
    %3418 = vadd.xlane.f32.xlu0 %v3417
    %v3419 = vpop.xlane.xlu0 %3418
    %v3420 = vrcp.pop %v3419
    %v3421 = vmul.f32 %v3416, %v3420
    %v3423 = vrot.slane %v3421, 7
    %v3424 = vsel %vm333, %v3423, 0
    %3426 = vmatprep.subr.mxu0 0.0
    %3427 = vmatpush1.msra.mxu0 0.0
    %3428 = vmatprep.subr.mxu0 0.0
    %3429 = vmatpush1.msra.mxu0 0.0
    %3430 = vmatprep.subr.mxu0 0.0
    %3431 = vmatpush1.msra.mxu0 0.0
    %3432 = vmatprep.subr.mxu0 0.0
    %3433 = vmatpush1.msra.mxu0 0.0
    %3434 = vmatprep.subr.mxu0 0.0
    %3435 = vmatpush1.msra.mxu0 0.0
    %3436 = vmatprep.subr.mxu0 0.0
    %3437 = vmatpush1.msra.mxu0 0.0
    %3438 = vmatprep.subr.mxu0 0.0
    %3439 = vmatpush1.msra.mxu0 0.0
    %3440 = vmatprep.subr.mxu0 0.0
    %3441 = vmatpush1.msra.mxu0 0.0
    %3442 = vmatprep.subr.mxu0 0.0
    %3443 = vmatpush1.msra.mxu0 0.0
    %3444 = vmatprep.subr.mxu0 0.0
    %3445 = vmatpush1.msra.mxu0 0.0
    %3446 = vmatprep.subr.mxu0 0.0
    %3447 = vmatpush1.msra.mxu0 0.0
    %3448 = vmatprep.subr.mxu0 0.0
    %3449 = vmatpush1.msra.mxu0 0.0
    %3450 = vmatprep.subr.mxu0 0.0
    %3451 = vmatpush1.msra.mxu0 0.0
    %3452 = vmatprep.subr.mxu0 0.0
    %3453 = vmatpush1.msra.mxu0 0.0
    %3454 = vmatprep.subr.mxu0 0.0
    %3455 = vmatpush1.msra.mxu0 %v136
    %3456 = vmatprep.subr.mxu0 0.0
    %3457 = vmatpush1.msra.mxu0 %v135
    %3458 = vmatprep.subr.mxu0 0.0
    %3459 = vmatpush2.msra.mxu0 0.0
    %3460 = vmatprep.subr.mxu0 0.0
    %3461 = vmatpush2.msra.mxu0 0.0
    %3462 = vmatprep.subr.mxu0 0.0
    %3463 = vmatpush2.msra.mxu0 0.0
    %3464 = vmatprep.subr.mxu0 0.0
    %3465 = vmatpush2.msra.mxu0 0.0
    %3466 = vmatprep.subr.mxu0 0.0
    %3467 = vmatpush2.msra.mxu0 0.0
    %3468 = vmatprep.subr.mxu0 0.0
    %3469 = vmatpush2.msra.mxu0 0.0
    %3470 = vmatprep.subr.mxu0 0.0
    %3471 = vmatpush2.msra.mxu0 0.0
    %3472 = vmatprep.subr.mxu0 0.0
    %3473 = vmatpush2.msra.mxu0 0.0
    %3474 = vmatprep.subr.mxu0 0.0
    %3475 = vmatpush2.msra.mxu0 0.0
    %3476 = vmatprep.subr.mxu0 0.0
    %3477 = vmatpush2.msra.mxu0 0.0
    %3478 = vmatprep.subr.mxu0 0.0
    %3479 = vmatpush2.msra.mxu0 0.0
    %3480 = vmatprep.subr.mxu0 0.0
    %3481 = vmatpush2.msra.mxu0 0.0
    %3482 = vmatprep.subr.mxu0 0.0
    %3483 = vmatpush2.msra.mxu0 0.0
    %3484 = vmatprep.subr.mxu0 0.0
    %3485 = vmatpush2.msra.mxu0 0.0
    %3486 = vmatprep.subr.mxu0 0.0
    %3487 = vmatpush2.msra.mxu0 0.0
    %3488 = vmatprep.subr.mxu0 0.0
    %3489 = vmatpush2.msra.mxu0 0.0
    %3490 = vmatprep.mubr.f32.mxu0 0.0
    %3491 = vmatmul.mubr.f32.gmra.mxu0 %v3424
    %v3492 = vpop.f32.mrf.mxu0
    %v3493 = vadd.f32 0.0, %v3492
    %v3494 = vpop.f32.mrf.mxu0
    %3495 = vdwg.mxu0
    %v3497 = vsel %vm168, %v3493, 0
    %3499 = vmatprep.subr.mxu0 0.0
    %3500 = vmatpush1.msra.mxu0 0.0
    %3501 = vmatprep.subr.mxu0 0.0
    %3502 = vmatpush1.msra.mxu0 0.0
    %3503 = vmatprep.subr.mxu0 0.0
    %3504 = vmatpush1.msra.mxu0 0.0
    %3505 = vmatprep.subr.mxu0 0.0
    %3506 = vmatpush1.msra.mxu0 0.0
    %3507 = vmatprep.subr.mxu0 0.0
    %3508 = vmatpush1.msra.mxu0 0.0
    %3509 = vmatprep.subr.mxu0 0.0
    %3510 = vmatpush1.msra.mxu0 0.0
    %3511 = vmatprep.subr.mxu0 0.0
    %3512 = vmatpush1.msra.mxu0 0.0
    %3513 = vmatprep.subr.mxu0 0.0
    %3514 = vmatpush1.msra.mxu0 0.0
    %3515 = vmatprep.subr.mxu0 0.0
    %3516 = vmatpush1.msra.mxu0 0.0
    %3517 = vmatprep.subr.mxu0 0.0
    %3518 = vmatpush1.msra.mxu0 0.0
    %3519 = vmatprep.subr.mxu0 0.0
    %3520 = vmatpush1.msra.mxu0 0.0
    %3521 = vmatprep.subr.mxu0 0.0
    %3522 = vmatpush1.msra.mxu0 0.0
    %3523 = vmatprep.subr.mxu0 0.0
    %3524 = vmatpush1.msra.mxu0 %v150
    %3525 = vmatprep.subr.mxu0 0.0
    %3526 = vmatpush1.msra.mxu0 %v149
    %3527 = vmatprep.subr.mxu0 0.0
    %3528 = vmatpush1.msra.mxu0 %v148
    %3529 = vmatprep.subr.mxu0 0.0
    %3530 = vmatpush1.msra.mxu0 %v147
    %3531 = vmatprep.subr.mxu0 0.0
    %3532 = vmatpush2.msra.mxu0 0.0
    %3533 = vmatprep.subr.mxu0 0.0
    %3534 = vmatpush2.msra.mxu0 0.0
    %3535 = vmatprep.subr.mxu0 0.0
    %3536 = vmatpush2.msra.mxu0 0.0
    %3537 = vmatprep.subr.mxu0 0.0
    %3538 = vmatpush2.msra.mxu0 0.0
    %3539 = vmatprep.subr.mxu0 0.0
    %3540 = vmatpush2.msra.mxu0 0.0
    %3541 = vmatprep.subr.mxu0 0.0
    %3542 = vmatpush2.msra.mxu0 0.0
    %3543 = vmatprep.subr.mxu0 0.0
    %3544 = vmatpush2.msra.mxu0 0.0
    %3545 = vmatprep.subr.mxu0 0.0
    %3546 = vmatpush2.msra.mxu0 0.0
    %3547 = vmatprep.subr.mxu0 0.0
    %3548 = vmatpush2.msra.mxu0 0.0
    %3549 = vmatprep.subr.mxu0 0.0
    %3550 = vmatpush2.msra.mxu0 0.0
    %3551 = vmatprep.subr.mxu0 0.0
    %3552 = vmatpush2.msra.mxu0 0.0
    %3553 = vmatprep.subr.mxu0 0.0
    %3554 = vmatpush2.msra.mxu0 0.0
    %3555 = vmatprep.subr.mxu0 0.0
    %3556 = vmatpush2.msra.mxu0 0.0
    %3557 = vmatprep.subr.mxu0 0.0
    %3558 = vmatpush2.msra.mxu0 0.0
    %3559 = vmatprep.subr.mxu0 0.0
    %3560 = vmatpush2.msra.mxu0 0.0
    %3561 = vmatprep.subr.mxu0 0.0
    %3562 = vmatpush2.msra.mxu0 0.0
    %3563 = vmatprep.mubr.f32.mxu0 0.0
    %3564 = vmatmul.mubr.f32.gmra.mxu0 %v3497
    %v3565 = vpop.f32.mrf.mxu0
    %v3566 = vadd.f32 0.0, %v3565
    %v3567 = vpop.f32.mrf.mxu0
    %3568 = vdwg.mxu0
    %v3570 = vrot.slane %v3566, 1
    %3571 = vrot.lane.b32.xlu0 %v3570, 16
    %v3572 = vpop.permute.xlu0 %3571
    %v3574 = vadd.f32 %v239, %v3572
    %v3575 = vmax.f32 %v3574, 0.0
    %v3577 = vrot.slane %v3575, 7
    %3578 = vrot.lane.b32.xlu0 %v3577, 112
    %v3579 = vpop.permute.xlu0 %3578
    %v3580 = vsel %vm168, %v3579, 0
    %3582 = vmatprep.subr.mxu0 0.0
    %3583 = vmatpush1.msra.mxu0 0.0
    %3584 = vmatprep.subr.mxu0 0.0
    %3585 = vmatpush1.msra.mxu0 0.0
    %3586 = vmatprep.subr.mxu0 0.0
    %3587 = vmatpush1.msra.mxu0 0.0
    %3588 = vmatprep.subr.mxu0 0.0
    %3589 = vmatpush1.msra.mxu0 0.0
    %3590 = vmatprep.subr.mxu0 0.0
    %3591 = vmatpush1.msra.mxu0 0.0
    %3592 = vmatprep.subr.mxu0 0.0
    %3593 = vmatpush1.msra.mxu0 0.0
    %3594 = vmatprep.subr.mxu0 0.0
    %3595 = vmatpush1.msra.mxu0 0.0
    %3596 = vmatprep.subr.mxu0 0.0
    %3597 = vmatpush1.msra.mxu0 0.0
    %3598 = vmatprep.subr.mxu0 0.0
    %3599 = vmatpush1.msra.mxu0 0.0
    %3600 = vmatprep.subr.mxu0 0.0
    %3601 = vmatpush1.msra.mxu0 0.0
    %3602 = vmatprep.subr.mxu0 0.0
    %3603 = vmatpush1.msra.mxu0 0.0
    %3604 = vmatprep.subr.mxu0 0.0
    %3605 = vmatpush1.msra.mxu0 0.0
    %3606 = vmatprep.subr.mxu0 0.0
    %3607 = vmatpush1.msra.mxu0 %v145
    %3608 = vmatprep.subr.mxu0 0.0
    %3609 = vmatpush1.msra.mxu0 %v144
    %3610 = vmatprep.subr.mxu0 0.0
    %3611 = vmatpush1.msra.mxu0 %v143
    %3612 = vmatprep.subr.mxu0 0.0
    %3613 = vmatpush1.msra.mxu0 %v142
    %3614 = vmatprep.subr.mxu0 0.0
    %3615 = vmatpush2.msra.mxu0 0.0
    %3616 = vmatprep.subr.mxu0 0.0
    %3617 = vmatpush2.msra.mxu0 0.0
    %3618 = vmatprep.subr.mxu0 0.0
    %3619 = vmatpush2.msra.mxu0 0.0
    %3620 = vmatprep.subr.mxu0 0.0
    %3621 = vmatpush2.msra.mxu0 0.0
    %3622 = vmatprep.subr.mxu0 0.0
    %3623 = vmatpush2.msra.mxu0 0.0
    %3624 = vmatprep.subr.mxu0 0.0
    %3625 = vmatpush2.msra.mxu0 0.0
    %3626 = vmatprep.subr.mxu0 0.0
    %3627 = vmatpush2.msra.mxu0 0.0
    %3628 = vmatprep.subr.mxu0 0.0
    %3629 = vmatpush2.msra.mxu0 0.0
    %3630 = vmatprep.subr.mxu0 0.0
    %3631 = vmatpush2.msra.mxu0 0.0
    %3632 = vmatprep.subr.mxu0 0.0
    %3633 = vmatpush2.msra.mxu0 0.0
    %3634 = vmatprep.subr.mxu0 0.0
    %3635 = vmatpush2.msra.mxu0 0.0
    %3636 = vmatprep.subr.mxu0 0.0
    %3637 = vmatpush2.msra.mxu0 0.0
    %3638 = vmatprep.subr.mxu0 0.0
    %3639 = vmatpush2.msra.mxu0 0.0
    %3640 = vmatprep.subr.mxu0 0.0
    %3641 = vmatpush2.msra.mxu0 0.0
    %3642 = vmatprep.subr.mxu0 0.0
    %3643 = vmatpush2.msra.mxu0 0.0
    %3644 = vmatprep.subr.mxu0 0.0
    %3645 = vmatpush2.msra.mxu0 0.0
    %3646 = vmatprep.mubr.f32.mxu0 0.0
    %3647 = vmatmul.mubr.f32.gmra.mxu0 %v3580
    %v3648 = vpop.f32.mrf.mxu0
    %v3649 = vadd.f32 %v146, %v3648
    %v3650 = vpop.f32.mrf.mxu0
    %3651 = vdwg.mxu0
    %v3652 = vadd.f32 %v3649, %v3401
    %v3653 = vxor.u32 %v3652, 2147483648
    %v3654 = vmul.f32 %v3653, 1.442695
    %v3655 = vpow.pop %v3654
    %v3656 = vadd.f32 %v3655, 1.0
    %v3657 = vrcp.pop %v3656
    %v3658 = vmul.f32 1.0, %v3657
    %3659 = vrot.lane.b32.xlu0 %v3401, 64
    %v3660 = vpop.permute.xlu0 %3659
    %v3662 = vmul.f32 %v3658, %v3660
    %3664 = vrot.lane.b32.xlu0 %v3662, 64
    %v3665 = vpop.permute.xlu0 %3664
    %v3667 = vadd.f32 %v3649, %v3665
    %v3668 = vtanh.pop %v3667
    %v3669 = vsub.f32 1.0, %v3658
    %3671 = vrot.lane.b32.xlu0 %v3668, 96
    %v3672 = vpop.permute.xlu0 %3671
    %v3674 = vmul.f32 %v3669, %v3672
    %v3675 = vmul.f32 %v3658, %v3236
    %v3676 = vadd.f32 %v3674, %v3675
    %3678 = vrot.lane.b32.xlu0 %v3676, 96
    %v3679 = vpop.permute.xlu0 %3678
    %v3680 = vsel %vm168, %v3679, 0
    %3682 = vmatprep.subr.mxu0 0.0
    %3683 = vmatpush1.msra.mxu0 0.0
    %3684 = vmatprep.subr.mxu0 0.0
    %3685 = vmatpush1.msra.mxu0 0.0
    %3686 = vmatprep.subr.mxu0 0.0
    %3687 = vmatpush1.msra.mxu0 0.0
    %3688 = vmatprep.subr.mxu0 0.0
    %3689 = vmatpush1.msra.mxu0 0.0
    %3690 = vmatprep.subr.mxu0 0.0
    %3691 = vmatpush1.msra.mxu0 0.0
    %3692 = vmatprep.subr.mxu0 0.0
    %3693 = vmatpush1.msra.mxu0 0.0
    %3694 = vmatprep.subr.mxu0 0.0
    %3695 = vmatpush1.msra.mxu0 0.0
    %3696 = vmatprep.subr.mxu0 0.0
    %3697 = vmatpush1.msra.mxu0 0.0
    %3698 = vmatprep.subr.mxu0 0.0
    %3699 = vmatpush1.msra.mxu0 0.0
    %3700 = vmatprep.subr.mxu0 0.0
    %3701 = vmatpush1.msra.mxu0 0.0
    %3702 = vmatprep.subr.mxu0 0.0
    %3703 = vmatpush1.msra.mxu0 0.0
    %3704 = vmatprep.subr.mxu0 0.0
    %3705 = vmatpush1.msra.mxu0 0.0
    %3706 = vmatprep.subr.mxu0 0.0
    %3707 = vmatpush1.msra.mxu0 %v154
    %3708 = vmatprep.subr.mxu0 0.0
    %3709 = vmatpush1.msra.mxu0 %v153
    %3710 = vmatprep.subr.mxu0 0.0
    %3711 = vmatpush1.msra.mxu0 %v152
    %3712 = vmatprep.subr.mxu0 0.0
    %3713 = vmatpush1.msra.mxu0 %v151
    %3714 = vmatprep.subr.mxu0 0.0
    %3715 = vmatpush2.msra.mxu0 0.0
    %3716 = vmatprep.subr.mxu0 0.0
    %3717 = vmatpush2.msra.mxu0 0.0
    %3718 = vmatprep.subr.mxu0 0.0
    %3719 = vmatpush2.msra.mxu0 0.0
    %3720 = vmatprep.subr.mxu0 0.0
    %3721 = vmatpush2.msra.mxu0 0.0
    %3722 = vmatprep.subr.mxu0 0.0
    %3723 = vmatpush2.msra.mxu0 0.0
    %3724 = vmatprep.subr.mxu0 0.0
    %3725 = vmatpush2.msra.mxu0 0.0
    %3726 = vmatprep.subr.mxu0 0.0
    %3727 = vmatpush2.msra.mxu0 0.0
    %3728 = vmatprep.subr.mxu0 0.0
    %3729 = vmatpush2.msra.mxu0 0.0
    %3730 = vmatprep.subr.mxu0 0.0
    %3731 = vmatpush2.msra.mxu0 0.0
    %3732 = vmatprep.subr.mxu0 0.0
    %3733 = vmatpush2.msra.mxu0 0.0
    %3734 = vmatprep.subr.mxu0 0.0
    %3735 = vmatpush2.msra.mxu0 0.0
    %3736 = vmatprep.subr.mxu0 0.0
    %3737 = vmatpush2.msra.mxu0 0.0
    %3738 = vmatprep.subr.mxu0 0.0
    %3739 = vmatpush2.msra.mxu0 0.0
    %3740 = vmatprep.subr.mxu0 0.0
    %3741 = vmatpush2.msra.mxu0 0.0
    %3742 = vmatprep.subr.mxu0 0.0
    %3743 = vmatpush2.msra.mxu0 0.0
    %3744 = vmatprep.subr.mxu0 0.0
    %3745 = vmatpush2.msra.mxu0 0.0
    %3746 = vmatprep.mubr.f32.mxu0 0.0
    %3747 = vmatmul.mubr.f32.gmra.mxu0 %v3680
    %v3748 = vpop.f32.mrf.mxu0
    %v3749 = vadd.f32 %v155, %v3748
    %v3750 = vpop.f32.mrf.mxu0
    %3751 = vdwg.mxu0
    %v3752 = vsel %vm668, %v3749, -inf
    %3753 = vmax.xlane.f32.xlu0 %v3752
    %v3754 = vpop.xlane.xlu0 %3753
    %v3755 = vsub.f32 %v3749, %v3754
    %v3756 = vmul.f32 %v3755, 1.442695
    %v3757 = vpow.pop %v3756
    %v3758 = vsel %vm668, %v3757, 0.0
    %3759 = vadd.xlane.f32.xlu0 %v3758
    %v3760 = vpop.xlane.xlu0 %3759
    %v3761 = vlog2.pop %v3760
    %v3762 = vmul.f32 %v3761, 0.6931472
    %v3763 = vsub.f32 %v3755, %v3762
    %3764 = vrot.lane.b32.xlu0 %v3676, 32
    %v3765 = vpop.permute.xlu0 %3764
    %3767 = vrot.lane.b32.xlu0 %v3423, 96
    %v3768 = vpop.permute.xlu0 %3767
    %v3770 = vsel %vm687, %v3763, %v3765
    %v3771 = vsel %vm689, %v3770, %v3768
    %v3772 = vsel %vm691, %v3771, 0.0
    %3773 = vst [vmem:[#allocation14 + $0x7] sm:$0x1] %v3772
    // Predicated region
    $region78: #{tpu_custom_call.1} parent=1 // pred_check
      _
    $region79: #{tpu_custom_call.1} parent=1 // pred_check_branch
      %3775 = sbr.rel (0) target = $region81
    $region80: #{tpu_custom_call.1} parent=1 // pred_region
      %s3777 = ssub.s32 128, 128
      %3778 = vsyncadd [#allocation4], %s3777
      %s3780 = sshll.u32 [#allocation14], 4
      %s3781 = int_to_ptr.vmem [resolvable:$true] %s3780
      %3783 = dma.vmem_to_hbm [thread:$0]  %s3781, 128, %s12, [#allocation4]
    $region81: #{tpu_custom_call.1} parent=1 // pred_fallthru
      _
    // Predicated region
    $region82: #{tpu_custom_call.1} parent=1 // pred_check
      _
    $region83: #{tpu_custom_call.1} parent=1 // pred_check_branch
      %3785 = sbr.rel (0) target = $region85
    $region84: #{tpu_custom_call.1} parent=1 // pred_region
      %3786 = dma.done [#allocation4], 128
    $region85: #{tpu_custom_call.1} parent=1 // pred_fallthru
      _
    %3787 = vsyncpa [#allocation3], 1
    %3788 = vsyncpa [#allocation6], 1
    %3789 = vsyncpa [#allocation9], 1
    %3790 = vsyncpa [#allocation12], 1
    %3791 = vsyncpa [#allocation4], 1

</llo_original>
